<compile_context>
chip_gen: v6e
topology: v6e:2x2x1
jax: 0.10.0
libtpu: 0.0.40
codegen_flags: <defaults>
</compile_context>

<pallas_src>
import functools

import jax
import jax.numpy as jnp
from jax.experimental import pallas as pl
from jax.experimental.pallas import tpu as pltpu

# ----------------------------- config (small, consistent with the module) ----
B = 2                  # batch
T = 8                  # sequence length (<= BLOCK_SIZE)
NUM_HEADS = 4
HEAD_SIZE = 16         # matches head_size=16 in the spec
N_EMBD = NUM_HEADS * HEAD_SIZE   # 64
N_LAYER = 2
VOCAB = 65
VPAD = 128             # lane-dense padded lm_head width (logits sliced to 65)
BLOCK_SIZE = 16        # max positions (pos-embedding table rows)
LN_EPS = 1e-5
BIG_NEG = -1e30        # finite causal-mask fill (no -inf -> no NaN hazard)

# full-precision dots for the plain-JAX reference (matches the kernel's f32
# MXU accumulation instead of XLA's default bf16-pass f32 matmul)
_HP = dict(precision=jax.lax.Precision.HIGHEST,
           preferred_element_type=jnp.float32)


# ----------------------------- shared math ------------------------------------
def _layernorm(x, gamma, beta, eps=LN_EPS):
    """Works inside the kernel (2D) and in the plain-JAX reference (3D)."""
    mu = jnp.mean(x, axis=-1, keepdims=True)
    var = jnp.mean(jnp.square(x - mu), axis=-1, keepdims=True)
    return (x - mu) * jax.lax.rsqrt(var + eps) * gamma + beta


# ----------------------------- fused full-forward kernel ----------------------
def _gpt_forward_kernel(x_ref, ln1g_ref, ln1b_ref, wqkv_ref, wproj_ref,
                        bproj_ref, ln2g_ref, ln2b_ref, wfc1_ref, bfc1_ref,
                        wfc2_ref, bfc2_ref, lnfg_ref, lnfb_ref, wlm_ref,
                        blm_ref, o_ref, *, n_layer, num_heads, head_size,
                        batch, seq):
    c = num_heads * head_size
    x = x_ref[...]                                     # (B*T, C) f32 slab

    # causal mask + scale, hoisted (shared by every layer / batch / head)
    row = jax.lax.broadcasted_iota(jnp.int32, (seq, seq), 0)
    col = jax.lax.broadcasted_iota(jnp.int32, (seq, seq), 1)
    causal = (col <= row)[None, :, :]                  # (1, T, T)
    scale = head_size ** -0.5

    def head_stack(a):
        """(B*T, C) -> (B*H, T, hs) stack of per-(batch, head) tiles."""
        parts = []
        for b in range(batch):
            rs = slice(b * seq, (b + 1) * seq)
            for h in range(num_heads):
                cs = slice(h * head_size, (h + 1) * head_size)
                parts.append(a[rs, cs])
        return jnp.stack(parts, axis=0)

    for l in range(n_layer):                           # static unroll (N_LAYER)
        # ---- LayerNorm 1 ----
        xn = _layernorm(x, ln1g_ref[l], ln1b_ref[l])

        # ---- fused QKV projection on the flattened (B*T, C) slab ----
        qkv = jnp.dot(xn, wqkv_ref[l], preferred_element_type=jnp.float32)
        q = head_stack(qkv[:, 0 * c:1 * c])            # (B*H, T, hs)
        k = head_stack(qkv[:, 1 * c:2 * c])
        v = head_stack(qkv[:, 2 * c:3 * c])

        # ---- batched causal attention over all (batch, head) pairs ----
        wei = jnp.einsum('ntd,nsd->nts', q, k,
                         preferred_element_type=jnp.float32) * scale
        wei = jnp.where(causal, wei, BIG_NEG)
        m = jnp.max(wei, axis=-1, keepdims=True)
        e = jnp.exp(wei - m)
        p = e / jnp.sum(e, axis=-1, keepdims=True)     # exact softmax division
        # attention-dropout: identity in eval mode
        out = jnp.einsum('nts,nsd->ntd', p, v,
                         preferred_element_type=jnp.float32)   # (B*H, T, hs)

        # ---- re-assemble (B*T, C) and run ONE K=C output projection ----
        sa = jnp.concatenate(
            [jnp.concatenate(
                [out[b * num_heads + h] for h in range(num_heads)], axis=-1)
             for b in range(batch)], axis=0)           # (B*T, C)
        sa = jnp.dot(sa, wproj_ref[l],
                     preferred_element_type=jnp.float32) + bproj_ref[l]
        # projection-dropout: identity in eval mode
        x = x + sa                                     # residual 1

        # ---- LayerNorm 2 + FeedForward on the flattened slab ----
        xn2 = _layernorm(x, ln2g_ref[l], ln2b_ref[l])
        hidden = jnp.maximum(
            jnp.dot(xn2, wfc1_ref[l], preferred_element_type=jnp.float32)
            + bfc1_ref[l], 0.0)                        # (B*T, 4C), ReLU
        ff = (jnp.dot(hidden, wfc2_ref[l], preferred_element_type=jnp.float32)
              + bfc2_ref[l])
        # ffwd-dropout: identity in eval mode
        x = x + ff                                     # residual 2

    # ---- final LayerNorm + lane-dense (padded 65 -> 128) lm_head ----
    xf = _layernorm(x, lnfg_ref[...], lnfb_ref[...])
    o_ref[...] = (jnp.dot(xf, wlm_ref[...], preferred_element_type=jnp.float32)
                  + blm_ref[...])


def gpt_forward(x2d, params, *, batch, seq):
    """One fused pallas_call for the whole stack of blocks + ln_f + lm_head."""
    bt, c = x2d.shape
    assert bt == batch * seq and bt % 8 == 0 and c == N_EMBD
    # lane-dense lm_head: pad 65 -> 128 output columns with zeros; the caller
    # slices logits[:, :VOCAB] back off.
    w_lm_p = jnp.pad(params["w_lm"], ((0, 0), (0, VPAD - VOCAB)))
    b_lm_p = jnp.pad(params["b_lm"], ((0, 0), (0, VPAD - VOCAB)))

    kernel = functools.partial(
        _gpt_forward_kernel, n_layer=N_LAYER, num_heads=NUM_HEADS,
        head_size=HEAD_SIZE, batch=batch, seq=seq)
    args = (x2d,
            params["ln1_g"], params["ln1_b"], params["wqkv"],
            params["w_proj"], params["b_proj"],
            params["ln2_g"], params["ln2_b"],
            params["w_fc1"], params["b_fc1"],
            params["w_fc2"], params["b_fc2"],
            params["lnf_g"], params["lnf_b"], w_lm_p, b_lm_p)
    vmem = pl.BlockSpec(memory_space=pltpu.MemorySpace.VMEM)
    return pl.pallas_call(
        kernel,
        out_shape=jax.ShapeDtypeStruct((bt, VPAD), jnp.float32),
        in_specs=[vmem] * len(args),
        out_specs=vmem,
    )(*args)


# ----------------------------- full model forward ----------------------------
@jax.jit
def model_forward(idx, params):
    bsz, t = idx.shape
    # TODO(synk): embedding gather (data-dependent) stays in plain JAX.
    tok = jnp.take(params["tok_emb"], idx, axis=0)            # (B, T, C)
    pos = params["pos_emb"][:t]                               # (T, C)
    x2d = (tok + pos[None]).reshape(bsz * t, N_EMBD)          # flattened slab
    logits_p = gpt_forward(x2d, params, batch=bsz, seq=t)     # (B*T, 128)
    # TODO(synk): targets=None path only (no cross-entropy loss / generate()).
    return logits_p[:, :VOCAB].reshape(bsz, t, VOCAB)


# ----------------------------- reference (plain JAX) -------------------------
def reference(idx, params):
    tok = jnp.take(params["tok_emb"], idx, axis=0)
    t = idx.shape[1]
    x = tok + params["pos_emb"][:t][None]
    mask = jnp.tril(jnp.ones((t, t), dtype=bool))
    for l in range(N_LAYER):
        xn = _layernorm(x, params["ln1_g"][l], params["ln1_b"][l])
        qkv = jnp.einsum('btc,cd->btd', xn, params["wqkv"][l], **_HP)
        q_all, k_all, v_all = jnp.split(qkv, 3, axis=-1)
        heads = []
        for h in range(NUM_HEADS):
            sl = slice(h * HEAD_SIZE, (h + 1) * HEAD_SIZE)
            q, k, v = q_all[..., sl], k_all[..., sl], v_all[..., sl]
            wei = jnp.einsum('btd,bsd->bts', q, k, **_HP) * HEAD_SIZE ** -0.5
            wei = jnp.where(mask, wei, -jnp.inf)
            wei = jax.nn.softmax(wei, axis=-1)
            heads.append(jnp.einsum('bts,bsd->btd', wei, v, **_HP))
        sa = jnp.concatenate(heads, axis=-1)
        x = x + (jnp.einsum('btc,cd->btd', sa, params["w_proj"][l], **_HP)
                 + params["b_proj"][l])
        xn2 = _layernorm(x, params["ln2_g"][l], params["ln2_b"][l])
        hidden = jax.nn.relu(
            jnp.einsum('btc,cd->btd', xn2, params["w_fc1"][l], **_HP)
            + params["b_fc1"][l])
        x = x + (jnp.einsum('btd,dc->btc', hidden, params["w_fc2"][l], **_HP)
                 + params["b_fc2"][l])
    xf = _layernorm(x, params["lnf_g"], params["lnf_b"])
    return (jnp.einsum('btc,cv->btv', xf, params["w_lm"], **_HP)
            + params["b_lm"])


# ----------------------------- params ----------------------------------------
def init_params(key):
    keys = iter(jax.random.split(key, 20))

    def nrm(shape, scale=1.0):
        return scale * jax.random.normal(next(keys), shape, jnp.float32)

    L, C, V = N_LAYER, N_EMBD, VOCAB
    return {
        "tok_emb": nrm((V, C)),
        "pos_emb": nrm((BLOCK_SIZE, C)),
        # per-layer weights stacked on a leading layer axis (VMEM-resident in
        # the fused kernel; looped over with a static unroll).
        "ln1_g": 1.0 + nrm((L, 1, C), 0.1),
        "ln1_b": nrm((L, 1, C), 0.1),
        "wqkv": nrm((L, C, 3 * C), 0.05),   # [Wq | Wk | Wv], head-major cols
        "w_proj": nrm((L, C, C), 0.05),
        "b_proj": nrm((L, 1, C), 0.05),
        "ln2_g": 1.0 + nrm((L, 1, C), 0.1),
        "ln2_b": nrm((L, 1, C), 0.1),
        "w_fc1": nrm((L, C, 4 * C), 0.05),
        "b_fc1": nrm((L, 1, 4 * C), 0.05),
        "w_fc2": nrm((L, 4 * C, C), 0.05),
        "b_fc2": nrm((L, 1, C), 0.05),
        "lnf_g": 1.0 + nrm((1, C), 0.1),
        "lnf_b": nrm((1, C), 0.1),
        "w_lm": nrm((C, V), 0.05),
        "b_lm": nrm((1, V), 0.05),
    }


# ----------------------------- main -------------------------------------------
if __name__ == "__main__":
    key = jax.random.PRNGKey(0)
    k_idx, k_params = jax.random.split(key)

    idx = jax.random.randint(k_idx, (B, T), 0, VOCAB, dtype=jnp.int32)
    params = init_params(k_params)

    logits = jax.block_until_ready(model_forward(idx, params))
    ref = reference(idx, params)

    assert logits.shape == (B, T, VOCAB)
    max_err = float(jnp.max(jnp.abs(logits - ref)))
    # Exact softmax division (no approx reciprocal) -> tight tolerance restored
    # (was 1e-2); remaining slack only covers MXU-pass / transcendental ULP
    # differences between Mosaic and XLA.
    assert jnp.allclose(logits, ref, atol=2e-4, rtol=2e-4), max_err
    print("KERNEL_OK")
</pallas_src>

<mosaic_0001>
module attributes {stable_mosaic.version = 11 : i64} {
  func.func @_gpt_forward_kernel(%arg0: memref<16x64xf32, #tpu.memory_space<vmem>>, %arg1: memref<2x1x64xf32, #tpu.memory_space<vmem>>, %arg2: memref<2x1x64xf32, #tpu.memory_space<vmem>>, %arg3: memref<2x64x192xf32, #tpu.memory_space<vmem>>, %arg4: memref<2x64x64xf32, #tpu.memory_space<vmem>>, %arg5: memref<2x1x64xf32, #tpu.memory_space<vmem>>, %arg6: memref<2x1x64xf32, #tpu.memory_space<vmem>>, %arg7: memref<2x1x64xf32, #tpu.memory_space<vmem>>, %arg8: memref<2x64x256xf32, #tpu.memory_space<vmem>>, %arg9: memref<2x1x256xf32, #tpu.memory_space<vmem>>, %arg10: memref<2x256x64xf32, #tpu.memory_space<vmem>>, %arg11: memref<2x1x64xf32, #tpu.memory_space<vmem>>, %arg12: memref<1x64xf32, #tpu.memory_space<vmem>>, %arg13: memref<1x64xf32, #tpu.memory_space<vmem>>, %arg14: memref<64x128xf32, #tpu.memory_space<vmem>>, %arg15: memref<1x128xf32, #tpu.memory_space<vmem>>, %arg16: memref<16x128xf32, #tpu.memory_space<vmem>>) attributes {dimension_semantics = [], scalar_prefetch = 0 : i64, scratch_operands = 0 : i64, tpu.core_type = #tpu.core_type<tc>} {
    %c0 = arith.constant 0 : index
    %c0_0 = arith.constant 0 : index
    %0 = vector.load %arg0[%c0, %c0_0] : memref<16x64xf32, #tpu.memory_space<vmem>>, vector<16x64xf32>
    %1 = tpu.iota {dimensions = array<i32: 0>} : vector<8x8xi32>
    %2 = tpu.iota {dimensions = array<i32: 1>} : vector<8x8xi32>
    %3 = arith.cmpi sle, %2, %1 : vector<8x8xi32>
    %4 = vector.shape_cast %3 : vector<8x8xi1> to vector<1x8x8xi1>
    %c0_1 = arith.constant 0 : index
    %c0_2 = arith.constant 0 : index
    %c0_3 = arith.constant 0 : index
    %5 = vector.load %arg1[%c0_1, %c0_2, %c0_3] : memref<2x1x64xf32, #tpu.memory_space<vmem>>, vector<1x1x64xf32>
    %6 = vector.shape_cast %5 : vector<1x1x64xf32> to vector<1x64xf32>
    %c0_4 = arith.constant 0 : index
    %c0_5 = arith.constant 0 : index
    %c0_6 = arith.constant 0 : index
    %7 = vector.load %arg2[%c0_4, %c0_5, %c0_6] : memref<2x1x64xf32, #tpu.memory_space<vmem>>, vector<1x1x64xf32>
    %8 = vector.shape_cast %7 : vector<1x1x64xf32> to vector<1x64xf32>
    %cst = arith.constant dense<0.000000e+00> : vector<16xf32>
    %9 = vector.multi_reduction <add>, %0, %cst [1] : vector<16x64xf32> to vector<16xf32>
    %10 = vector.shape_cast %9 : vector<16xf32> to vector<16x1xf32>
    %cst_7 = arith.constant 6.400000e+01 : f32
    %11 = vector.broadcast %cst_7 : f32 to vector<16x1xf32>
    %12 = arith.divf %10, %11 : vector<16x1xf32>
    %13 = vector.broadcast %12 : vector<16x1xf32> to vector<16x64xf32>
    %14 = arith.subf %0, %13 : vector<16x64xf32>
    %15 = arith.mulf %14, %14 : vector<16x64xf32>
    %cst_8 = arith.constant dense<0.000000e+00> : vector<16xf32>
    %16 = vector.multi_reduction <add>, %15, %cst_8 [1] : vector<16x64xf32> to vector<16xf32>
    %17 = vector.shape_cast %16 : vector<16xf32> to vector<16x1xf32>
    %cst_9 = arith.constant 6.400000e+01 : f32
    %18 = vector.broadcast %cst_9 : f32 to vector<16x1xf32>
    %19 = arith.divf %17, %18 : vector<16x1xf32>
    %20 = vector.broadcast %12 : vector<16x1xf32> to vector<16x64xf32>
    %21 = arith.subf %0, %20 : vector<16x64xf32>
    %cst_10 = arith.constant 9.99999974E-6 : f32
    %22 = vector.broadcast %cst_10 : f32 to vector<16x1xf32>
    %23 = arith.addf %19, %22 : vector<16x1xf32>
    %24 = math.rsqrt %23 : vector<16x1xf32>
    %25 = vector.broadcast %24 : vector<16x1xf32> to vector<16x64xf32>
    %26 = arith.mulf %21, %25 : vector<16x64xf32>
    %27 = vector.broadcast %6 : vector<1x64xf32> to vector<16x64xf32>
    %28 = arith.mulf %26, %27 : vector<16x64xf32>
    %29 = vector.broadcast %8 : vector<1x64xf32> to vector<16x64xf32>
    %30 = arith.addf %28, %29 : vector<16x64xf32>
    %c0_11 = arith.constant 0 : index
    %c0_12 = arith.constant 0 : index
    %c0_13 = arith.constant 0 : index
    %31 = vector.load %arg3[%c0_11, %c0_12, %c0_13] : memref<2x64x192xf32, #tpu.memory_space<vmem>>, vector<1x64x192xf32>
    %32 = vector.shape_cast %31 : vector<1x64x192xf32> to vector<64x192xf32>
    %cst_14 = arith.constant dense<0.000000e+00> : vector<16x192xf32>
    %33 = tpu.matmul %30, %32, %cst_14 {dimension_numbers = #tpu.dot_dimension_numbers<[1], [0], [0], [1], [0, 0, 1, 1], [], []>} : vector<16x64xf32>, vector<64x192xf32>, vector<16x192xf32> -> vector<16x192xf32>
    %34 = vector.extract_strided_slice %33 {offsets = [0, 0], sizes = [16, 64], strides = [1, 1]} : vector<16x192xf32> to vector<16x64xf32>
    %35 = vector.extract_strided_slice %34 {offsets = [0, 0], sizes = [8, 16], strides = [1, 1]} : vector<16x64xf32> to vector<8x16xf32>
    %36 = vector.extract_strided_slice %34 {offsets = [0, 16], sizes = [8, 16], strides = [1, 1]} : vector<16x64xf32> to vector<8x16xf32>
    %37 = vector.extract_strided_slice %34 {offsets = [0, 32], sizes = [8, 16], strides = [1, 1]} : vector<16x64xf32> to vector<8x16xf32>
    %38 = vector.extract_strided_slice %34 {offsets = [0, 48], sizes = [8, 16], strides = [1, 1]} : vector<16x64xf32> to vector<8x16xf32>
    %39 = vector.extract_strided_slice %34 {offsets = [8, 0], sizes = [8, 16], strides = [1, 1]} : vector<16x64xf32> to vector<8x16xf32>
    %40 = vector.extract_strided_slice %34 {offsets = [8, 16], sizes = [8, 16], strides = [1, 1]} : vector<16x64xf32> to vector<8x16xf32>
    %41 = vector.extract_strided_slice %34 {offsets = [8, 32], sizes = [8, 16], strides = [1, 1]} : vector<16x64xf32> to vector<8x16xf32>
    %42 = vector.extract_strided_slice %34 {offsets = [8, 48], sizes = [8, 16], strides = [1, 1]} : vector<16x64xf32> to vector<8x16xf32>
    %43 = vector.shape_cast %35 : vector<8x16xf32> to vector<1x8x16xf32>
    %44 = vector.shape_cast %36 : vector<8x16xf32> to vector<1x8x16xf32>
    %45 = vector.shape_cast %37 : vector<8x16xf32> to vector<1x8x16xf32>
    %46 = vector.shape_cast %38 : vector<8x16xf32> to vector<1x8x16xf32>
    %47 = vector.shape_cast %39 : vector<8x16xf32> to vector<1x8x16xf32>
    %48 = vector.shape_cast %40 : vector<8x16xf32> to vector<1x8x16xf32>
    %49 = vector.shape_cast %41 : vector<8x16xf32> to vector<1x8x16xf32>
    %50 = vector.shape_cast %42 : vector<8x16xf32> to vector<1x8x16xf32>
    %51 = tpu.concatenate %43, %44, %45, %46, %47, %48, %49, %50 in 0 : vector<1x8x16xf32>, vector<1x8x16xf32>, vector<1x8x16xf32>, vector<1x8x16xf32>, vector<1x8x16xf32>, vector<1x8x16xf32>, vector<1x8x16xf32>, vector<1x8x16xf32> -> vector<8x8x16xf32>
    %52 = vector.extract_strided_slice %33 {offsets = [0, 64], sizes = [16, 64], strides = [1, 1]} : vector<16x192xf32> to vector<16x64xf32>
    %53 = vector.extract_strided_slice %52 {offsets = [0, 0], sizes = [8, 16], strides = [1, 1]} : vector<16x64xf32> to vector<8x16xf32>
    %54 = vector.extract_strided_slice %52 {offsets = [0, 16], sizes = [8, 16], strides = [1, 1]} : vector<16x64xf32> to vector<8x16xf32>
    %55 = vector.extract_strided_slice %52 {offsets = [0, 32], sizes = [8, 16], strides = [1, 1]} : vector<16x64xf32> to vector<8x16xf32>
    %56 = vector.extract_strided_slice %52 {offsets = [0, 48], sizes = [8, 16], strides = [1, 1]} : vector<16x64xf32> to vector<8x16xf32>
    %57 = vector.extract_strided_slice %52 {offsets = [8, 0], sizes = [8, 16], strides = [1, 1]} : vector<16x64xf32> to vector<8x16xf32>
    %58 = vector.extract_strided_slice %52 {offsets = [8, 16], sizes = [8, 16], strides = [1, 1]} : vector<16x64xf32> to vector<8x16xf32>
    %59 = vector.extract_strided_slice %52 {offsets = [8, 32], sizes = [8, 16], strides = [1, 1]} : vector<16x64xf32> to vector<8x16xf32>
    %60 = vector.extract_strided_slice %52 {offsets = [8, 48], sizes = [8, 16], strides = [1, 1]} : vector<16x64xf32> to vector<8x16xf32>
    %61 = vector.shape_cast %53 : vector<8x16xf32> to vector<1x8x16xf32>
    %62 = vector.shape_cast %54 : vector<8x16xf32> to vector<1x8x16xf32>
    %63 = vector.shape_cast %55 : vector<8x16xf32> to vector<1x8x16xf32>
    %64 = vector.shape_cast %56 : vector<8x16xf32> to vector<1x8x16xf32>
    %65 = vector.shape_cast %57 : vector<8x16xf32> to vector<1x8x16xf32>
    %66 = vector.shape_cast %58 : vector<8x16xf32> to vector<1x8x16xf32>
    %67 = vector.shape_cast %59 : vector<8x16xf32> to vector<1x8x16xf32>
    %68 = vector.shape_cast %60 : vector<8x16xf32> to vector<1x8x16xf32>
    %69 = tpu.concatenate %61, %62, %63, %64, %65, %66, %67, %68 in 0 : vector<1x8x16xf32>, vector<1x8x16xf32>, vector<1x8x16xf32>, vector<1x8x16xf32>, vector<1x8x16xf32>, vector<1x8x16xf32>, vector<1x8x16xf32>, vector<1x8x16xf32> -> vector<8x8x16xf32>
    %70 = vector.extract_strided_slice %33 {offsets = [0, 128], sizes = [16, 64], strides = [1, 1]} : vector<16x192xf32> to vector<16x64xf32>
    %71 = vector.extract_strided_slice %70 {offsets = [0, 0], sizes = [8, 16], strides = [1, 1]} : vector<16x64xf32> to vector<8x16xf32>
    %72 = vector.extract_strided_slice %70 {offsets = [0, 16], sizes = [8, 16], strides = [1, 1]} : vector<16x64xf32> to vector<8x16xf32>
    %73 = vector.extract_strided_slice %70 {offsets = [0, 32], sizes = [8, 16], strides = [1, 1]} : vector<16x64xf32> to vector<8x16xf32>
    %74 = vector.extract_strided_slice %70 {offsets = [0, 48], sizes = [8, 16], strides = [1, 1]} : vector<16x64xf32> to vector<8x16xf32>
    %75 = vector.extract_strided_slice %70 {offsets = [8, 0], sizes = [8, 16], strides = [1, 1]} : vector<16x64xf32> to vector<8x16xf32>
    %76 = vector.extract_strided_slice %70 {offsets = [8, 16], sizes = [8, 16], strides = [1, 1]} : vector<16x64xf32> to vector<8x16xf32>
    %77 = vector.extract_strided_slice %70 {offsets = [8, 32], sizes = [8, 16], strides = [1, 1]} : vector<16x64xf32> to vector<8x16xf32>
    %78 = vector.extract_strided_slice %70 {offsets = [8, 48], sizes = [8, 16], strides = [1, 1]} : vector<16x64xf32> to vector<8x16xf32>
    %79 = vector.shape_cast %71 : vector<8x16xf32> to vector<1x8x16xf32>
    %80 = vector.shape_cast %72 : vector<8x16xf32> to vector<1x8x16xf32>
    %81 = vector.shape_cast %73 : vector<8x16xf32> to vector<1x8x16xf32>
    %82 = vector.shape_cast %74 : vector<8x16xf32> to vector<1x8x16xf32>
    %83 = vector.shape_cast %75 : vector<8x16xf32> to vector<1x8x16xf32>
    %84 = vector.shape_cast %76 : vector<8x16xf32> to vector<1x8x16xf32>
    %85 = vector.shape_cast %77 : vector<8x16xf32> to vector<1x8x16xf32>
    %86 = vector.shape_cast %78 : vector<8x16xf32> to vector<1x8x16xf32>
    %87 = tpu.concatenate %79, %80, %81, %82, %83, %84, %85, %86 in 0 : vector<1x8x16xf32>, vector<1x8x16xf32>, vector<1x8x16xf32>, vector<1x8x16xf32>, vector<1x8x16xf32>, vector<1x8x16xf32>, vector<1x8x16xf32>, vector<1x8x16xf32> -> vector<8x8x16xf32>
    "tpu.trace_start"() <{level = 10 : i32, message = "ntd,nsd->nts"}> : () -> ()
    %cst_15 = arith.constant dense<0.000000e+00> : vector<8x8x8xf32>
    %88 = tpu.matmul %51, %69, %cst_15 {dimension_numbers = #tpu.dot_dimension_numbers<[2], [2], [1], [1], [0, 0, 0, 1, 1, 1], [0], [0]>} : vector<8x8x16xf32>, vector<8x8x16xf32>, vector<8x8x8xf32> -> vector<8x8x8xf32>
    "tpu.trace_stop"() : () -> ()
    %cst_16 = arith.constant 2.500000e-01 : f32
    %89 = vector.broadcast %cst_16 : f32 to vector<8x8x8xf32>
    %90 = arith.mulf %88, %89 : vector<8x8x8xf32>
    %cst_17 = arith.constant -1.000000e+30 : f32
    %91 = vector.shape_cast %4 : vector<1x8x8xi1> to vector<1x8x8xi1>
    %92 = vector.broadcast %91 : vector<1x8x8xi1> to vector<8x8x8xi1>
    %93 = vector.broadcast %cst_17 : f32 to vector<8x8x8xf32>
    %94 = arith.select %92, %90, %93 : vector<8x8x8xi1>, vector<8x8x8xf32>
    %cst_18 = arith.constant dense<0xFF800000> : vector<8x8xf32>
    %95 = vector.multi_reduction <maximumf>, %94, %cst_18 [2] : vector<8x8x8xf32> to vector<8x8xf32>
    %96 = vector.shape_cast %95 : vector<8x8xf32> to vector<8x8x1xf32>
    %97 = vector.broadcast %96 : vector<8x8x1xf32> to vector<8x8x8xf32>
    %98 = arith.subf %94, %97 : vector<8x8x8xf32>
    %99 = math.exp %98 : vector<8x8x8xf32>
    %cst_19 = arith.constant dense<0.000000e+00> : vector<8x8xf32>
    %100 = vector.multi_reduction <add>, %99, %cst_19 [2] : vector<8x8x8xf32> to vector<8x8xf32>
    %101 = vector.shape_cast %100 : vector<8x8xf32> to vector<8x8x1xf32>
    %102 = vector.broadcast %101 : vector<8x8x1xf32> to vector<8x8x8xf32>
    %103 = arith.divf %99, %102 : vector<8x8x8xf32>
    "tpu.trace_start"() <{level = 10 : i32, message = "nts,nsd->ntd"}> : () -> ()
    %cst_20 = arith.constant dense<0.000000e+00> : vector<8x8x16xf32>
    %104 = tpu.matmul %103, %87, %cst_20 {dimension_numbers = #tpu.dot_dimension_numbers<[2], [1], [1], [2], [0, 0, 0, 1, 1, 2], [0], [0]>} : vector<8x8x8xf32>, vector<8x8x16xf32>, vector<8x8x16xf32> -> vector<8x8x16xf32>
    "tpu.trace_stop"() : () -> ()
    %105 = vector.extract_strided_slice %104 {offsets = [0, 0, 0], sizes = [1, 8, 16], strides = [1, 1, 1]} : vector<8x8x16xf32> to vector<1x8x16xf32>
    %106 = vector.shape_cast %105 : vector<1x8x16xf32> to vector<8x16xf32>
    %107 = vector.extract_strided_slice %104 {offsets = [1, 0, 0], sizes = [1, 8, 16], strides = [1, 1, 1]} : vector<8x8x16xf32> to vector<1x8x16xf32>
    %108 = vector.shape_cast %107 : vector<1x8x16xf32> to vector<8x16xf32>
    %109 = vector.extract_strided_slice %104 {offsets = [2, 0, 0], sizes = [1, 8, 16], strides = [1, 1, 1]} : vector<8x8x16xf32> to vector<1x8x16xf32>
    %110 = vector.shape_cast %109 : vector<1x8x16xf32> to vector<8x16xf32>
    %111 = vector.extract_strided_slice %104 {offsets = [3, 0, 0], sizes = [1, 8, 16], strides = [1, 1, 1]} : vector<8x8x16xf32> to vector<1x8x16xf32>
    %112 = vector.shape_cast %111 : vector<1x8x16xf32> to vector<8x16xf32>
    %113 = tpu.concatenate %106, %108, %110, %112 in 1 : vector<8x16xf32>, vector<8x16xf32>, vector<8x16xf32>, vector<8x16xf32> -> vector<8x64xf32>
    %114 = vector.extract_strided_slice %104 {offsets = [4, 0, 0], sizes = [1, 8, 16], strides = [1, 1, 1]} : vector<8x8x16xf32> to vector<1x8x16xf32>
    %115 = vector.shape_cast %114 : vector<1x8x16xf32> to vector<8x16xf32>
    %116 = vector.extract_strided_slice %104 {offsets = [5, 0, 0], sizes = [1, 8, 16], strides = [1, 1, 1]} : vector<8x8x16xf32> to vector<1x8x16xf32>
    %117 = vector.shape_cast %116 : vector<1x8x16xf32> to vector<8x16xf32>
    %118 = vector.extract_strided_slice %104 {offsets = [6, 0, 0], sizes = [1, 8, 16], strides = [1, 1, 1]} : vector<8x8x16xf32> to vector<1x8x16xf32>
    %119 = vector.shape_cast %118 : vector<1x8x16xf32> to vector<8x16xf32>
    %120 = vector.extract_strided_slice %104 {offsets = [7, 0, 0], sizes = [1, 8, 16], strides = [1, 1, 1]} : vector<8x8x16xf32> to vector<1x8x16xf32>
    %121 = vector.shape_cast %120 : vector<1x8x16xf32> to vector<8x16xf32>
    %122 = tpu.concatenate %115, %117, %119, %121 in 1 : vector<8x16xf32>, vector<8x16xf32>, vector<8x16xf32>, vector<8x16xf32> -> vector<8x64xf32>
    %123 = tpu.concatenate %113, %122 in 0 : vector<8x64xf32>, vector<8x64xf32> -> vector<16x64xf32>
    %c0_21 = arith.constant 0 : index
    %c0_22 = arith.constant 0 : index
    %c0_23 = arith.constant 0 : index
    %124 = vector.load %arg4[%c0_21, %c0_22, %c0_23] : memref<2x64x64xf32, #tpu.memory_space<vmem>>, vector<1x64x64xf32>
    %125 = vector.shape_cast %124 : vector<1x64x64xf32> to vector<64x64xf32>
    %cst_24 = arith.constant dense<0.000000e+00> : vector<16x64xf32>
    %126 = tpu.matmul %123, %125, %cst_24 {dimension_numbers = #tpu.dot_dimension_numbers<[1], [0], [0], [1], [0, 0, 1, 1], [], []>} : vector<16x64xf32>, vector<64x64xf32>, vector<16x64xf32> -> vector<16x64xf32>
    %c0_25 = arith.constant 0 : index
    %c0_26 = arith.constant 0 : index
    %c0_27 = arith.constant 0 : index
    %127 = vector.load %arg5[%c0_25, %c0_26, %c0_27] : memref<2x1x64xf32, #tpu.memory_space<vmem>>, vector<1x1x64xf32>
    %128 = vector.shape_cast %127 : vector<1x1x64xf32> to vector<1x64xf32>
    %129 = vector.broadcast %128 : vector<1x64xf32> to vector<16x64xf32>
    %130 = arith.addf %126, %129 : vector<16x64xf32>
    %131 = arith.addf %0, %130 : vector<16x64xf32>
    %c0_28 = arith.constant 0 : index
    %c0_29 = arith.constant 0 : index
    %c0_30 = arith.constant 0 : index
    %132 = vector.load %arg6[%c0_28, %c0_29, %c0_30] : memref<2x1x64xf32, #tpu.memory_space<vmem>>, vector<1x1x64xf32>
    %133 = vector.shape_cast %132 : vector<1x1x64xf32> to vector<1x64xf32>
    %c0_31 = arith.constant 0 : index
    %c0_32 = arith.constant 0 : index
    %c0_33 = arith.constant 0 : index
    %134 = vector.load %arg7[%c0_31, %c0_32, %c0_33] : memref<2x1x64xf32, #tpu.memory_space<vmem>>, vector<1x1x64xf32>
    %135 = vector.shape_cast %134 : vector<1x1x64xf32> to vector<1x64xf32>
    %cst_34 = arith.constant dense<0.000000e+00> : vector<16xf32>
    %136 = vector.multi_reduction <add>, %131, %cst_34 [1] : vector<16x64xf32> to vector<16xf32>
    %137 = vector.shape_cast %136 : vector<16xf32> to vector<16x1xf32>
    %cst_35 = arith.constant 6.400000e+01 : f32
    %138 = vector.broadcast %cst_35 : f32 to vector<16x1xf32>
    %139 = arith.divf %137, %138 : vector<16x1xf32>
    %140 = vector.broadcast %139 : vector<16x1xf32> to vector<16x64xf32>
    %141 = arith.subf %131, %140 : vector<16x64xf32>
    %142 = arith.mulf %141, %141 : vector<16x64xf32>
    %cst_36 = arith.constant dense<0.000000e+00> : vector<16xf32>
    %143 = vector.multi_reduction <add>, %142, %cst_36 [1] : vector<16x64xf32> to vector<16xf32>
    %144 = vector.shape_cast %143 : vector<16xf32> to vector<16x1xf32>
    %cst_37 = arith.constant 6.400000e+01 : f32
    %145 = vector.broadcast %cst_37 : f32 to vector<16x1xf32>
    %146 = arith.divf %144, %145 : vector<16x1xf32>
    %147 = vector.broadcast %139 : vector<16x1xf32> to vector<16x64xf32>
    %148 = arith.subf %131, %147 : vector<16x64xf32>
    %cst_38 = arith.constant 9.99999974E-6 : f32
    %149 = vector.broadcast %cst_38 : f32 to vector<16x1xf32>
    %150 = arith.addf %146, %149 : vector<16x1xf32>
    %151 = math.rsqrt %150 : vector<16x1xf32>
    %152 = vector.broadcast %151 : vector<16x1xf32> to vector<16x64xf32>
    %153 = arith.mulf %148, %152 : vector<16x64xf32>
    %154 = vector.broadcast %133 : vector<1x64xf32> to vector<16x64xf32>
    %155 = arith.mulf %153, %154 : vector<16x64xf32>
    %156 = vector.broadcast %135 : vector<1x64xf32> to vector<16x64xf32>
    %157 = arith.addf %155, %156 : vector<16x64xf32>
    %c0_39 = arith.constant 0 : index
    %c0_40 = arith.constant 0 : index
    %c0_41 = arith.constant 0 : index
    %158 = vector.load %arg8[%c0_39, %c0_40, %c0_41] : memref<2x64x256xf32, #tpu.memory_space<vmem>>, vector<1x64x256xf32>
    %159 = vector.shape_cast %158 : vector<1x64x256xf32> to vector<64x256xf32>
    %cst_42 = arith.constant dense<0.000000e+00> : vector<16x256xf32>
    %160 = tpu.matmul %157, %159, %cst_42 {dimension_numbers = #tpu.dot_dimension_numbers<[1], [0], [0], [1], [0, 0, 1, 1], [], []>} : vector<16x64xf32>, vector<64x256xf32>, vector<16x256xf32> -> vector<16x256xf32>
    %c0_43 = arith.constant 0 : index
    %c0_44 = arith.constant 0 : index
    %c0_45 = arith.constant 0 : index
    %161 = vector.load %arg9[%c0_43, %c0_44, %c0_45] : memref<2x1x256xf32, #tpu.memory_space<vmem>>, vector<1x1x256xf32>
    %162 = vector.shape_cast %161 : vector<1x1x256xf32> to vector<1x256xf32>
    %163 = vector.broadcast %162 : vector<1x256xf32> to vector<16x256xf32>
    %164 = arith.addf %160, %163 : vector<16x256xf32>
    %cst_46 = arith.constant 0.000000e+00 : f32
    %165 = vector.broadcast %cst_46 : f32 to vector<16x256xf32>
    %166 = arith.maximumf %164, %165 : vector<16x256xf32>
    %c0_47 = arith.constant 0 : index
    %c0_48 = arith.constant 0 : index
    %c0_49 = arith.constant 0 : index
    %167 = vector.load %arg10[%c0_47, %c0_48, %c0_49] : memref<2x256x64xf32, #tpu.memory_space<vmem>>, vector<1x256x64xf32>
    %168 = vector.shape_cast %167 : vector<1x256x64xf32> to vector<256x64xf32>
    %cst_50 = arith.constant dense<0.000000e+00> : vector<16x64xf32>
    %169 = tpu.matmul %166, %168, %cst_50 {dimension_numbers = #tpu.dot_dimension_numbers<[1], [0], [0], [1], [0, 0, 1, 1], [], []>} : vector<16x256xf32>, vector<256x64xf32>, vector<16x64xf32> -> vector<16x64xf32>
    %c0_51 = arith.constant 0 : index
    %c0_52 = arith.constant 0 : index
    %c0_53 = arith.constant 0 : index
    %170 = vector.load %arg11[%c0_51, %c0_52, %c0_53] : memref<2x1x64xf32, #tpu.memory_space<vmem>>, vector<1x1x64xf32>
    %171 = vector.shape_cast %170 : vector<1x1x64xf32> to vector<1x64xf32>
    %172 = vector.broadcast %171 : vector<1x64xf32> to vector<16x64xf32>
    %173 = arith.addf %169, %172 : vector<16x64xf32>
    %174 = arith.addf %131, %173 : vector<16x64xf32>
    %c1 = arith.constant 1 : index
    %c0_54 = arith.constant 0 : index
    %c0_55 = arith.constant 0 : index
    %175 = vector.load %arg1[%c1, %c0_54, %c0_55] : memref<2x1x64xf32, #tpu.memory_space<vmem>>, vector<1x1x64xf32>
    %176 = vector.shape_cast %175 : vector<1x1x64xf32> to vector<1x64xf32>
    %c1_56 = arith.constant 1 : index
    %c0_57 = arith.constant 0 : index
    %c0_58 = arith.constant 0 : index
    %177 = vector.load %arg2[%c1_56, %c0_57, %c0_58] : memref<2x1x64xf32, #tpu.memory_space<vmem>>, vector<1x1x64xf32>
    %178 = vector.shape_cast %177 : vector<1x1x64xf32> to vector<1x64xf32>
    %cst_59 = arith.constant dense<0.000000e+00> : vector<16xf32>
    %179 = vector.multi_reduction <add>, %174, %cst_59 [1] : vector<16x64xf32> to vector<16xf32>
    %180 = vector.shape_cast %179 : vector<16xf32> to vector<16x1xf32>
    %cst_60 = arith.constant 6.400000e+01 : f32
    %181 = vector.broadcast %cst_60 : f32 to vector<16x1xf32>
    %182 = arith.divf %180, %181 : vector<16x1xf32>
    %183 = vector.broadcast %182 : vector<16x1xf32> to vector<16x64xf32>
    %184 = arith.subf %174, %183 : vector<16x64xf32>
    %185 = arith.mulf %184, %184 : vector<16x64xf32>
    %cst_61 = arith.constant dense<0.000000e+00> : vector<16xf32>
    %186 = vector.multi_reduction <add>, %185, %cst_61 [1] : vector<16x64xf32> to vector<16xf32>
    %187 = vector.shape_cast %186 : vector<16xf32> to vector<16x1xf32>
    %cst_62 = arith.constant 6.400000e+01 : f32
    %188 = vector.broadcast %cst_62 : f32 to vector<16x1xf32>
    %189 = arith.divf %187, %188 : vector<16x1xf32>
    %190 = vector.broadcast %182 : vector<16x1xf32> to vector<16x64xf32>
    %191 = arith.subf %174, %190 : vector<16x64xf32>
    %cst_63 = arith.constant 9.99999974E-6 : f32
    %192 = vector.broadcast %cst_63 : f32 to vector<16x1xf32>
    %193 = arith.addf %189, %192 : vector<16x1xf32>
    %194 = math.rsqrt %193 : vector<16x1xf32>
    %195 = vector.broadcast %194 : vector<16x1xf32> to vector<16x64xf32>
    %196 = arith.mulf %191, %195 : vector<16x64xf32>
    %197 = vector.broadcast %176 : vector<1x64xf32> to vector<16x64xf32>
    %198 = arith.mulf %196, %197 : vector<16x64xf32>
    %199 = vector.broadcast %178 : vector<1x64xf32> to vector<16x64xf32>
    %200 = arith.addf %198, %199 : vector<16x64xf32>
    %c1_64 = arith.constant 1 : index
    %c0_65 = arith.constant 0 : index
    %c0_66 = arith.constant 0 : index
    %201 = vector.load %arg3[%c1_64, %c0_65, %c0_66] : memref<2x64x192xf32, #tpu.memory_space<vmem>>, vector<1x64x192xf32>
    %202 = vector.shape_cast %201 : vector<1x64x192xf32> to vector<64x192xf32>
    %cst_67 = arith.constant dense<0.000000e+00> : vector<16x192xf32>
    %203 = tpu.matmul %200, %202, %cst_67 {dimension_numbers = #tpu.dot_dimension_numbers<[1], [0], [0], [1], [0, 0, 1, 1], [], []>} : vector<16x64xf32>, vector<64x192xf32>, vector<16x192xf32> -> vector<16x192xf32>
    %204 = vector.extract_strided_slice %203 {offsets = [0, 0], sizes = [16, 64], strides = [1, 1]} : vector<16x192xf32> to vector<16x64xf32>
    %205 = vector.extract_strided_slice %204 {offsets = [0, 0], sizes = [8, 16], strides = [1, 1]} : vector<16x64xf32> to vector<8x16xf32>
    %206 = vector.extract_strided_slice %204 {offsets = [0, 16], sizes = [8, 16], strides = [1, 1]} : vector<16x64xf32> to vector<8x16xf32>
    %207 = vector.extract_strided_slice %204 {offsets = [0, 32], sizes = [8, 16], strides = [1, 1]} : vector<16x64xf32> to vector<8x16xf32>
    %208 = vector.extract_strided_slice %204 {offsets = [0, 48], sizes = [8, 16], strides = [1, 1]} : vector<16x64xf32> to vector<8x16xf32>
    %209 = vector.extract_strided_slice %204 {offsets = [8, 0], sizes = [8, 16], strides = [1, 1]} : vector<16x64xf32> to vector<8x16xf32>
    %210 = vector.extract_strided_slice %204 {offsets = [8, 16], sizes = [8, 16], strides = [1, 1]} : vector<16x64xf32> to vector<8x16xf32>
    %211 = vector.extract_strided_slice %204 {offsets = [8, 32], sizes = [8, 16], strides = [1, 1]} : vector<16x64xf32> to vector<8x16xf32>
    %212 = vector.extract_strided_slice %204 {offsets = [8, 48], sizes = [8, 16], strides = [1, 1]} : vector<16x64xf32> to vector<8x16xf32>
    %213 = vector.shape_cast %205 : vector<8x16xf32> to vector<1x8x16xf32>
    %214 = vector.shape_cast %206 : vector<8x16xf32> to vector<1x8x16xf32>
    %215 = vector.shape_cast %207 : vector<8x16xf32> to vector<1x8x16xf32>
    %216 = vector.shape_cast %208 : vector<8x16xf32> to vector<1x8x16xf32>
    %217 = vector.shape_cast %209 : vector<8x16xf32> to vector<1x8x16xf32>
    %218 = vector.shape_cast %210 : vector<8x16xf32> to vector<1x8x16xf32>
    %219 = vector.shape_cast %211 : vector<8x16xf32> to vector<1x8x16xf32>
    %220 = vector.shape_cast %212 : vector<8x16xf32> to vector<1x8x16xf32>
    %221 = tpu.concatenate %213, %214, %215, %216, %217, %218, %219, %220 in 0 : vector<1x8x16xf32>, vector<1x8x16xf32>, vector<1x8x16xf32>, vector<1x8x16xf32>, vector<1x8x16xf32>, vector<1x8x16xf32>, vector<1x8x16xf32>, vector<1x8x16xf32> -> vector<8x8x16xf32>
    %222 = vector.extract_strided_slice %203 {offsets = [0, 64], sizes = [16, 64], strides = [1, 1]} : vector<16x192xf32> to vector<16x64xf32>
    %223 = vector.extract_strided_slice %222 {offsets = [0, 0], sizes = [8, 16], strides = [1, 1]} : vector<16x64xf32> to vector<8x16xf32>
    %224 = vector.extract_strided_slice %222 {offsets = [0, 16], sizes = [8, 16], strides = [1, 1]} : vector<16x64xf32> to vector<8x16xf32>
    %225 = vector.extract_strided_slice %222 {offsets = [0, 32], sizes = [8, 16], strides = [1, 1]} : vector<16x64xf32> to vector<8x16xf32>
    %226 = vector.extract_strided_slice %222 {offsets = [0, 48], sizes = [8, 16], strides = [1, 1]} : vector<16x64xf32> to vector<8x16xf32>
    %227 = vector.extract_strided_slice %222 {offsets = [8, 0], sizes = [8, 16], strides = [1, 1]} : vector<16x64xf32> to vector<8x16xf32>
    %228 = vector.extract_strided_slice %222 {offsets = [8, 16], sizes = [8, 16], strides = [1, 1]} : vector<16x64xf32> to vector<8x16xf32>
    %229 = vector.extract_strided_slice %222 {offsets = [8, 32], sizes = [8, 16], strides = [1, 1]} : vector<16x64xf32> to vector<8x16xf32>
    %230 = vector.extract_strided_slice %222 {offsets = [8, 48], sizes = [8, 16], strides = [1, 1]} : vector<16x64xf32> to vector<8x16xf32>
    %231 = vector.shape_cast %223 : vector<8x16xf32> to vector<1x8x16xf32>
    %232 = vector.shape_cast %224 : vector<8x16xf32> to vector<1x8x16xf32>
    %233 = vector.shape_cast %225 : vector<8x16xf32> to vector<1x8x16xf32>
    %234 = vector.shape_cast %226 : vector<8x16xf32> to vector<1x8x16xf32>
    %235 = vector.shape_cast %227 : vector<8x16xf32> to vector<1x8x16xf32>
    %236 = vector.shape_cast %228 : vector<8x16xf32> to vector<1x8x16xf32>
    %237 = vector.shape_cast %229 : vector<8x16xf32> to vector<1x8x16xf32>
    %238 = vector.shape_cast %230 : vector<8x16xf32> to vector<1x8x16xf32>
    %239 = tpu.concatenate %231, %232, %233, %234, %235, %236, %237, %238 in 0 : vector<1x8x16xf32>, vector<1x8x16xf32>, vector<1x8x16xf32>, vector<1x8x16xf32>, vector<1x8x16xf32>, vector<1x8x16xf32>, vector<1x8x16xf32>, vector<1x8x16xf32> -> vector<8x8x16xf32>
    %240 = vector.extract_strided_slice %203 {offsets = [0, 128], sizes = [16, 64], strides = [1, 1]} : vector<16x192xf32> to vector<16x64xf32>
    %241 = vector.extract_strided_slice %240 {offsets = [0, 0], sizes = [8, 16], strides = [1, 1]} : vector<16x64xf32> to vector<8x16xf32>
    %242 = vector.extract_strided_slice %240 {offsets = [0, 16], sizes = [8, 16], strides = [1, 1]} : vector<16x64xf32> to vector<8x16xf32>
    %243 = vector.extract_strided_slice %240 {offsets = [0, 32], sizes = [8, 16], strides = [1, 1]} : vector<16x64xf32> to vector<8x16xf32>
    %244 = vector.extract_strided_slice %240 {offsets = [0, 48], sizes = [8, 16], strides = [1, 1]} : vector<16x64xf32> to vector<8x16xf32>
    %245 = vector.extract_strided_slice %240 {offsets = [8, 0], sizes = [8, 16], strides = [1, 1]} : vector<16x64xf32> to vector<8x16xf32>
    %246 = vector.extract_strided_slice %240 {offsets = [8, 16], sizes = [8, 16], strides = [1, 1]} : vector<16x64xf32> to vector<8x16xf32>
    %247 = vector.extract_strided_slice %240 {offsets = [8, 32], sizes = [8, 16], strides = [1, 1]} : vector<16x64xf32> to vector<8x16xf32>
    %248 = vector.extract_strided_slice %240 {offsets = [8, 48], sizes = [8, 16], strides = [1, 1]} : vector<16x64xf32> to vector<8x16xf32>
    %249 = vector.shape_cast %241 : vector<8x16xf32> to vector<1x8x16xf32>
    %250 = vector.shape_cast %242 : vector<8x16xf32> to vector<1x8x16xf32>
    %251 = vector.shape_cast %243 : vector<8x16xf32> to vector<1x8x16xf32>
    %252 = vector.shape_cast %244 : vector<8x16xf32> to vector<1x8x16xf32>
    %253 = vector.shape_cast %245 : vector<8x16xf32> to vector<1x8x16xf32>
    %254 = vector.shape_cast %246 : vector<8x16xf32> to vector<1x8x16xf32>
    %255 = vector.shape_cast %247 : vector<8x16xf32> to vector<1x8x16xf32>
    %256 = vector.shape_cast %248 : vector<8x16xf32> to vector<1x8x16xf32>
    %257 = tpu.concatenate %249, %250, %251, %252, %253, %254, %255, %256 in 0 : vector<1x8x16xf32>, vector<1x8x16xf32>, vector<1x8x16xf32>, vector<1x8x16xf32>, vector<1x8x16xf32>, vector<1x8x16xf32>, vector<1x8x16xf32>, vector<1x8x16xf32> -> vector<8x8x16xf32>
    "tpu.trace_start"() <{level = 10 : i32, message = "ntd,nsd->nts"}> : () -> ()
    %cst_68 = arith.constant dense<0.000000e+00> : vector<8x8x8xf32>
    %258 = tpu.matmul %221, %239, %cst_68 {dimension_numbers = #tpu.dot_dimension_numbers<[2], [2], [1], [1], [0, 0, 0, 1, 1, 1], [0], [0]>} : vector<8x8x16xf32>, vector<8x8x16xf32>, vector<8x8x8xf32> -> vector<8x8x8xf32>
    "tpu.trace_stop"() : () -> ()
    %cst_69 = arith.constant 2.500000e-01 : f32
    %259 = vector.broadcast %cst_69 : f32 to vector<8x8x8xf32>
    %260 = arith.mulf %258, %259 : vector<8x8x8xf32>
    %cst_70 = arith.constant -1.000000e+30 : f32
    %261 = vector.shape_cast %4 : vector<1x8x8xi1> to vector<1x8x8xi1>
    %262 = vector.broadcast %261 : vector<1x8x8xi1> to vector<8x8x8xi1>
    %263 = vector.broadcast %cst_70 : f32 to vector<8x8x8xf32>
    %264 = arith.select %262, %260, %263 : vector<8x8x8xi1>, vector<8x8x8xf32>
    %cst_71 = arith.constant dense<0xFF800000> : vector<8x8xf32>
    %265 = vector.multi_reduction <maximumf>, %264, %cst_71 [2] : vector<8x8x8xf32> to vector<8x8xf32>
    %266 = vector.shape_cast %265 : vector<8x8xf32> to vector<8x8x1xf32>
    %267 = vector.broadcast %266 : vector<8x8x1xf32> to vector<8x8x8xf32>
    %268 = arith.subf %264, %267 : vector<8x8x8xf32>
    %269 = math.exp %268 : vector<8x8x8xf32>
    %cst_72 = arith.constant dense<0.000000e+00> : vector<8x8xf32>
    %270 = vector.multi_reduction <add>, %269, %cst_72 [2] : vector<8x8x8xf32> to vector<8x8xf32>
    %271 = vector.shape_cast %270 : vector<8x8xf32> to vector<8x8x1xf32>
    %272 = vector.broadcast %271 : vector<8x8x1xf32> to vector<8x8x8xf32>
    %273 = arith.divf %269, %272 : vector<8x8x8xf32>
    "tpu.trace_start"() <{level = 10 : i32, message = "nts,nsd->ntd"}> : () -> ()
    %cst_73 = arith.constant dense<0.000000e+00> : vector<8x8x16xf32>
    %274 = tpu.matmul %273, %257, %cst_73 {dimension_numbers = #tpu.dot_dimension_numbers<[2], [1], [1], [2], [0, 0, 0, 1, 1, 2], [0], [0]>} : vector<8x8x8xf32>, vector<8x8x16xf32>, vector<8x8x16xf32> -> vector<8x8x16xf32>
    "tpu.trace_stop"() : () -> ()
    %275 = vector.extract_strided_slice %274 {offsets = [0, 0, 0], sizes = [1, 8, 16], strides = [1, 1, 1]} : vector<8x8x16xf32> to vector<1x8x16xf32>
    %276 = vector.shape_cast %275 : vector<1x8x16xf32> to vector<8x16xf32>
    %277 = vector.extract_strided_slice %274 {offsets = [1, 0, 0], sizes = [1, 8, 16], strides = [1, 1, 1]} : vector<8x8x16xf32> to vector<1x8x16xf32>
    %278 = vector.shape_cast %277 : vector<1x8x16xf32> to vector<8x16xf32>
    %279 = vector.extract_strided_slice %274 {offsets = [2, 0, 0], sizes = [1, 8, 16], strides = [1, 1, 1]} : vector<8x8x16xf32> to vector<1x8x16xf32>
    %280 = vector.shape_cast %279 : vector<1x8x16xf32> to vector<8x16xf32>
    %281 = vector.extract_strided_slice %274 {offsets = [3, 0, 0], sizes = [1, 8, 16], strides = [1, 1, 1]} : vector<8x8x16xf32> to vector<1x8x16xf32>
    %282 = vector.shape_cast %281 : vector<1x8x16xf32> to vector<8x16xf32>
    %283 = tpu.concatenate %276, %278, %280, %282 in 1 : vector<8x16xf32>, vector<8x16xf32>, vector<8x16xf32>, vector<8x16xf32> -> vector<8x64xf32>
    %284 = vector.extract_strided_slice %274 {offsets = [4, 0, 0], sizes = [1, 8, 16], strides = [1, 1, 1]} : vector<8x8x16xf32> to vector<1x8x16xf32>
    %285 = vector.shape_cast %284 : vector<1x8x16xf32> to vector<8x16xf32>
    %286 = vector.extract_strided_slice %274 {offsets = [5, 0, 0], sizes = [1, 8, 16], strides = [1, 1, 1]} : vector<8x8x16xf32> to vector<1x8x16xf32>
    %287 = vector.shape_cast %286 : vector<1x8x16xf32> to vector<8x16xf32>
    %288 = vector.extract_strided_slice %274 {offsets = [6, 0, 0], sizes = [1, 8, 16], strides = [1, 1, 1]} : vector<8x8x16xf32> to vector<1x8x16xf32>
    %289 = vector.shape_cast %288 : vector<1x8x16xf32> to vector<8x16xf32>
    %290 = vector.extract_strided_slice %274 {offsets = [7, 0, 0], sizes = [1, 8, 16], strides = [1, 1, 1]} : vector<8x8x16xf32> to vector<1x8x16xf32>
    %291 = vector.shape_cast %290 : vector<1x8x16xf32> to vector<8x16xf32>
    %292 = tpu.concatenate %285, %287, %289, %291 in 1 : vector<8x16xf32>, vector<8x16xf32>, vector<8x16xf32>, vector<8x16xf32> -> vector<8x64xf32>
    %293 = tpu.concatenate %283, %292 in 0 : vector<8x64xf32>, vector<8x64xf32> -> vector<16x64xf32>
    %c1_74 = arith.constant 1 : index
    %c0_75 = arith.constant 0 : index
    %c0_76 = arith.constant 0 : index
    %294 = vector.load %arg4[%c1_74, %c0_75, %c0_76] : memref<2x64x64xf32, #tpu.memory_space<vmem>>, vector<1x64x64xf32>
    %295 = vector.shape_cast %294 : vector<1x64x64xf32> to vector<64x64xf32>
    %cst_77 = arith.constant dense<0.000000e+00> : vector<16x64xf32>
    %296 = tpu.matmul %293, %295, %cst_77 {dimension_numbers = #tpu.dot_dimension_numbers<[1], [0], [0], [1], [0, 0, 1, 1], [], []>} : vector<16x64xf32>, vector<64x64xf32>, vector<16x64xf32> -> vector<16x64xf32>
    %c1_78 = arith.constant 1 : index
    %c0_79 = arith.constant 0 : index
    %c0_80 = arith.constant 0 : index
    %297 = vector.load %arg5[%c1_78, %c0_79, %c0_80] : memref<2x1x64xf32, #tpu.memory_space<vmem>>, vector<1x1x64xf32>
    %298 = vector.shape_cast %297 : vector<1x1x64xf32> to vector<1x64xf32>
    %299 = vector.broadcast %298 : vector<1x64xf32> to vector<16x64xf32>
    %300 = arith.addf %296, %299 : vector<16x64xf32>
    %301 = arith.addf %174, %300 : vector<16x64xf32>
    %c1_81 = arith.constant 1 : index
    %c0_82 = arith.constant 0 : index
    %c0_83 = arith.constant 0 : index
    %302 = vector.load %arg6[%c1_81, %c0_82, %c0_83] : memref<2x1x64xf32, #tpu.memory_space<vmem>>, vector<1x1x64xf32>
    %303 = vector.shape_cast %302 : vector<1x1x64xf32> to vector<1x64xf32>
    %c1_84 = arith.constant 1 : index
    %c0_85 = arith.constant 0 : index
    %c0_86 = arith.constant 0 : index
    %304 = vector.load %arg7[%c1_84, %c0_85, %c0_86] : memref<2x1x64xf32, #tpu.memory_space<vmem>>, vector<1x1x64xf32>
    %305 = vector.shape_cast %304 : vector<1x1x64xf32> to vector<1x64xf32>
    %cst_87 = arith.constant dense<0.000000e+00> : vector<16xf32>
    %306 = vector.multi_reduction <add>, %301, %cst_87 [1] : vector<16x64xf32> to vector<16xf32>
    %307 = vector.shape_cast %306 : vector<16xf32> to vector<16x1xf32>
    %cst_88 = arith.constant 6.400000e+01 : f32
    %308 = vector.broadcast %cst_88 : f32 to vector<16x1xf32>
    %309 = arith.divf %307, %308 : vector<16x1xf32>
    %310 = vector.broadcast %309 : vector<16x1xf32> to vector<16x64xf32>
    %311 = arith.subf %301, %310 : vector<16x64xf32>
    %312 = arith.mulf %311, %311 : vector<16x64xf32>
    %cst_89 = arith.constant dense<0.000000e+00> : vector<16xf32>
    %313 = vector.multi_reduction <add>, %312, %cst_89 [1] : vector<16x64xf32> to vector<16xf32>
    %314 = vector.shape_cast %313 : vector<16xf32> to vector<16x1xf32>
    %cst_90 = arith.constant 6.400000e+01 : f32
    %315 = vector.broadcast %cst_90 : f32 to vector<16x1xf32>
    %316 = arith.divf %314, %315 : vector<16x1xf32>
    %317 = vector.broadcast %309 : vector<16x1xf32> to vector<16x64xf32>
    %318 = arith.subf %301, %317 : vector<16x64xf32>
    %cst_91 = arith.constant 9.99999974E-6 : f32
    %319 = vector.broadcast %cst_91 : f32 to vector<16x1xf32>
    %320 = arith.addf %316, %319 : vector<16x1xf32>
    %321 = math.rsqrt %320 : vector<16x1xf32>
    %322 = vector.broadcast %321 : vector<16x1xf32> to vector<16x64xf32>
    %323 = arith.mulf %318, %322 : vector<16x64xf32>
    %324 = vector.broadcast %303 : vector<1x64xf32> to vector<16x64xf32>
    %325 = arith.mulf %323, %324 : vector<16x64xf32>
    %326 = vector.broadcast %305 : vector<1x64xf32> to vector<16x64xf32>
    %327 = arith.addf %325, %326 : vector<16x64xf32>
    %c1_92 = arith.constant 1 : index
    %c0_93 = arith.constant 0 : index
    %c0_94 = arith.constant 0 : index
    %328 = vector.load %arg8[%c1_92, %c0_93, %c0_94] : memref<2x64x256xf32, #tpu.memory_space<vmem>>, vector<1x64x256xf32>
    %329 = vector.shape_cast %328 : vector<1x64x256xf32> to vector<64x256xf32>
    %cst_95 = arith.constant dense<0.000000e+00> : vector<16x256xf32>
    %330 = tpu.matmul %327, %329, %cst_95 {dimension_numbers = #tpu.dot_dimension_numbers<[1], [0], [0], [1], [0, 0, 1, 1], [], []>} : vector<16x64xf32>, vector<64x256xf32>, vector<16x256xf32> -> vector<16x256xf32>
    %c1_96 = arith.constant 1 : index
    %c0_97 = arith.constant 0 : index
    %c0_98 = arith.constant 0 : index
    %331 = vector.load %arg9[%c1_96, %c0_97, %c0_98] : memref<2x1x256xf32, #tpu.memory_space<vmem>>, vector<1x1x256xf32>
    %332 = vector.shape_cast %331 : vector<1x1x256xf32> to vector<1x256xf32>
    %333 = vector.broadcast %332 : vector<1x256xf32> to vector<16x256xf32>
    %334 = arith.addf %330, %333 : vector<16x256xf32>
    %cst_99 = arith.constant 0.000000e+00 : f32
    %335 = vector.broadcast %cst_99 : f32 to vector<16x256xf32>
    %336 = arith.maximumf %334, %335 : vector<16x256xf32>
    %c1_100 = arith.constant 1 : index
    %c0_101 = arith.constant 0 : index
    %c0_102 = arith.constant 0 : index
    %337 = vector.load %arg10[%c1_100, %c0_101, %c0_102] : memref<2x256x64xf32, #tpu.memory_space<vmem>>, vector<1x256x64xf32>
    %338 = vector.shape_cast %337 : vector<1x256x64xf32> to vector<256x64xf32>
    %cst_103 = arith.constant dense<0.000000e+00> : vector<16x64xf32>
    %339 = tpu.matmul %336, %338, %cst_103 {dimension_numbers = #tpu.dot_dimension_numbers<[1], [0], [0], [1], [0, 0, 1, 1], [], []>} : vector<16x256xf32>, vector<256x64xf32>, vector<16x64xf32> -> vector<16x64xf32>
    %c1_104 = arith.constant 1 : index
    %c0_105 = arith.constant 0 : index
    %c0_106 = arith.constant 0 : index
    %340 = vector.load %arg11[%c1_104, %c0_105, %c0_106] : memref<2x1x64xf32, #tpu.memory_space<vmem>>, vector<1x1x64xf32>
    %341 = vector.shape_cast %340 : vector<1x1x64xf32> to vector<1x64xf32>
    %342 = vector.broadcast %341 : vector<1x64xf32> to vector<16x64xf32>
    %343 = arith.addf %339, %342 : vector<16x64xf32>
    %344 = arith.addf %301, %343 : vector<16x64xf32>
    %c0_107 = arith.constant 0 : index
    %c0_108 = arith.constant 0 : index
    %345 = vector.load %arg12[%c0_107, %c0_108] : memref<1x64xf32, #tpu.memory_space<vmem>>, vector<1x64xf32>
    %c0_109 = arith.constant 0 : index
    %c0_110 = arith.constant 0 : index
    %346 = vector.load %arg13[%c0_109, %c0_110] : memref<1x64xf32, #tpu.memory_space<vmem>>, vector<1x64xf32>
    %cst_111 = arith.constant dense<0.000000e+00> : vector<16xf32>
    %347 = vector.multi_reduction <add>, %344, %cst_111 [1] : vector<16x64xf32> to vector<16xf32>
    %348 = vector.shape_cast %347 : vector<16xf32> to vector<16x1xf32>
    %cst_112 = arith.constant 6.400000e+01 : f32
    %349 = vector.broadcast %cst_112 : f32 to vector<16x1xf32>
    %350 = arith.divf %348, %349 : vector<16x1xf32>
    %351 = vector.broadcast %350 : vector<16x1xf32> to vector<16x64xf32>
    %352 = arith.subf %344, %351 : vector<16x64xf32>
    %353 = arith.mulf %352, %352 : vector<16x64xf32>
    %cst_113 = arith.constant dense<0.000000e+00> : vector<16xf32>
    %354 = vector.multi_reduction <add>, %353, %cst_113 [1] : vector<16x64xf32> to vector<16xf32>
    %355 = vector.shape_cast %354 : vector<16xf32> to vector<16x1xf32>
    %cst_114 = arith.constant 6.400000e+01 : f32
    %356 = vector.broadcast %cst_114 : f32 to vector<16x1xf32>
    %357 = arith.divf %355, %356 : vector<16x1xf32>
    %358 = vector.broadcast %350 : vector<16x1xf32> to vector<16x64xf32>
    %359 = arith.subf %344, %358 : vector<16x64xf32>
    %cst_115 = arith.constant 9.99999974E-6 : f32
    %360 = vector.broadcast %cst_115 : f32 to vector<16x1xf32>
    %361 = arith.addf %357, %360 : vector<16x1xf32>
    %362 = math.rsqrt %361 : vector<16x1xf32>
    %363 = vector.broadcast %362 : vector<16x1xf32> to vector<16x64xf32>
    %364 = arith.mulf %359, %363 : vector<16x64xf32>
    %365 = vector.broadcast %345 : vector<1x64xf32> to vector<16x64xf32>
    %366 = arith.mulf %364, %365 : vector<16x64xf32>
    %367 = vector.broadcast %346 : vector<1x64xf32> to vector<16x64xf32>
    %368 = arith.addf %366, %367 : vector<16x64xf32>
    %c0_116 = arith.constant 0 : index
    %c0_117 = arith.constant 0 : index
    %369 = vector.load %arg14[%c0_116, %c0_117] : memref<64x128xf32, #tpu.memory_space<vmem>>, vector<64x128xf32>
    %cst_118 = arith.constant dense<0.000000e+00> : vector<16x128xf32>
    %370 = tpu.matmul %368, %369, %cst_118 {dimension_numbers = #tpu.dot_dimension_numbers<[1], [0], [0], [1], [0, 0, 1, 1], [], []>} : vector<16x64xf32>, vector<64x128xf32>, vector<16x128xf32> -> vector<16x128xf32>
    %c0_119 = arith.constant 0 : index
    %c0_120 = arith.constant 0 : index
    %371 = vector.load %arg15[%c0_119, %c0_120] : memref<1x128xf32, #tpu.memory_space<vmem>>, vector<1x128xf32>
    %372 = vector.broadcast %371 : vector<1x128xf32> to vector<16x128xf32>
    %373 = arith.addf %370, %372 : vector<16x128xf32>
    %c0_121 = arith.constant 0 : index
    %c0_122 = arith.constant 0 : index
    %374 = vector.load %arg16[%c0_121, %c0_122] : memref<16x128xf32, #tpu.memory_space<vmem>>, vector<16x128xf32>
    tpu.vector_store %arg16[%c0_121, %c0_122], %373 {strides = array<i32>} : memref<16x128xf32, #tpu.memory_space<vmem>>, vector<16x128xf32>,
    return
  }
}

</mosaic_0001>

<llo_original>
// kernel: model_forward.1
$region0: #{model_forward.1}
  #allocation0 [shape = 'u32[]', space=smem, size = 0x4, offset = 0x4, fixed_abs, tag = 'smem constant byte address 0x4 - core index']
  #allocation1 [shape = 'u32[144,128]{1,0:T(1,128)}', space=vmem, size = 0x12000, scoped, tag = 'internal scratch']
  %s0 = inlined_call_operand.vmem [shape: f32[16,64], index: 0, kind: input, shape index: {}]
  %s1 = inlined_call_operand.vmem [shape: f32[2,1,64], index: 1, kind: input, shape index: {}]
  %s2 = inlined_call_operand.vmem [shape: f32[2,1,64], index: 2, kind: input, shape index: {}]
  %s3 = inlined_call_operand.vmem [shape: f32[2,64,192], index: 3, kind: input, shape index: {}]
  %s4 = inlined_call_operand.vmem [shape: f32[2,64,64], index: 4, kind: input, shape index: {}]
  %s5 = inlined_call_operand.vmem [shape: f32[2,1,64], index: 5, kind: input, shape index: {}]
  %s6 = inlined_call_operand.vmem [shape: f32[2,1,64], index: 6, kind: input, shape index: {}]
  %s7 = inlined_call_operand.vmem [shape: f32[2,1,64], index: 7, kind: input, shape index: {}]
  %s8 = inlined_call_operand.vmem [shape: f32[2,64,256], index: 8, kind: input, shape index: {}]
  %s9 = inlined_call_operand.vmem [shape: f32[2,1,256], index: 9, kind: input, shape index: {}]
  %s10 = inlined_call_operand.vmem [shape: f32[2,256,64], index: 10, kind: input, shape index: {}]
  %s11 = inlined_call_operand.vmem [shape: f32[2,1,64], index: 11, kind: input, shape index: {}]
  %s12 = inlined_call_operand.vmem [shape: f32[1,64], index: 12, kind: input, shape index: {}]
  %s13 = inlined_call_operand.vmem [shape: f32[1,64], index: 13, kind: input, shape index: {}]
  %s14 = inlined_call_operand.vmem [shape: f32[64,128], index: 14, kind: input, shape index: {}]
  %s15 = inlined_call_operand.vmem [shape: f32[1,128], index: 15, kind: input, shape index: {}]
  %s16 = inlined_call_operand.vmem [shape: f32[16,128], index: 16, kind: output, shape index: {}]
  %s17 = sld [smem:[#allocation0]]
  $region74: #{model_forward.1} parent=0
    _
  %s19 = ssub.s32 1, %s17
  %s20 = scalar_select 0, %s19, %s17
  // Predicated region
  $region2: #{model_forward.1} parent=0 // pred_check
    _
  $region3: #{model_forward.1} parent=0 // pred_check_branch
    %22 = sbr.rel (0) target = $region5
  $region4: #{model_forward.1} parent=0 // pred_region
    _
  $region5: #{model_forward.1} parent=0 // pred_fallthru
    _
  // Predicated region
  $region6: #{model_forward.1} parent=0 // pred_check
    _
  $region7: #{model_forward.1} parent=0 // pred_check_branch
    %24 = sbr.rel (0) target = $region9
  $region8: #{model_forward.1} parent=0 // pred_region
    _
  $region9: #{model_forward.1} parent=0 // pred_fallthru
    _
  // Predicated region
  $region10: #{model_forward.1} parent=0 // pred_check
    _
  $region11: #{model_forward.1} parent=0 // pred_check_branch
    %26 = sbr.rel (0) target = $region13
  $region12: #{model_forward.1} parent=0 // pred_region
    _
  $region13: #{model_forward.1} parent=0 // pred_fallthru
    _
  // Predicated region
  $region14: #{model_forward.1} parent=0 // pred_check
    _
  $region15: #{model_forward.1} parent=0 // pred_check_branch
    %28 = sbr.rel (0) target = $region17
  $region16: #{model_forward.1} parent=0 // pred_region
    _
  $region17: #{model_forward.1} parent=0 // pred_fallthru
    _
  // Predicated region
  $region18: #{model_forward.1} parent=0 // pred_check
    _
  $region19: #{model_forward.1} parent=0 // pred_check_branch
    %30 = sbr.rel (0) target = $region21
  $region20: #{model_forward.1} parent=0 // pred_region
    _
  $region21: #{model_forward.1} parent=0 // pred_fallthru
    _
  // Predicated region
  $region22: #{model_forward.1} parent=0 // pred_check
    _
  $region23: #{model_forward.1} parent=0 // pred_check_branch
    %32 = sbr.rel (0) target = $region25
  $region24: #{model_forward.1} parent=0 // pred_region
    _
  $region25: #{model_forward.1} parent=0 // pred_fallthru
    _
  // Predicated region
  $region26: #{model_forward.1} parent=0 // pred_check
    _
  $region27: #{model_forward.1} parent=0 // pred_check_branch
    %34 = sbr.rel (0) target = $region29
  $region28: #{model_forward.1} parent=0 // pred_region
    _
  $region29: #{model_forward.1} parent=0 // pred_fallthru
    _
  // Predicated region
  $region30: #{model_forward.1} parent=0 // pred_check
    _
  $region31: #{model_forward.1} parent=0 // pred_check_branch
    %36 = sbr.rel (0) target = $region33
  $region32: #{model_forward.1} parent=0 // pred_region
    _
  $region33: #{model_forward.1} parent=0 // pred_fallthru
    _
  // Predicated region
  $region34: #{model_forward.1} parent=0 // pred_check
    _
  $region35: #{model_forward.1} parent=0 // pred_check_branch
    %38 = sbr.rel (0) target = $region37
  $region36: #{model_forward.1} parent=0 // pred_region
    _
  $region37: #{model_forward.1} parent=0 // pred_fallthru
    _
  // Predicated region
  $region38: #{model_forward.1} parent=0 // pred_check
    _
  $region39: #{model_forward.1} parent=0 // pred_check_branch
    %40 = sbr.rel (0) target = $region41
  $region40: #{model_forward.1} parent=0 // pred_region
    _
  $region41: #{model_forward.1} parent=0 // pred_fallthru
    _
  // Predicated region
  $region42: #{model_forward.1} parent=0 // pred_check
    _
  $region43: #{model_forward.1} parent=0 // pred_check_branch
    %42 = sbr.rel (0) target = $region45
  $region44: #{model_forward.1} parent=0 // pred_region
    _
  $region45: #{model_forward.1} parent=0 // pred_fallthru
    _
  // Predicated region
  $region46: #{model_forward.1} parent=0 // pred_check
    _
  $region47: #{model_forward.1} parent=0 // pred_check_branch
    %44 = sbr.rel (0) target = $region49
  $region48: #{model_forward.1} parent=0 // pred_region
    _
  $region49: #{model_forward.1} parent=0 // pred_fallthru
    _
  // Predicated region
  $region50: #{model_forward.1} parent=0 // pred_check
    _
  $region51: #{model_forward.1} parent=0 // pred_check_branch
    %46 = sbr.rel (0) target = $region53
  $region52: #{model_forward.1} parent=0 // pred_region
    _
  $region53: #{model_forward.1} parent=0 // pred_fallthru
    _
  // Predicated region
  $region54: #{model_forward.1} parent=0 // pred_check
    _
  $region55: #{model_forward.1} parent=0 // pred_check_branch
    %48 = sbr.rel (0) target = $region57
  $region56: #{model_forward.1} parent=0 // pred_region
    _
  $region57: #{model_forward.1} parent=0 // pred_fallthru
    _
  // Predicated region
  $region58: #{model_forward.1} parent=0 // pred_check
    _
  $region59: #{model_forward.1} parent=0 // pred_check_branch
    %50 = sbr.rel (0) target = $region61
  $region60: #{model_forward.1} parent=0 // pred_region
    _
  $region61: #{model_forward.1} parent=0 // pred_fallthru
    _
  // Predicated region
  $region62: #{model_forward.1} parent=0 // pred_check
    _
  $region63: #{model_forward.1} parent=0 // pred_check_branch
    %52 = sbr.rel (0) target = $region65
  $region64: #{model_forward.1} parent=0 // pred_region
    _
  $region65: #{model_forward.1} parent=0 // pred_fallthru
    _
  %v53 = vld [vmem:[%s0] sm:$0xff]
  %v54 = vld [vmem:[%s0 + $0x8] sm:$0xff]
  %v55 = vlaneseq
  %v56 = vshrl.u32 %v55, 7
  %v57 = vlaneseq
  %v58 = vand.u32 %v57, 127
  %vm59 = vcmp.le.s32.totalorder %v58, %v56
  %v60 = vld [vmem:[%s1] sm:$0x1]
  %v61 = vld [vmem:[%s2] sm:$0x1]
  %vm62 = vcmask 523264
  %v63 = vsel %vm62, %v53, 0.0
  %64 = vadd.xlane.f32.xlu0 %v63
  %v65 = vpop.xlane.xlu0 %64
  %v66 = vsel %vm62, %v54, 0.0
  %67 = vadd.xlane.f32.xlu0 %v66
  %v68 = vpop.xlane.xlu0 %67
  %v69 = vrcp.pop 64.0
  %v70 = vmul.f32 %v65, %v69
  %v71 = vmul.f32 %v68, %v69
  %v72 = vsub.f32 %v53, %v70
  %v73 = vsub.f32 %v54, %v71
  %v74 = vmul.f32 %v72, %v72
  %v75 = vmul.f32 %v73, %v73
  %v76 = vsel %vm62, %v74, 0.0
  %77 = vadd.xlane.f32.xlu0 %v76
  %v78 = vpop.xlane.xlu0 %77
  %v79 = vsel %vm62, %v75, 0.0
  %80 = vadd.xlane.f32.xlu0 %v79
  %v81 = vpop.xlane.xlu0 %80
  %v82 = vmul.f32 %v78, %v69
  %v83 = vmul.f32 %v81, %v69
  %v84 = vadd.f32 %v82, 1e-05
  %v85 = vadd.f32 %v83, 1e-05
  %v86 = vrsqrt.pop %v84
  %v87 = vrsqrt.pop %v85
  %v88 = vmul.f32 %v72, %v86
  %v89 = vmul.f32 %v73, %v87
  %v91 = vlaneseq
  %v92 = vshrl.u32 %v91, 7
  %v93 = vsub.s32 0, %v92
  %v94 = vrot.slane %v60, %v93
  %v96 = vmul.f32 %v88, %v94
  %v97 = vmul.f32 %v89, %v94
  %v99 = vlaneseq
  %v100 = vshrl.u32 %v99, 7
  %v101 = vsub.s32 0, %v100
  %v102 = vrot.slane %v61, %v101
  %v104 = vadd.f32 %v96, %v102
  %v105 = vadd.f32 %v97, %v102
  %v106 = vld [vmem:[%s3] sm:$0xff]
  %v107 = vld [vmem:[%s3 + $0x8] sm:$0xff]
  %v108 = vld [vmem:[%s3 + $0x10] sm:$0xff]
  %v109 = vld [vmem:[%s3 + $0x18] sm:$0xff]
  %v110 = vld [vmem:[%s3 + $0x20] sm:$0xff]
  %v111 = vld [vmem:[%s3 + $0x28] sm:$0xff]
  %v112 = vld [vmem:[%s3 + $0x30] sm:$0xff]
  %v113 = vld [vmem:[%s3 + $0x38] sm:$0xff]
  %v114 = vld [vmem:[%s3 + $0x40] sm:$0xff]
  %v115 = vld [vmem:[%s3 + $0x48] sm:$0xff]
  %v116 = vld [vmem:[%s3 + $0x50] sm:$0xff]
  %v117 = vld [vmem:[%s3 + $0x58] sm:$0xff]
  %v118 = vld [vmem:[%s3 + $0x60] sm:$0xff]
  %v119 = vld [vmem:[%s3 + $0x68] sm:$0xff]
  %v120 = vld [vmem:[%s3 + $0x70] sm:$0xff]
  %v121 = vld [vmem:[%s3 + $0x78] sm:$0xff]
  %v123 = vsel %vm62, %v104, 0
  %v126 = vsel %vm62, %v105, 0
  %128 = vmatprep.subr.mxu0 0.0
  %129 = vmatpush1.msra.mxu0 0.0
  %130 = vmatprep.subr.mxu0 0.0
  %131 = vmatpush1.msra.mxu0 0.0
  %132 = vmatprep.subr.mxu0 0.0
  %133 = vmatpush1.msra.mxu0 0.0
  %134 = vmatprep.subr.mxu0 0.0
  %135 = vmatpush1.msra.mxu0 0.0
  %136 = vmatprep.subr.mxu0 0.0
  %137 = vmatpush1.msra.mxu0 0.0
  %138 = vmatprep.subr.mxu0 0.0
  %139 = vmatpush1.msra.mxu0 0.0
  %140 = vmatprep.subr.mxu0 0.0
  %141 = vmatpush1.msra.mxu0 0.0
  %142 = vmatprep.subr.mxu0 0.0
  %143 = vmatpush1.msra.mxu0 0.0
  %144 = vmatprep.subr.mxu0 %v121
  %145 = vmatpush1.msra.mxu0 %v120
  %146 = vmatprep.subr.mxu0 %v119
  %147 = vmatpush1.msra.mxu0 %v118
  %148 = vmatprep.subr.mxu0 %v117
  %149 = vmatpush1.msra.mxu0 %v116
  %150 = vmatprep.subr.mxu0 %v115
  %151 = vmatpush1.msra.mxu0 %v114
  %152 = vmatprep.subr.mxu0 %v113
  %153 = vmatpush1.msra.mxu0 %v112
  %154 = vmatprep.subr.mxu0 %v111
  %155 = vmatpush1.msra.mxu0 %v110
  %156 = vmatprep.subr.mxu0 %v109
  %157 = vmatpush1.msra.mxu0 %v108
  %158 = vmatprep.subr.mxu0 %v107
  %159 = vmatpush1.msra.mxu0 %v106
  %160 = vmatprep.subr.mxu0 0.0
  %161 = vmatpush2.msra.mxu0 0.0
  %162 = vmatprep.subr.mxu0 0.0
  %163 = vmatpush2.msra.mxu0 0.0
  %164 = vmatprep.subr.mxu0 0.0
  %165 = vmatpush2.msra.mxu0 0.0
  %166 = vmatprep.subr.mxu0 0.0
  %167 = vmatpush2.msra.mxu0 0.0
  %168 = vmatprep.subr.mxu0 0.0
  %169 = vmatpush2.msra.mxu0 0.0
  %170 = vmatprep.subr.mxu0 0.0
  %171 = vmatpush2.msra.mxu0 0.0
  %172 = vmatprep.subr.mxu0 0.0
  %173 = vmatpush2.msra.mxu0 0.0
  %174 = vmatprep.subr.mxu0 0.0
  %175 = vmatpush2.msra.mxu0 0.0
  %176 = vmatprep.subr.mxu0 0.0
  %177 = vmatpush2.msra.mxu0 0.0
  %178 = vmatprep.subr.mxu0 0.0
  %179 = vmatpush2.msra.mxu0 0.0
  %180 = vmatprep.subr.mxu0 0.0
  %181 = vmatpush2.msra.mxu0 0.0
  %182 = vmatprep.subr.mxu0 0.0
  %183 = vmatpush2.msra.mxu0 0.0
  %184 = vmatprep.subr.mxu0 0.0
  %185 = vmatpush2.msra.mxu0 0.0
  %186 = vmatprep.subr.mxu0 0.0
  %187 = vmatpush2.msra.mxu0 0.0
  %188 = vmatprep.subr.mxu0 0.0
  %189 = vmatpush2.msra.mxu0 0.0
  %190 = vmatprep.subr.mxu0 0.0
  %191 = vmatpush2.msra.mxu0 0.0
  %192 = vmatprep.mubr.f32.mxu0 0.0
  %193 = vmatmul.mubr.f32.gmra.mxu0 %v123
  %v194 = vpop.f32.mrf.mxu0
  %v195 = vadd.f32 0.0, %v194
  %v196 = vpop.f32.mrf.mxu0
  %v197 = vadd.f32 0.0, %v196
  %198 = vmatprep.mubr.f32.mxu0 0.0
  %199 = vmatmul.mubr.f32.gmra.mxu0 %v126
  %v200 = vpop.f32.mrf.mxu0
  %v201 = vadd.f32 0.0, %v200
  %v202 = vpop.f32.mrf.mxu0
  %v203 = vadd.f32 0.0, %v202
  %204 = vdwg.mxu0
  %206 = vrot.lane.b32.xlu0 %v195, 112
  %v207 = vpop.permute.xlu0 %206
  %208 = vrot.lane.b32.xlu0 %v195, 96
  %v209 = vpop.permute.xlu0 %208
  %210 = vrot.lane.b32.xlu0 %v195, 80
  %v211 = vpop.permute.xlu0 %210
  %213 = vrot.lane.b32.xlu0 %v201, 112
  %v214 = vpop.permute.xlu0 %213
  %215 = vrot.lane.b32.xlu0 %v201, 96
  %v216 = vpop.permute.xlu0 %215
  %217 = vrot.lane.b32.xlu0 %v201, 80
  %v218 = vpop.permute.xlu0 %217
  %220 = vrot.lane.b32.xlu0 %v197, 112
  %v221 = vpop.permute.xlu0 %220
  %223 = vrot.lane.b32.xlu0 %v197, 96
  %v224 = vpop.permute.xlu0 %223
  %226 = vrot.lane.b32.xlu0 %v197, 80
  %v227 = vpop.permute.xlu0 %226
  %230 = vrot.lane.b32.xlu0 %v203, 112
  %v231 = vpop.permute.xlu0 %230
  %233 = vrot.lane.b32.xlu0 %v203, 96
  %v234 = vpop.permute.xlu0 %233
  %236 = vrot.lane.b32.xlu0 %v203, 80
  %v237 = vpop.permute.xlu0 %236
  %239 = vrot.lane.b32.xlu0 %v195, 64
  %v240 = vpop.permute.xlu0 %239
  %vm241 = vcmask 130048
  %v242 = vsel %vm241, %v195, 0
  %v244 = vsel %vm241, %v240, 0
  %246 = vmatprep.subr.mxu0 0.0
  %247 = vmatpush1.xpose.msra.mxu0 0.0
  %248 = vmatprep.subr.mxu0 0.0
  %249 = vmatpush1.xpose.msra.mxu0 0.0
  %250 = vmatprep.subr.mxu0 0.0
  %251 = vmatpush1.xpose.msra.mxu0 0.0
  %252 = vmatprep.subr.mxu0 0.0
  %253 = vmatpush1.xpose.msra.mxu0 0.0
  %254 = vmatprep.subr.mxu0 0.0
  %255 = vmatpush1.xpose.msra.mxu0 0.0
  %256 = vmatprep.subr.mxu0 0.0
  %257 = vmatpush1.xpose.msra.mxu0 0.0
  %258 = vmatprep.subr.mxu0 0.0
  %259 = vmatpush1.xpose.msra.mxu0 0.0
  %260 = vmatprep.subr.mxu0 0.0
  %261 = vmatpush1.xpose.msra.mxu0 0.0
  %262 = vmatprep.subr.mxu0 0.0
  %263 = vmatpush1.xpose.msra.mxu0 0.0
  %264 = vmatprep.subr.mxu0 0.0
  %265 = vmatpush1.xpose.msra.mxu0 0.0
  %266 = vmatprep.subr.mxu0 0.0
  %267 = vmatpush1.xpose.msra.mxu0 0.0
  %268 = vmatprep.subr.mxu0 0.0
  %269 = vmatpush1.xpose.msra.mxu0 0.0
  %270 = vmatprep.subr.mxu0 0.0
  %271 = vmatpush1.xpose.msra.mxu0 0.0
  %272 = vmatprep.subr.mxu0 0.0
  %273 = vmatpush1.xpose.msra.mxu0 0.0
  %274 = vmatprep.subr.mxu0 0.0
  %275 = vmatpush1.xpose.msra.mxu0 0.0
  %276 = vmatprep.subr.mxu0 0.0
  %277 = vmatpush1.xpose.msra.mxu0 %v244
  %278 = vmatprep.subr.mxu0 0.0
  %279 = vmatpush2.xpose.msra.mxu0 0.0
  %280 = vmatprep.subr.mxu0 0.0
  %281 = vmatpush2.xpose.msra.mxu0 0.0
  %282 = vmatprep.subr.mxu0 0.0
  %283 = vmatpush2.xpose.msra.mxu0 0.0
  %284 = vmatprep.subr.mxu0 0.0
  %285 = vmatpush2.xpose.msra.mxu0 0.0
  %286 = vmatprep.subr.mxu0 0.0
  %287 = vmatpush2.xpose.msra.mxu0 0.0
  %288 = vmatprep.subr.mxu0 0.0
  %289 = vmatpush2.xpose.msra.mxu0 0.0
  %290 = vmatprep.subr.mxu0 0.0
  %291 = vmatpush2.xpose.msra.mxu0 0.0
  %292 = vmatprep.subr.mxu0 0.0
  %293 = vmatpush2.xpose.msra.mxu0 0.0
  %294 = vmatprep.subr.mxu0 0.0
  %295 = vmatpush2.xpose.msra.mxu0 0.0
  %296 = vmatprep.subr.mxu0 0.0
  %297 = vmatpush2.xpose.msra.mxu0 0.0
  %298 = vmatprep.subr.mxu0 0.0
  %299 = vmatpush2.xpose.msra.mxu0 0.0
  %300 = vmatprep.subr.mxu0 0.0
  %301 = vmatpush2.xpose.msra.mxu0 0.0
  %302 = vmatprep.subr.mxu0 0.0
  %303 = vmatpush2.xpose.msra.mxu0 0.0
  %304 = vmatprep.subr.mxu0 0.0
  %305 = vmatpush2.xpose.msra.mxu0 0.0
  %306 = vmatprep.subr.mxu0 0.0
  %307 = vmatpush2.xpose.msra.mxu0 0.0
  %308 = vmatprep.subr.mxu0 0.0
  %309 = vmatpush2.xpose.msra.mxu0 0.0
  %310 = vmatprep.mubr.f32.mxu0 0.0
  %311 = vmatmul.mubr.f32.gmra.mxu0 %v242
  %v312 = vpop.f32.mrf.mxu0
  %v313 = vadd.f32 0.0, %v312
  %v314 = vpop.f32.mrf.mxu0
  %315 = vdwg.mxu0
  %316 = vrot.lane.b32.xlu0 %v207, 64
  %v317 = vpop.permute.xlu0 %316
  %v318 = vsel %vm241, %v207, 0
  %v320 = vsel %vm241, %v317, 0
  %322 = vmatprep.subr.mxu0 0.0
  %323 = vmatpush1.xpose.msra.mxu0 0.0
  %324 = vmatprep.subr.mxu0 0.0
  %325 = vmatpush1.xpose.msra.mxu0 0.0
  %326 = vmatprep.subr.mxu0 0.0
  %327 = vmatpush1.xpose.msra.mxu0 0.0
  %328 = vmatprep.subr.mxu0 0.0
  %329 = vmatpush1.xpose.msra.mxu0 0.0
  %330 = vmatprep.subr.mxu0 0.0
  %331 = vmatpush1.xpose.msra.mxu0 0.0
  %332 = vmatprep.subr.mxu0 0.0
  %333 = vmatpush1.xpose.msra.mxu0 0.0
  %334 = vmatprep.subr.mxu0 0.0
  %335 = vmatpush1.xpose.msra.mxu0 0.0
  %336 = vmatprep.subr.mxu0 0.0
  %337 = vmatpush1.xpose.msra.mxu0 0.0
  %338 = vmatprep.subr.mxu0 0.0
  %339 = vmatpush1.xpose.msra.mxu0 0.0
  %340 = vmatprep.subr.mxu0 0.0
  %341 = vmatpush1.xpose.msra.mxu0 0.0
  %342 = vmatprep.subr.mxu0 0.0
  %343 = vmatpush1.xpose.msra.mxu0 0.0
  %344 = vmatprep.subr.mxu0 0.0
  %345 = vmatpush1.xpose.msra.mxu0 0.0
  %346 = vmatprep.subr.mxu0 0.0
  %347 = vmatpush1.xpose.msra.mxu0 0.0
  %348 = vmatprep.subr.mxu0 0.0
  %349 = vmatpush1.xpose.msra.mxu0 0.0
  %350 = vmatprep.subr.mxu0 0.0
  %351 = vmatpush1.xpose.msra.mxu0 0.0
  %352 = vmatprep.subr.mxu0 0.0
  %353 = vmatpush1.xpose.msra.mxu0 %v320
  %354 = vmatprep.subr.mxu0 0.0
  %355 = vmatpush2.xpose.msra.mxu0 0.0
  %356 = vmatprep.subr.mxu0 0.0
  %357 = vmatpush2.xpose.msra.mxu0 0.0
  %358 = vmatprep.subr.mxu0 0.0
  %359 = vmatpush2.xpose.msra.mxu0 0.0
  %360 = vmatprep.subr.mxu0 0.0
  %361 = vmatpush2.xpose.msra.mxu0 0.0
  %362 = vmatprep.subr.mxu0 0.0
  %363 = vmatpush2.xpose.msra.mxu0 0.0
  %364 = vmatprep.subr.mxu0 0.0
  %365 = vmatpush2.xpose.msra.mxu0 0.0
  %366 = vmatprep.subr.mxu0 0.0
  %367 = vmatpush2.xpose.msra.mxu0 0.0
  %368 = vmatprep.subr.mxu0 0.0
  %369 = vmatpush2.xpose.msra.mxu0 0.0
  %370 = vmatprep.subr.mxu0 0.0
  %371 = vmatpush2.xpose.msra.mxu0 0.0
  %372 = vmatprep.subr.mxu0 0.0
  %373 = vmatpush2.xpose.msra.mxu0 0.0
  %374 = vmatprep.subr.mxu0 0.0
  %375 = vmatpush2.xpose.msra.mxu0 0.0
  %376 = vmatprep.subr.mxu0 0.0
  %377 = vmatpush2.xpose.msra.mxu0 0.0
  %378 = vmatprep.subr.mxu0 0.0
  %379 = vmatpush2.xpose.msra.mxu0 0.0
  %380 = vmatprep.subr.mxu0 0.0
  %381 = vmatpush2.xpose.msra.mxu0 0.0
  %382 = vmatprep.subr.mxu0 0.0
  %383 = vmatpush2.xpose.msra.mxu0 0.0
  %384 = vmatprep.subr.mxu0 0.0
  %385 = vmatpush2.xpose.msra.mxu0 0.0
  %386 = vmatprep.mubr.f32.mxu0 0.0
  %387 = vmatmul.mubr.f32.gmra.mxu0 %v318
  %v388 = vpop.f32.mrf.mxu0
  %v389 = vadd.f32 0.0, %v388
  %v390 = vpop.f32.mrf.mxu0
  %391 = vdwg.mxu0
  %392 = vrot.lane.b32.xlu0 %v209, 64
  %v393 = vpop.permute.xlu0 %392
  %v394 = vsel %vm241, %v209, 0
  %v396 = vsel %vm241, %v393, 0
  %398 = vmatprep.subr.mxu0 0.0
  %399 = vmatpush1.xpose.msra.mxu0 0.0
  %400 = vmatprep.subr.mxu0 0.0
  %401 = vmatpush1.xpose.msra.mxu0 0.0
  %402 = vmatprep.subr.mxu0 0.0
  %403 = vmatpush1.xpose.msra.mxu0 0.0
  %404 = vmatprep.subr.mxu0 0.0
  %405 = vmatpush1.xpose.msra.mxu0 0.0
  %406 = vmatprep.subr.mxu0 0.0
  %407 = vmatpush1.xpose.msra.mxu0 0.0
  %408 = vmatprep.subr.mxu0 0.0
  %409 = vmatpush1.xpose.msra.mxu0 0.0
  %410 = vmatprep.subr.mxu0 0.0
  %411 = vmatpush1.xpose.msra.mxu0 0.0
  %412 = vmatprep.subr.mxu0 0.0
  %413 = vmatpush1.xpose.msra.mxu0 0.0
  %414 = vmatprep.subr.mxu0 0.0
  %415 = vmatpush1.xpose.msra.mxu0 0.0
  %416 = vmatprep.subr.mxu0 0.0
  %417 = vmatpush1.xpose.msra.mxu0 0.0
  %418 = vmatprep.subr.mxu0 0.0
  %419 = vmatpush1.xpose.msra.mxu0 0.0
  %420 = vmatprep.subr.mxu0 0.0
  %421 = vmatpush1.xpose.msra.mxu0 0.0
  %422 = vmatprep.subr.mxu0 0.0
  %423 = vmatpush1.xpose.msra.mxu0 0.0
  %424 = vmatprep.subr.mxu0 0.0
  %425 = vmatpush1.xpose.msra.mxu0 0.0
  %426 = vmatprep.subr.mxu0 0.0
  %427 = vmatpush1.xpose.msra.mxu0 0.0
  %428 = vmatprep.subr.mxu0 0.0
  %429 = vmatpush1.xpose.msra.mxu0 %v396
  %430 = vmatprep.subr.mxu0 0.0
  %431 = vmatpush2.xpose.msra.mxu0 0.0
  %432 = vmatprep.subr.mxu0 0.0
  %433 = vmatpush2.xpose.msra.mxu0 0.0
  %434 = vmatprep.subr.mxu0 0.0
  %435 = vmatpush2.xpose.msra.mxu0 0.0
  %436 = vmatprep.subr.mxu0 0.0
  %437 = vmatpush2.xpose.msra.mxu0 0.0
  %438 = vmatprep.subr.mxu0 0.0
  %439 = vmatpush2.xpose.msra.mxu0 0.0
  %440 = vmatprep.subr.mxu0 0.0
  %441 = vmatpush2.xpose.msra.mxu0 0.0
  %442 = vmatprep.subr.mxu0 0.0
  %443 = vmatpush2.xpose.msra.mxu0 0.0
  %444 = vmatprep.subr.mxu0 0.0
  %445 = vmatpush2.xpose.msra.mxu0 0.0
  %446 = vmatprep.subr.mxu0 0.0
  %447 = vmatpush2.xpose.msra.mxu0 0.0
  %448 = vmatprep.subr.mxu0 0.0
  %449 = vmatpush2.xpose.msra.mxu0 0.0
  %450 = vmatprep.subr.mxu0 0.0
  %451 = vmatpush2.xpose.msra.mxu0 0.0
  %452 = vmatprep.subr.mxu0 0.0
  %453 = vmatpush2.xpose.msra.mxu0 0.0
  %454 = vmatprep.subr.mxu0 0.0
  %455 = vmatpush2.xpose.msra.mxu0 0.0
  %456 = vmatprep.subr.mxu0 0.0
  %457 = vmatpush2.xpose.msra.mxu0 0.0
  %458 = vmatprep.subr.mxu0 0.0
  %459 = vmatpush2.xpose.msra.mxu0 0.0
  %460 = vmatprep.subr.mxu0 0.0
  %461 = vmatpush2.xpose.msra.mxu0 0.0
  %462 = vmatprep.mubr.f32.mxu0 0.0
  %463 = vmatmul.mubr.f32.gmra.mxu0 %v394
  %v464 = vpop.f32.mrf.mxu0
  %v465 = vadd.f32 0.0, %v464
  %v466 = vpop.f32.mrf.mxu0
  %467 = vdwg.mxu0
  %468 = vrot.lane.b32.xlu0 %v211, 64
  %v469 = vpop.permute.xlu0 %468
  %v470 = vsel %vm241, %v211, 0
  %v472 = vsel %vm241, %v469, 0
  %474 = vmatprep.subr.mxu0 0.0
  %475 = vmatpush1.xpose.msra.mxu0 0.0
  %476 = vmatprep.subr.mxu0 0.0
  %477 = vmatpush1.xpose.msra.mxu0 0.0
  %478 = vmatprep.subr.mxu0 0.0
  %479 = vmatpush1.xpose.msra.mxu0 0.0
  %480 = vmatprep.subr.mxu0 0.0
  %481 = vmatpush1.xpose.msra.mxu0 0.0
  %482 = vmatprep.subr.mxu0 0.0
  %483 = vmatpush1.xpose.msra.mxu0 0.0
  %484 = vmatprep.subr.mxu0 0.0
  %485 = vmatpush1.xpose.msra.mxu0 0.0
  %486 = vmatprep.subr.mxu0 0.0
  %487 = vmatpush1.xpose.msra.mxu0 0.0
  %488 = vmatprep.subr.mxu0 0.0
  %489 = vmatpush1.xpose.msra.mxu0 0.0
  %490 = vmatprep.subr.mxu0 0.0
  %491 = vmatpush1.xpose.msra.mxu0 0.0
  %492 = vmatprep.subr.mxu0 0.0
  %493 = vmatpush1.xpose.msra.mxu0 0.0
  %494 = vmatprep.subr.mxu0 0.0
  %495 = vmatpush1.xpose.msra.mxu0 0.0
  %496 = vmatprep.subr.mxu0 0.0
  %497 = vmatpush1.xpose.msra.mxu0 0.0
  %498 = vmatprep.subr.mxu0 0.0
  %499 = vmatpush1.xpose.msra.mxu0 0.0
  %500 = vmatprep.subr.mxu0 0.0
  %501 = vmatpush1.xpose.msra.mxu0 0.0
  %502 = vmatprep.subr.mxu0 0.0
  %503 = vmatpush1.xpose.msra.mxu0 0.0
  %504 = vmatprep.subr.mxu0 0.0
  %505 = vmatpush1.xpose.msra.mxu0 %v472
  %506 = vmatprep.subr.mxu0 0.0
  %507 = vmatpush2.xpose.msra.mxu0 0.0
  %508 = vmatprep.subr.mxu0 0.0
  %509 = vmatpush2.xpose.msra.mxu0 0.0
  %510 = vmatprep.subr.mxu0 0.0
  %511 = vmatpush2.xpose.msra.mxu0 0.0
  %512 = vmatprep.subr.mxu0 0.0
  %513 = vmatpush2.xpose.msra.mxu0 0.0
  %514 = vmatprep.subr.mxu0 0.0
  %515 = vmatpush2.xpose.msra.mxu0 0.0
  %516 = vmatprep.subr.mxu0 0.0
  %517 = vmatpush2.xpose.msra.mxu0 0.0
  %518 = vmatprep.subr.mxu0 0.0
  %519 = vmatpush2.xpose.msra.mxu0 0.0
  %520 = vmatprep.subr.mxu0 0.0
  %521 = vmatpush2.xpose.msra.mxu0 0.0
  %522 = vmatprep.subr.mxu0 0.0
  %523 = vmatpush2.xpose.msra.mxu0 0.0
  %524 = vmatprep.subr.mxu0 0.0
  %525 = vmatpush2.xpose.msra.mxu0 0.0
  %526 = vmatprep.subr.mxu0 0.0
  %527 = vmatpush2.xpose.msra.mxu0 0.0
  %528 = vmatprep.subr.mxu0 0.0
  %529 = vmatpush2.xpose.msra.mxu0 0.0
  %530 = vmatprep.subr.mxu0 0.0
  %531 = vmatpush2.xpose.msra.mxu0 0.0
  %532 = vmatprep.subr.mxu0 0.0
  %533 = vmatpush2.xpose.msra.mxu0 0.0
  %534 = vmatprep.subr.mxu0 0.0
  %535 = vmatpush2.xpose.msra.mxu0 0.0
  %536 = vmatprep.subr.mxu0 0.0
  %537 = vmatpush2.xpose.msra.mxu0 0.0
  %538 = vmatprep.mubr.f32.mxu0 0.0
  %539 = vmatmul.mubr.f32.gmra.mxu0 %v470
  %v540 = vpop.f32.mrf.mxu0
  %v541 = vadd.f32 0.0, %v540
  %v542 = vpop.f32.mrf.mxu0
  %543 = vdwg.mxu0
  %544 = vrot.lane.b32.xlu0 %v201, 64
  %v545 = vpop.permute.xlu0 %544
  %v546 = vsel %vm241, %v201, 0
  %v548 = vsel %vm241, %v545, 0
  %550 = vmatprep.subr.mxu0 0.0
  %551 = vmatpush1.xpose.msra.mxu0 0.0
  %552 = vmatprep.subr.mxu0 0.0
  %553 = vmatpush1.xpose.msra.mxu0 0.0
  %554 = vmatprep.subr.mxu0 0.0
  %555 = vmatpush1.xpose.msra.mxu0 0.0
  %556 = vmatprep.subr.mxu0 0.0
  %557 = vmatpush1.xpose.msra.mxu0 0.0
  %558 = vmatprep.subr.mxu0 0.0
  %559 = vmatpush1.xpose.msra.mxu0 0.0
  %560 = vmatprep.subr.mxu0 0.0
  %561 = vmatpush1.xpose.msra.mxu0 0.0
  %562 = vmatprep.subr.mxu0 0.0
  %563 = vmatpush1.xpose.msra.mxu0 0.0
  %564 = vmatprep.subr.mxu0 0.0
  %565 = vmatpush1.xpose.msra.mxu0 0.0
  %566 = vmatprep.subr.mxu0 0.0
  %567 = vmatpush1.xpose.msra.mxu0 0.0
  %568 = vmatprep.subr.mxu0 0.0
  %569 = vmatpush1.xpose.msra.mxu0 0.0
  %570 = vmatprep.subr.mxu0 0.0
  %571 = vmatpush1.xpose.msra.mxu0 0.0
  %572 = vmatprep.subr.mxu0 0.0
  %573 = vmatpush1.xpose.msra.mxu0 0.0
  %574 = vmatprep.subr.mxu0 0.0
  %575 = vmatpush1.xpose.msra.mxu0 0.0
  %576 = vmatprep.subr.mxu0 0.0
  %577 = vmatpush1.xpose.msra.mxu0 0.0
  %578 = vmatprep.subr.mxu0 0.0
  %579 = vmatpush1.xpose.msra.mxu0 0.0
  %580 = vmatprep.subr.mxu0 0.0
  %581 = vmatpush1.xpose.msra.mxu0 %v548
  %582 = vmatprep.subr.mxu0 0.0
  %583 = vmatpush2.xpose.msra.mxu0 0.0
  %584 = vmatprep.subr.mxu0 0.0
  %585 = vmatpush2.xpose.msra.mxu0 0.0
  %586 = vmatprep.subr.mxu0 0.0
  %587 = vmatpush2.xpose.msra.mxu0 0.0
  %588 = vmatprep.subr.mxu0 0.0
  %589 = vmatpush2.xpose.msra.mxu0 0.0
  %590 = vmatprep.subr.mxu0 0.0
  %591 = vmatpush2.xpose.msra.mxu0 0.0
  %592 = vmatprep.subr.mxu0 0.0
  %593 = vmatpush2.xpose.msra.mxu0 0.0
  %594 = vmatprep.subr.mxu0 0.0
  %595 = vmatpush2.xpose.msra.mxu0 0.0
  %596 = vmatprep.subr.mxu0 0.0
  %597 = vmatpush2.xpose.msra.mxu0 0.0
  %598 = vmatprep.subr.mxu0 0.0
  %599 = vmatpush2.xpose.msra.mxu0 0.0
  %600 = vmatprep.subr.mxu0 0.0
  %601 = vmatpush2.xpose.msra.mxu0 0.0
  %602 = vmatprep.subr.mxu0 0.0
  %603 = vmatpush2.xpose.msra.mxu0 0.0
  %604 = vmatprep.subr.mxu0 0.0
  %605 = vmatpush2.xpose.msra.mxu0 0.0
  %606 = vmatprep.subr.mxu0 0.0
  %607 = vmatpush2.xpose.msra.mxu0 0.0
  %608 = vmatprep.subr.mxu0 0.0
  %609 = vmatpush2.xpose.msra.mxu0 0.0
  %610 = vmatprep.subr.mxu0 0.0
  %611 = vmatpush2.xpose.msra.mxu0 0.0
  %612 = vmatprep.subr.mxu0 0.0
  %613 = vmatpush2.xpose.msra.mxu0 0.0
  %614 = vmatprep.mubr.f32.mxu0 0.0
  %615 = vmatmul.mubr.f32.gmra.mxu0 %v546
  %v616 = vpop.f32.mrf.mxu0
  %v617 = vadd.f32 0.0, %v616
  %v618 = vpop.f32.mrf.mxu0
  %619 = vdwg.mxu0
  %620 = vrot.lane.b32.xlu0 %v214, 64
  %v621 = vpop.permute.xlu0 %620
  %v622 = vsel %vm241, %v214, 0
  %v624 = vsel %vm241, %v621, 0
  %626 = vmatprep.subr.mxu0 0.0
  %627 = vmatpush1.xpose.msra.mxu0 0.0
  %628 = vmatprep.subr.mxu0 0.0
  %629 = vmatpush1.xpose.msra.mxu0 0.0
  %630 = vmatprep.subr.mxu0 0.0
  %631 = vmatpush1.xpose.msra.mxu0 0.0
  %632 = vmatprep.subr.mxu0 0.0
  %633 = vmatpush1.xpose.msra.mxu0 0.0
  %634 = vmatprep.subr.mxu0 0.0
  %635 = vmatpush1.xpose.msra.mxu0 0.0
  %636 = vmatprep.subr.mxu0 0.0
  %637 = vmatpush1.xpose.msra.mxu0 0.0
  %638 = vmatprep.subr.mxu0 0.0
  %639 = vmatpush1.xpose.msra.mxu0 0.0
  %640 = vmatprep.subr.mxu0 0.0
  %641 = vmatpush1.xpose.msra.mxu0 0.0
  %642 = vmatprep.subr.mxu0 0.0
  %643 = vmatpush1.xpose.msra.mxu0 0.0
  %644 = vmatprep.subr.mxu0 0.0
  %645 = vmatpush1.xpose.msra.mxu0 0.0
  %646 = vmatprep.subr.mxu0 0.0
  %647 = vmatpush1.xpose.msra.mxu0 0.0
  %648 = vmatprep.subr.mxu0 0.0
  %649 = vmatpush1.xpose.msra.mxu0 0.0
  %650 = vmatprep.subr.mxu0 0.0
  %651 = vmatpush1.xpose.msra.mxu0 0.0
  %652 = vmatprep.subr.mxu0 0.0
  %653 = vmatpush1.xpose.msra.mxu0 0.0
  %654 = vmatprep.subr.mxu0 0.0
  %655 = vmatpush1.xpose.msra.mxu0 0.0
  %656 = vmatprep.subr.mxu0 0.0
  %657 = vmatpush1.xpose.msra.mxu0 %v624
  %658 = vmatprep.subr.mxu0 0.0
  %659 = vmatpush2.xpose.msra.mxu0 0.0
  %660 = vmatprep.subr.mxu0 0.0
  %661 = vmatpush2.xpose.msra.mxu0 0.0
  %662 = vmatprep.subr.mxu0 0.0
  %663 = vmatpush2.xpose.msra.mxu0 0.0
  %664 = vmatprep.subr.mxu0 0.0
  %665 = vmatpush2.xpose.msra.mxu0 0.0
  %666 = vmatprep.subr.mxu0 0.0
  %667 = vmatpush2.xpose.msra.mxu0 0.0
  %668 = vmatprep.subr.mxu0 0.0
  %669 = vmatpush2.xpose.msra.mxu0 0.0
  %670 = vmatprep.subr.mxu0 0.0
  %671 = vmatpush2.xpose.msra.mxu0 0.0
  %672 = vmatprep.subr.mxu0 0.0
  %673 = vmatpush2.xpose.msra.mxu0 0.0
  %674 = vmatprep.subr.mxu0 0.0
  %675 = vmatpush2.xpose.msra.mxu0 0.0
  %676 = vmatprep.subr.mxu0 0.0
  %677 = vmatpush2.xpose.msra.mxu0 0.0
  %678 = vmatprep.subr.mxu0 0.0
  %679 = vmatpush2.xpose.msra.mxu0 0.0
  %680 = vmatprep.subr.mxu0 0.0
  %681 = vmatpush2.xpose.msra.mxu0 0.0
  %682 = vmatprep.subr.mxu0 0.0
  %683 = vmatpush2.xpose.msra.mxu0 0.0
  %684 = vmatprep.subr.mxu0 0.0
  %685 = vmatpush2.xpose.msra.mxu0 0.0
  %686 = vmatprep.subr.mxu0 0.0
  %687 = vmatpush2.xpose.msra.mxu0 0.0
  %688 = vmatprep.subr.mxu0 0.0
  %689 = vmatpush2.xpose.msra.mxu0 0.0
  %690 = vmatprep.mubr.f32.mxu0 0.0
  %691 = vmatmul.mubr.f32.gmra.mxu0 %v622
  %v692 = vpop.f32.mrf.mxu0
  %v693 = vadd.f32 0.0, %v692
  %v694 = vpop.f32.mrf.mxu0
  %695 = vdwg.mxu0
  %696 = vrot.lane.b32.xlu0 %v216, 64
  %v697 = vpop.permute.xlu0 %696
  %v698 = vsel %vm241, %v216, 0
  %v700 = vsel %vm241, %v697, 0
  %702 = vmatprep.subr.mxu0 0.0
  %703 = vmatpush1.xpose.msra.mxu0 0.0
  %704 = vmatprep.subr.mxu0 0.0
  %705 = vmatpush1.xpose.msra.mxu0 0.0
  %706 = vmatprep.subr.mxu0 0.0
  %707 = vmatpush1.xpose.msra.mxu0 0.0
  %708 = vmatprep.subr.mxu0 0.0
  %709 = vmatpush1.xpose.msra.mxu0 0.0
  %710 = vmatprep.subr.mxu0 0.0
  %711 = vmatpush1.xpose.msra.mxu0 0.0
  %712 = vmatprep.subr.mxu0 0.0
  %713 = vmatpush1.xpose.msra.mxu0 0.0
  %714 = vmatprep.subr.mxu0 0.0
  %715 = vmatpush1.xpose.msra.mxu0 0.0
  %716 = vmatprep.subr.mxu0 0.0
  %717 = vmatpush1.xpose.msra.mxu0 0.0
  %718 = vmatprep.subr.mxu0 0.0
  %719 = vmatpush1.xpose.msra.mxu0 0.0
  %720 = vmatprep.subr.mxu0 0.0
  %721 = vmatpush1.xpose.msra.mxu0 0.0
  %722 = vmatprep.subr.mxu0 0.0
  %723 = vmatpush1.xpose.msra.mxu0 0.0
  %724 = vmatprep.subr.mxu0 0.0
  %725 = vmatpush1.xpose.msra.mxu0 0.0
  %726 = vmatprep.subr.mxu0 0.0
  %727 = vmatpush1.xpose.msra.mxu0 0.0
  %728 = vmatprep.subr.mxu0 0.0
  %729 = vmatpush1.xpose.msra.mxu0 0.0
  %730 = vmatprep.subr.mxu0 0.0
  %731 = vmatpush1.xpose.msra.mxu0 0.0
  %732 = vmatprep.subr.mxu0 0.0
  %733 = vmatpush1.xpose.msra.mxu0 %v700
  %734 = vmatprep.subr.mxu0 0.0
  %735 = vmatpush2.xpose.msra.mxu0 0.0
  %736 = vmatprep.subr.mxu0 0.0
  %737 = vmatpush2.xpose.msra.mxu0 0.0
  %738 = vmatprep.subr.mxu0 0.0
  %739 = vmatpush2.xpose.msra.mxu0 0.0
  %740 = vmatprep.subr.mxu0 0.0
  %741 = vmatpush2.xpose.msra.mxu0 0.0
  %742 = vmatprep.subr.mxu0 0.0
  %743 = vmatpush2.xpose.msra.mxu0 0.0
  %744 = vmatprep.subr.mxu0 0.0
  %745 = vmatpush2.xpose.msra.mxu0 0.0
  %746 = vmatprep.subr.mxu0 0.0
  %747 = vmatpush2.xpose.msra.mxu0 0.0
  %748 = vmatprep.subr.mxu0 0.0
  %749 = vmatpush2.xpose.msra.mxu0 0.0
  %750 = vmatprep.subr.mxu0 0.0
  %751 = vmatpush2.xpose.msra.mxu0 0.0
  %752 = vmatprep.subr.mxu0 0.0
  %753 = vmatpush2.xpose.msra.mxu0 0.0
  %754 = vmatprep.subr.mxu0 0.0
  %755 = vmatpush2.xpose.msra.mxu0 0.0
  %756 = vmatprep.subr.mxu0 0.0
  %757 = vmatpush2.xpose.msra.mxu0 0.0
  %758 = vmatprep.subr.mxu0 0.0
  %759 = vmatpush2.xpose.msra.mxu0 0.0
  %760 = vmatprep.subr.mxu0 0.0
  %761 = vmatpush2.xpose.msra.mxu0 0.0
  %762 = vmatprep.subr.mxu0 0.0
  %763 = vmatpush2.xpose.msra.mxu0 0.0
  %764 = vmatprep.subr.mxu0 0.0
  %765 = vmatpush2.xpose.msra.mxu0 0.0
  %766 = vmatprep.mubr.f32.mxu0 0.0
  %767 = vmatmul.mubr.f32.gmra.mxu0 %v698
  %v768 = vpop.f32.mrf.mxu0
  %v769 = vadd.f32 0.0, %v768
  %v770 = vpop.f32.mrf.mxu0
  %771 = vdwg.mxu0
  %772 = vrot.lane.b32.xlu0 %v218, 64
  %v773 = vpop.permute.xlu0 %772
  %v774 = vsel %vm241, %v218, 0
  %v776 = vsel %vm241, %v773, 0
  %778 = vmatprep.subr.mxu0 0.0
  %779 = vmatpush1.xpose.msra.mxu0 0.0
  %780 = vmatprep.subr.mxu0 0.0
  %781 = vmatpush1.xpose.msra.mxu0 0.0
  %782 = vmatprep.subr.mxu0 0.0
  %783 = vmatpush1.xpose.msra.mxu0 0.0
  %784 = vmatprep.subr.mxu0 0.0
  %785 = vmatpush1.xpose.msra.mxu0 0.0
  %786 = vmatprep.subr.mxu0 0.0
  %787 = vmatpush1.xpose.msra.mxu0 0.0
  %788 = vmatprep.subr.mxu0 0.0
  %789 = vmatpush1.xpose.msra.mxu0 0.0
  %790 = vmatprep.subr.mxu0 0.0
  %791 = vmatpush1.xpose.msra.mxu0 0.0
  %792 = vmatprep.subr.mxu0 0.0
  %793 = vmatpush1.xpose.msra.mxu0 0.0
  %794 = vmatprep.subr.mxu0 0.0
  %795 = vmatpush1.xpose.msra.mxu0 0.0
  %796 = vmatprep.subr.mxu0 0.0
  %797 = vmatpush1.xpose.msra.mxu0 0.0
  %798 = vmatprep.subr.mxu0 0.0
  %799 = vmatpush1.xpose.msra.mxu0 0.0
  %800 = vmatprep.subr.mxu0 0.0
  %801 = vmatpush1.xpose.msra.mxu0 0.0
  %802 = vmatprep.subr.mxu0 0.0
  %803 = vmatpush1.xpose.msra.mxu0 0.0
  %804 = vmatprep.subr.mxu0 0.0
  %805 = vmatpush1.xpose.msra.mxu0 0.0
  %806 = vmatprep.subr.mxu0 0.0
  %807 = vmatpush1.xpose.msra.mxu0 0.0
  %808 = vmatprep.subr.mxu0 0.0
  %809 = vmatpush1.xpose.msra.mxu0 %v776
  %810 = vmatprep.subr.mxu0 0.0
  %811 = vmatpush2.xpose.msra.mxu0 0.0
  %812 = vmatprep.subr.mxu0 0.0
  %813 = vmatpush2.xpose.msra.mxu0 0.0
  %814 = vmatprep.subr.mxu0 0.0
  %815 = vmatpush2.xpose.msra.mxu0 0.0
  %816 = vmatprep.subr.mxu0 0.0
  %817 = vmatpush2.xpose.msra.mxu0 0.0
  %818 = vmatprep.subr.mxu0 0.0
  %819 = vmatpush2.xpose.msra.mxu0 0.0
  %820 = vmatprep.subr.mxu0 0.0
  %821 = vmatpush2.xpose.msra.mxu0 0.0
  %822 = vmatprep.subr.mxu0 0.0
  %823 = vmatpush2.xpose.msra.mxu0 0.0
  %824 = vmatprep.subr.mxu0 0.0
  %825 = vmatpush2.xpose.msra.mxu0 0.0
  %826 = vmatprep.subr.mxu0 0.0
  %827 = vmatpush2.xpose.msra.mxu0 0.0
  %828 = vmatprep.subr.mxu0 0.0
  %829 = vmatpush2.xpose.msra.mxu0 0.0
  %830 = vmatprep.subr.mxu0 0.0
  %831 = vmatpush2.xpose.msra.mxu0 0.0
  %832 = vmatprep.subr.mxu0 0.0
  %833 = vmatpush2.xpose.msra.mxu0 0.0
  %834 = vmatprep.subr.mxu0 0.0
  %835 = vmatpush2.xpose.msra.mxu0 0.0
  %836 = vmatprep.subr.mxu0 0.0
  %837 = vmatpush2.xpose.msra.mxu0 0.0
  %838 = vmatprep.subr.mxu0 0.0
  %839 = vmatpush2.xpose.msra.mxu0 0.0
  %840 = vmatprep.subr.mxu0 0.0
  %841 = vmatpush2.xpose.msra.mxu0 0.0
  %842 = vmatprep.mubr.f32.mxu0 0.0
  %843 = vmatmul.mubr.f32.gmra.mxu0 %v774
  %v844 = vpop.f32.mrf.mxu0
  %v845 = vadd.f32 0.0, %v844
  %v846 = vpop.f32.mrf.mxu0
  %847 = vdwg.mxu0
  %v848 = vmul.f32 %v313, 0.25
  %v849 = vmul.f32 %v389, 0.25
  %v850 = vmul.f32 %v465, 0.25
  %v851 = vmul.f32 %v541, 0.25
  %v852 = vmul.f32 %v617, 0.25
  %v853 = vmul.f32 %v693, 0.25
  %v854 = vmul.f32 %v769, 0.25
  %v855 = vmul.f32 %v845, 0.25
  %v856 = vsel %vm59, 1, 0
  %vm857 = vcmp.eq.s32.totalorder %v856, 1
  %v858 = vsel %vm857, %v848, -1e+30
  %v859 = vsel %vm857, %v849, -1e+30
  %v860 = vsel %vm857, %v850, -1e+30
  %v861 = vsel %vm857, %v851, -1e+30
  %v862 = vsel %vm857, %v852, -1e+30
  %v863 = vsel %vm857, %v853, -1e+30
  %v864 = vsel %vm857, %v854, -1e+30
  %v865 = vsel %vm857, %v855, -1e+30
  %vm866 = vcmask 64512
  %v867 = vsel %vm866, %v858, -inf
  %868 = vmax.xlane.f32.xlu0 %v867
  %v869 = vpop.xlane.xlu0 %868
  %v870 = vsel %vm866, %v859, -inf
  %871 = vmax.xlane.f32.xlu0 %v870
  %v872 = vpop.xlane.xlu0 %871
  %v873 = vsel %vm866, %v860, -inf
  %874 = vmax.xlane.f32.xlu0 %v873
  %v875 = vpop.xlane.xlu0 %874
  %v876 = vsel %vm866, %v861, -inf
  %877 = vmax.xlane.f32.xlu0 %v876
  %v878 = vpop.xlane.xlu0 %877
  %v879 = vsel %vm866, %v862, -inf
  %880 = vmax.xlane.f32.xlu0 %v879
  %v881 = vpop.xlane.xlu0 %880
  %v882 = vsel %vm866, %v863, -inf
  %883 = vmax.xlane.f32.xlu0 %v882
  %v884 = vpop.xlane.xlu0 %883
  %v885 = vsel %vm866, %v864, -inf
  %886 = vmax.xlane.f32.xlu0 %v885
  %v887 = vpop.xlane.xlu0 %886
  %v888 = vsel %vm866, %v865, -inf
  %889 = vmax.xlane.f32.xlu0 %v888
  %v890 = vpop.xlane.xlu0 %889
  %v891 = vsub.f32 %v858, %v869
  %v892 = vsub.f32 %v859, %v872
  %v893 = vsub.f32 %v860, %v875
  %v894 = vsub.f32 %v861, %v878
  %v895 = vsub.f32 %v862, %v881
  %v896 = vsub.f32 %v863, %v884
  %v897 = vsub.f32 %v864, %v887
  %v898 = vsub.f32 %v865, %v890
  %v899 = vmul.f32 %v891, 1.442695
  %v900 = vpow.pop %v899
  %v901 = vmul.f32 %v892, 1.442695
  %v902 = vpow.pop %v901
  %v903 = vmul.f32 %v893, 1.442695
  %v904 = vpow.pop %v903
  %v905 = vmul.f32 %v894, 1.442695
  %v906 = vpow.pop %v905
  %v907 = vmul.f32 %v895, 1.442695
  %v908 = vpow.pop %v907
  %v909 = vmul.f32 %v896, 1.442695
  %v910 = vpow.pop %v909
  %v911 = vmul.f32 %v897, 1.442695
  %v912 = vpow.pop %v911
  %v913 = vmul.f32 %v898, 1.442695
  %v914 = vpow.pop %v913
  %v915 = vsel %vm866, %v900, 0.0
  %916 = vadd.xlane.f32.xlu0 %v915
  %v917 = vpop.xlane.xlu0 %916
  %v918 = vsel %vm866, %v902, 0.0
  %919 = vadd.xlane.f32.xlu0 %v918
  %v920 = vpop.xlane.xlu0 %919
  %v921 = vsel %vm866, %v904, 0.0
  %922 = vadd.xlane.f32.xlu0 %v921
  %v923 = vpop.xlane.xlu0 %922
  %v924 = vsel %vm866, %v906, 0.0
  %925 = vadd.xlane.f32.xlu0 %v924
  %v926 = vpop.xlane.xlu0 %925
  %v927 = vsel %vm866, %v908, 0.0
  %928 = vadd.xlane.f32.xlu0 %v927
  %v929 = vpop.xlane.xlu0 %928
  %v930 = vsel %vm866, %v910, 0.0
  %931 = vadd.xlane.f32.xlu0 %v930
  %v932 = vpop.xlane.xlu0 %931
  %v933 = vsel %vm866, %v912, 0.0
  %934 = vadd.xlane.f32.xlu0 %v933
  %v935 = vpop.xlane.xlu0 %934
  %v936 = vsel %vm866, %v914, 0.0
  %937 = vadd.xlane.f32.xlu0 %v936
  %v938 = vpop.xlane.xlu0 %937
  %v939 = vrcp.pop %v917
  %v940 = vmul.f32 %v900, %v939
  %v941 = vrcp.pop %v920
  %v942 = vmul.f32 %v902, %v941
  %v943 = vrcp.pop %v923
  %v944 = vmul.f32 %v904, %v943
  %v945 = vrcp.pop %v926
  %v946 = vmul.f32 %v906, %v945
  %v947 = vrcp.pop %v929
  %v948 = vmul.f32 %v908, %v947
  %v949 = vrcp.pop %v932
  %v950 = vmul.f32 %v910, %v949
  %v951 = vrcp.pop %v935
  %v952 = vmul.f32 %v912, %v951
  %v953 = vrcp.pop %v938
  %v954 = vmul.f32 %v914, %v953
  %v956 = vsel %vm866, %v940, 0
  %958 = vmatprep.subr.mxu0 0.0
  %959 = vmatpush1.msra.mxu0 0.0
  %960 = vmatprep.subr.mxu0 0.0
  %961 = vmatpush1.msra.mxu0 0.0
  %962 = vmatprep.subr.mxu0 0.0
  %963 = vmatpush1.msra.mxu0 0.0
  %964 = vmatprep.subr.mxu0 0.0
  %965 = vmatpush1.msra.mxu0 0.0
  %966 = vmatprep.subr.mxu0 0.0
  %967 = vmatpush1.msra.mxu0 0.0
  %968 = vmatprep.subr.mxu0 0.0
  %969 = vmatpush1.msra.mxu0 0.0
  %970 = vmatprep.subr.mxu0 0.0
  %971 = vmatpush1.msra.mxu0 0.0
  %972 = vmatprep.subr.mxu0 0.0
  %973 = vmatpush1.msra.mxu0 0.0
  %974 = vmatprep.subr.mxu0 0.0
  %975 = vmatpush1.msra.mxu0 0.0
  %976 = vmatprep.subr.mxu0 0.0
  %977 = vmatpush1.msra.mxu0 0.0
  %978 = vmatprep.subr.mxu0 0.0
  %979 = vmatpush1.msra.mxu0 0.0
  %980 = vmatprep.subr.mxu0 0.0
  %981 = vmatpush1.msra.mxu0 0.0
  %982 = vmatprep.subr.mxu0 0.0
  %983 = vmatpush1.msra.mxu0 0.0
  %984 = vmatprep.subr.mxu0 0.0
  %985 = vmatpush1.msra.mxu0 0.0
  %986 = vmatprep.subr.mxu0 0.0
  %987 = vmatpush1.msra.mxu0 0.0
  %988 = vmatprep.subr.mxu0 0.0
  %989 = vmatpush1.msra.mxu0 %v197
  %990 = vmatprep.subr.mxu0 0.0
  %991 = vmatpush2.msra.mxu0 0.0
  %992 = vmatprep.subr.mxu0 0.0
  %993 = vmatpush2.msra.mxu0 0.0
  %994 = vmatprep.subr.mxu0 0.0
  %995 = vmatpush2.msra.mxu0 0.0
  %996 = vmatprep.subr.mxu0 0.0
  %997 = vmatpush2.msra.mxu0 0.0
  %998 = vmatprep.subr.mxu0 0.0
  %999 = vmatpush2.msra.mxu0 0.0
  %1000 = vmatprep.subr.mxu0 0.0
  %1001 = vmatpush2.msra.mxu0 0.0
  %1002 = vmatprep.subr.mxu0 0.0
  %1003 = vmatpush2.msra.mxu0 0.0
  %1004 = vmatprep.subr.mxu0 0.0
  %1005 = vmatpush2.msra.mxu0 0.0
  %1006 = vmatprep.subr.mxu0 0.0
  %1007 = vmatpush2.msra.mxu0 0.0
  %1008 = vmatprep.subr.mxu0 0.0
  %1009 = vmatpush2.msra.mxu0 0.0
  %1010 = vmatprep.subr.mxu0 0.0
  %1011 = vmatpush2.msra.mxu0 0.0
  %1012 = vmatprep.subr.mxu0 0.0
  %1013 = vmatpush2.msra.mxu0 0.0
  %1014 = vmatprep.subr.mxu0 0.0
  %1015 = vmatpush2.msra.mxu0 0.0
  %1016 = vmatprep.subr.mxu0 0.0
  %1017 = vmatpush2.msra.mxu0 0.0
  %1018 = vmatprep.subr.mxu0 0.0
  %1019 = vmatpush2.msra.mxu0 0.0
  %1020 = vmatprep.subr.mxu0 0.0
  %1021 = vmatpush2.msra.mxu0 0.0
  %1022 = vmatprep.mubr.f32.mxu0 0.0
  %1023 = vmatmul.mubr.f32.gmra.mxu0 %v956
  %v1024 = vpop.f32.mrf.mxu0
  %v1025 = vadd.f32 0.0, %v1024
  %v1026 = vpop.f32.mrf.mxu0
  %1027 = vdwg.mxu0
  %v1029 = vsel %vm866, %v942, 0
  %1031 = vmatprep.subr.mxu0 0.0
  %1032 = vmatpush1.msra.mxu0 0.0
  %1033 = vmatprep.subr.mxu0 0.0
  %1034 = vmatpush1.msra.mxu0 0.0
  %1035 = vmatprep.subr.mxu0 0.0
  %1036 = vmatpush1.msra.mxu0 0.0
  %1037 = vmatprep.subr.mxu0 0.0
  %1038 = vmatpush1.msra.mxu0 0.0
  %1039 = vmatprep.subr.mxu0 0.0
  %1040 = vmatpush1.msra.mxu0 0.0
  %1041 = vmatprep.subr.mxu0 0.0
  %1042 = vmatpush1.msra.mxu0 0.0
  %1043 = vmatprep.subr.mxu0 0.0
  %1044 = vmatpush1.msra.mxu0 0.0
  %1045 = vmatprep.subr.mxu0 0.0
  %1046 = vmatpush1.msra.mxu0 0.0
  %1047 = vmatprep.subr.mxu0 0.0
  %1048 = vmatpush1.msra.mxu0 0.0
  %1049 = vmatprep.subr.mxu0 0.0
  %1050 = vmatpush1.msra.mxu0 0.0
  %1051 = vmatprep.subr.mxu0 0.0
  %1052 = vmatpush1.msra.mxu0 0.0
  %1053 = vmatprep.subr.mxu0 0.0
  %1054 = vmatpush1.msra.mxu0 0.0
  %1055 = vmatprep.subr.mxu0 0.0
  %1056 = vmatpush1.msra.mxu0 0.0
  %1057 = vmatprep.subr.mxu0 0.0
  %1058 = vmatpush1.msra.mxu0 0.0
  %1059 = vmatprep.subr.mxu0 0.0
  %1060 = vmatpush1.msra.mxu0 0.0
  %1061 = vmatprep.subr.mxu0 0.0
  %1062 = vmatpush1.msra.mxu0 %v221
  %1063 = vmatprep.subr.mxu0 0.0
  %1064 = vmatpush2.msra.mxu0 0.0
  %1065 = vmatprep.subr.mxu0 0.0
  %1066 = vmatpush2.msra.mxu0 0.0
  %1067 = vmatprep.subr.mxu0 0.0
  %1068 = vmatpush2.msra.mxu0 0.0
  %1069 = vmatprep.subr.mxu0 0.0
  %1070 = vmatpush2.msra.mxu0 0.0
  %1071 = vmatprep.subr.mxu0 0.0
  %1072 = vmatpush2.msra.mxu0 0.0
  %1073 = vmatprep.subr.mxu0 0.0
  %1074 = vmatpush2.msra.mxu0 0.0
  %1075 = vmatprep.subr.mxu0 0.0
  %1076 = vmatpush2.msra.mxu0 0.0
  %1077 = vmatprep.subr.mxu0 0.0
  %1078 = vmatpush2.msra.mxu0 0.0
  %1079 = vmatprep.subr.mxu0 0.0
  %1080 = vmatpush2.msra.mxu0 0.0
  %1081 = vmatprep.subr.mxu0 0.0
  %1082 = vmatpush2.msra.mxu0 0.0
  %1083 = vmatprep.subr.mxu0 0.0
  %1084 = vmatpush2.msra.mxu0 0.0
  %1085 = vmatprep.subr.mxu0 0.0
  %1086 = vmatpush2.msra.mxu0 0.0
  %1087 = vmatprep.subr.mxu0 0.0
  %1088 = vmatpush2.msra.mxu0 0.0
  %1089 = vmatprep.subr.mxu0 0.0
  %1090 = vmatpush2.msra.mxu0 0.0
  %1091 = vmatprep.subr.mxu0 0.0
  %1092 = vmatpush2.msra.mxu0 0.0
  %1093 = vmatprep.subr.mxu0 0.0
  %1094 = vmatpush2.msra.mxu0 0.0
  %1095 = vmatprep.mubr.f32.mxu0 0.0
  %1096 = vmatmul.mubr.f32.gmra.mxu0 %v1029
  %v1097 = vpop.f32.mrf.mxu0
  %v1098 = vadd.f32 0.0, %v1097
  %v1099 = vpop.f32.mrf.mxu0
  %1100 = vdwg.mxu0
  %v1102 = vsel %vm866, %v944, 0
  %1104 = vmatprep.subr.mxu0 0.0
  %1105 = vmatpush1.msra.mxu0 0.0
  %1106 = vmatprep.subr.mxu0 0.0
  %1107 = vmatpush1.msra.mxu0 0.0
  %1108 = vmatprep.subr.mxu0 0.0
  %1109 = vmatpush1.msra.mxu0 0.0
  %1110 = vmatprep.subr.mxu0 0.0
  %1111 = vmatpush1.msra.mxu0 0.0
  %1112 = vmatprep.subr.mxu0 0.0
  %1113 = vmatpush1.msra.mxu0 0.0
  %1114 = vmatprep.subr.mxu0 0.0
  %1115 = vmatpush1.msra.mxu0 0.0
  %1116 = vmatprep.subr.mxu0 0.0
  %1117 = vmatpush1.msra.mxu0 0.0
  %1118 = vmatprep.subr.mxu0 0.0
  %1119 = vmatpush1.msra.mxu0 0.0
  %1120 = vmatprep.subr.mxu0 0.0
  %1121 = vmatpush1.msra.mxu0 0.0
  %1122 = vmatprep.subr.mxu0 0.0
  %1123 = vmatpush1.msra.mxu0 0.0
  %1124 = vmatprep.subr.mxu0 0.0
  %1125 = vmatpush1.msra.mxu0 0.0
  %1126 = vmatprep.subr.mxu0 0.0
  %1127 = vmatpush1.msra.mxu0 0.0
  %1128 = vmatprep.subr.mxu0 0.0
  %1129 = vmatpush1.msra.mxu0 0.0
  %1130 = vmatprep.subr.mxu0 0.0
  %1131 = vmatpush1.msra.mxu0 0.0
  %1132 = vmatprep.subr.mxu0 0.0
  %1133 = vmatpush1.msra.mxu0 0.0
  %1134 = vmatprep.subr.mxu0 0.0
  %1135 = vmatpush1.msra.mxu0 %v224
  %1136 = vmatprep.subr.mxu0 0.0
  %1137 = vmatpush2.msra.mxu0 0.0
  %1138 = vmatprep.subr.mxu0 0.0
  %1139 = vmatpush2.msra.mxu0 0.0
  %1140 = vmatprep.subr.mxu0 0.0
  %1141 = vmatpush2.msra.mxu0 0.0
  %1142 = vmatprep.subr.mxu0 0.0
  %1143 = vmatpush2.msra.mxu0 0.0
  %1144 = vmatprep.subr.mxu0 0.0
  %1145 = vmatpush2.msra.mxu0 0.0
  %1146 = vmatprep.subr.mxu0 0.0
  %1147 = vmatpush2.msra.mxu0 0.0
  %1148 = vmatprep.subr.mxu0 0.0
  %1149 = vmatpush2.msra.mxu0 0.0
  %1150 = vmatprep.subr.mxu0 0.0
  %1151 = vmatpush2.msra.mxu0 0.0
  %1152 = vmatprep.subr.mxu0 0.0
  %1153 = vmatpush2.msra.mxu0 0.0
  %1154 = vmatprep.subr.mxu0 0.0
  %1155 = vmatpush2.msra.mxu0 0.0
  %1156 = vmatprep.subr.mxu0 0.0
  %1157 = vmatpush2.msra.mxu0 0.0
  %1158 = vmatprep.subr.mxu0 0.0
  %1159 = vmatpush2.msra.mxu0 0.0
  %1160 = vmatprep.subr.mxu0 0.0
  %1161 = vmatpush2.msra.mxu0 0.0
  %1162 = vmatprep.subr.mxu0 0.0
  %1163 = vmatpush2.msra.mxu0 0.0
  %1164 = vmatprep.subr.mxu0 0.0
  %1165 = vmatpush2.msra.mxu0 0.0
  %1166 = vmatprep.subr.mxu0 0.0
  %1167 = vmatpush2.msra.mxu0 0.0
  %1168 = vmatprep.mubr.f32.mxu0 0.0
  %1169 = vmatmul.mubr.f32.gmra.mxu0 %v1102
  %v1170 = vpop.f32.mrf.mxu0
  %v1171 = vadd.f32 0.0, %v1170
  %v1172 = vpop.f32.mrf.mxu0
  %1173 = vdwg.mxu0
  %v1175 = vsel %vm866, %v946, 0
  %1177 = vmatprep.subr.mxu0 0.0
  %1178 = vmatpush1.msra.mxu0 0.0
  %1179 = vmatprep.subr.mxu0 0.0
  %1180 = vmatpush1.msra.mxu0 0.0
  %1181 = vmatprep.subr.mxu0 0.0
  %1182 = vmatpush1.msra.mxu0 0.0
  %1183 = vmatprep.subr.mxu0 0.0
  %1184 = vmatpush1.msra.mxu0 0.0
  %1185 = vmatprep.subr.mxu0 0.0
  %1186 = vmatpush1.msra.mxu0 0.0
  %1187 = vmatprep.subr.mxu0 0.0
  %1188 = vmatpush1.msra.mxu0 0.0
  %1189 = vmatprep.subr.mxu0 0.0
  %1190 = vmatpush1.msra.mxu0 0.0
  %1191 = vmatprep.subr.mxu0 0.0
  %1192 = vmatpush1.msra.mxu0 0.0
  %1193 = vmatprep.subr.mxu0 0.0
  %1194 = vmatpush1.msra.mxu0 0.0
  %1195 = vmatprep.subr.mxu0 0.0
  %1196 = vmatpush1.msra.mxu0 0.0
  %1197 = vmatprep.subr.mxu0 0.0
  %1198 = vmatpush1.msra.mxu0 0.0
  %1199 = vmatprep.subr.mxu0 0.0
  %1200 = vmatpush1.msra.mxu0 0.0
  %1201 = vmatprep.subr.mxu0 0.0
  %1202 = vmatpush1.msra.mxu0 0.0
  %1203 = vmatprep.subr.mxu0 0.0
  %1204 = vmatpush1.msra.mxu0 0.0
  %1205 = vmatprep.subr.mxu0 0.0
  %1206 = vmatpush1.msra.mxu0 0.0
  %1207 = vmatprep.subr.mxu0 0.0
  %1208 = vmatpush1.msra.mxu0 %v227
  %1209 = vmatprep.subr.mxu0 0.0
  %1210 = vmatpush2.msra.mxu0 0.0
  %1211 = vmatprep.subr.mxu0 0.0
  %1212 = vmatpush2.msra.mxu0 0.0
  %1213 = vmatprep.subr.mxu0 0.0
  %1214 = vmatpush2.msra.mxu0 0.0
  %1215 = vmatprep.subr.mxu0 0.0
  %1216 = vmatpush2.msra.mxu0 0.0
  %1217 = vmatprep.subr.mxu0 0.0
  %1218 = vmatpush2.msra.mxu0 0.0
  %1219 = vmatprep.subr.mxu0 0.0
  %1220 = vmatpush2.msra.mxu0 0.0
  %1221 = vmatprep.subr.mxu0 0.0
  %1222 = vmatpush2.msra.mxu0 0.0
  %1223 = vmatprep.subr.mxu0 0.0
  %1224 = vmatpush2.msra.mxu0 0.0
  %1225 = vmatprep.subr.mxu0 0.0
  %1226 = vmatpush2.msra.mxu0 0.0
  %1227 = vmatprep.subr.mxu0 0.0
  %1228 = vmatpush2.msra.mxu0 0.0
  %1229 = vmatprep.subr.mxu0 0.0
  %1230 = vmatpush2.msra.mxu0 0.0
  %1231 = vmatprep.subr.mxu0 0.0
  %1232 = vmatpush2.msra.mxu0 0.0
  %1233 = vmatprep.subr.mxu0 0.0
  %1234 = vmatpush2.msra.mxu0 0.0
  %1235 = vmatprep.subr.mxu0 0.0
  %1236 = vmatpush2.msra.mxu0 0.0
  %1237 = vmatprep.subr.mxu0 0.0
  %1238 = vmatpush2.msra.mxu0 0.0
  %1239 = vmatprep.subr.mxu0 0.0
  %1240 = vmatpush2.msra.mxu0 0.0
  %1241 = vmatprep.mubr.f32.mxu0 0.0
  %1242 = vmatmul.mubr.f32.gmra.mxu0 %v1175
  %v1243 = vpop.f32.mrf.mxu0
  %v1244 = vadd.f32 0.0, %v1243
  %v1245 = vpop.f32.mrf.mxu0
  %1246 = vdwg.mxu0
  %v1248 = vsel %vm866, %v948, 0
  %1250 = vmatprep.subr.mxu0 0.0
  %1251 = vmatpush1.msra.mxu0 0.0
  %1252 = vmatprep.subr.mxu0 0.0
  %1253 = vmatpush1.msra.mxu0 0.0
  %1254 = vmatprep.subr.mxu0 0.0
  %1255 = vmatpush1.msra.mxu0 0.0
  %1256 = vmatprep.subr.mxu0 0.0
  %1257 = vmatpush1.msra.mxu0 0.0
  %1258 = vmatprep.subr.mxu0 0.0
  %1259 = vmatpush1.msra.mxu0 0.0
  %1260 = vmatprep.subr.mxu0 0.0
  %1261 = vmatpush1.msra.mxu0 0.0
  %1262 = vmatprep.subr.mxu0 0.0
  %1263 = vmatpush1.msra.mxu0 0.0
  %1264 = vmatprep.subr.mxu0 0.0
  %1265 = vmatpush1.msra.mxu0 0.0
  %1266 = vmatprep.subr.mxu0 0.0
  %1267 = vmatpush1.msra.mxu0 0.0
  %1268 = vmatprep.subr.mxu0 0.0
  %1269 = vmatpush1.msra.mxu0 0.0
  %1270 = vmatprep.subr.mxu0 0.0
  %1271 = vmatpush1.msra.mxu0 0.0
  %1272 = vmatprep.subr.mxu0 0.0
  %1273 = vmatpush1.msra.mxu0 0.0
  %1274 = vmatprep.subr.mxu0 0.0
  %1275 = vmatpush1.msra.mxu0 0.0
  %1276 = vmatprep.subr.mxu0 0.0
  %1277 = vmatpush1.msra.mxu0 0.0
  %1278 = vmatprep.subr.mxu0 0.0
  %1279 = vmatpush1.msra.mxu0 0.0
  %1280 = vmatprep.subr.mxu0 0.0
  %1281 = vmatpush1.msra.mxu0 %v203
  %1282 = vmatprep.subr.mxu0 0.0
  %1283 = vmatpush2.msra.mxu0 0.0
  %1284 = vmatprep.subr.mxu0 0.0
  %1285 = vmatpush2.msra.mxu0 0.0
  %1286 = vmatprep.subr.mxu0 0.0
  %1287 = vmatpush2.msra.mxu0 0.0
  %1288 = vmatprep.subr.mxu0 0.0
  %1289 = vmatpush2.msra.mxu0 0.0
  %1290 = vmatprep.subr.mxu0 0.0
  %1291 = vmatpush2.msra.mxu0 0.0
  %1292 = vmatprep.subr.mxu0 0.0
  %1293 = vmatpush2.msra.mxu0 0.0
  %1294 = vmatprep.subr.mxu0 0.0
  %1295 = vmatpush2.msra.mxu0 0.0
  %1296 = vmatprep.subr.mxu0 0.0
  %1297 = vmatpush2.msra.mxu0 0.0
  %1298 = vmatprep.subr.mxu0 0.0
  %1299 = vmatpush2.msra.mxu0 0.0
  %1300 = vmatprep.subr.mxu0 0.0
  %1301 = vmatpush2.msra.mxu0 0.0
  %1302 = vmatprep.subr.mxu0 0.0
  %1303 = vmatpush2.msra.mxu0 0.0
  %1304 = vmatprep.subr.mxu0 0.0
  %1305 = vmatpush2.msra.mxu0 0.0
  %1306 = vmatprep.subr.mxu0 0.0
  %1307 = vmatpush2.msra.mxu0 0.0
  %1308 = vmatprep.subr.mxu0 0.0
  %1309 = vmatpush2.msra.mxu0 0.0
  %1310 = vmatprep.subr.mxu0 0.0
  %1311 = vmatpush2.msra.mxu0 0.0
  %1312 = vmatprep.subr.mxu0 0.0
  %1313 = vmatpush2.msra.mxu0 0.0
  %1314 = vmatprep.mubr.f32.mxu0 0.0
  %1315 = vmatmul.mubr.f32.gmra.mxu0 %v1248
  %v1316 = vpop.f32.mrf.mxu0
  %v1317 = vadd.f32 0.0, %v1316
  %v1318 = vpop.f32.mrf.mxu0
  %1319 = vdwg.mxu0
  %v1321 = vsel %vm866, %v950, 0
  %1323 = vmatprep.subr.mxu0 0.0
  %1324 = vmatpush1.msra.mxu0 0.0
  %1325 = vmatprep.subr.mxu0 0.0
  %1326 = vmatpush1.msra.mxu0 0.0
  %1327 = vmatprep.subr.mxu0 0.0
  %1328 = vmatpush1.msra.mxu0 0.0
  %1329 = vmatprep.subr.mxu0 0.0
  %1330 = vmatpush1.msra.mxu0 0.0
  %1331 = vmatprep.subr.mxu0 0.0
  %1332 = vmatpush1.msra.mxu0 0.0
  %1333 = vmatprep.subr.mxu0 0.0
  %1334 = vmatpush1.msra.mxu0 0.0
  %1335 = vmatprep.subr.mxu0 0.0
  %1336 = vmatpush1.msra.mxu0 0.0
  %1337 = vmatprep.subr.mxu0 0.0
  %1338 = vmatpush1.msra.mxu0 0.0
  %1339 = vmatprep.subr.mxu0 0.0
  %1340 = vmatpush1.msra.mxu0 0.0
  %1341 = vmatprep.subr.mxu0 0.0
  %1342 = vmatpush1.msra.mxu0 0.0
  %1343 = vmatprep.subr.mxu0 0.0
  %1344 = vmatpush1.msra.mxu0 0.0
  %1345 = vmatprep.subr.mxu0 0.0
  %1346 = vmatpush1.msra.mxu0 0.0
  %1347 = vmatprep.subr.mxu0 0.0
  %1348 = vmatpush1.msra.mxu0 0.0
  %1349 = vmatprep.subr.mxu0 0.0
  %1350 = vmatpush1.msra.mxu0 0.0
  %1351 = vmatprep.subr.mxu0 0.0
  %1352 = vmatpush1.msra.mxu0 0.0
  %1353 = vmatprep.subr.mxu0 0.0
  %1354 = vmatpush1.msra.mxu0 %v231
  %1355 = vmatprep.subr.mxu0 0.0
  %1356 = vmatpush2.msra.mxu0 0.0
  %1357 = vmatprep.subr.mxu0 0.0
  %1358 = vmatpush2.msra.mxu0 0.0
  %1359 = vmatprep.subr.mxu0 0.0
  %1360 = vmatpush2.msra.mxu0 0.0
  %1361 = vmatprep.subr.mxu0 0.0
  %1362 = vmatpush2.msra.mxu0 0.0
  %1363 = vmatprep.subr.mxu0 0.0
  %1364 = vmatpush2.msra.mxu0 0.0
  %1365 = vmatprep.subr.mxu0 0.0
  %1366 = vmatpush2.msra.mxu0 0.0
  %1367 = vmatprep.subr.mxu0 0.0
  %1368 = vmatpush2.msra.mxu0 0.0
  %1369 = vmatprep.subr.mxu0 0.0
  %1370 = vmatpush2.msra.mxu0 0.0
  %1371 = vmatprep.subr.mxu0 0.0
  %1372 = vmatpush2.msra.mxu0 0.0
  %1373 = vmatprep.subr.mxu0 0.0
  %1374 = vmatpush2.msra.mxu0 0.0
  %1375 = vmatprep.subr.mxu0 0.0
  %1376 = vmatpush2.msra.mxu0 0.0
  %1377 = vmatprep.subr.mxu0 0.0
  %1378 = vmatpush2.msra.mxu0 0.0
  %1379 = vmatprep.subr.mxu0 0.0
  %1380 = vmatpush2.msra.mxu0 0.0
  %1381 = vmatprep.subr.mxu0 0.0
  %1382 = vmatpush2.msra.mxu0 0.0
  %1383 = vmatprep.subr.mxu0 0.0
  %1384 = vmatpush2.msra.mxu0 0.0
  %1385 = vmatprep.subr.mxu0 0.0
  %1386 = vmatpush2.msra.mxu0 0.0
  %1387 = vmatprep.mubr.f32.mxu0 0.0
  %1388 = vmatmul.mubr.f32.gmra.mxu0 %v1321
  %v1389 = vpop.f32.mrf.mxu0
  %v1390 = vadd.f32 0.0, %v1389
  %v1391 = vpop.f32.mrf.mxu0
  %1392 = vdwg.mxu0
  %v1394 = vsel %vm866, %v952, 0
  %1396 = vmatprep.subr.mxu0 0.0
  %1397 = vmatpush1.msra.mxu0 0.0
  %1398 = vmatprep.subr.mxu0 0.0
  %1399 = vmatpush1.msra.mxu0 0.0
  %1400 = vmatprep.subr.mxu0 0.0
  %1401 = vmatpush1.msra.mxu0 0.0
  %1402 = vmatprep.subr.mxu0 0.0
  %1403 = vmatpush1.msra.mxu0 0.0
  %1404 = vmatprep.subr.mxu0 0.0
  %1405 = vmatpush1.msra.mxu0 0.0
  %1406 = vmatprep.subr.mxu0 0.0
  %1407 = vmatpush1.msra.mxu0 0.0
  %1408 = vmatprep.subr.mxu0 0.0
  %1409 = vmatpush1.msra.mxu0 0.0
  %1410 = vmatprep.subr.mxu0 0.0
  %1411 = vmatpush1.msra.mxu0 0.0
  %1412 = vmatprep.subr.mxu0 0.0
  %1413 = vmatpush1.msra.mxu0 0.0
  %1414 = vmatprep.subr.mxu0 0.0
  %1415 = vmatpush1.msra.mxu0 0.0
  %1416 = vmatprep.subr.mxu0 0.0
  %1417 = vmatpush1.msra.mxu0 0.0
  %1418 = vmatprep.subr.mxu0 0.0
  %1419 = vmatpush1.msra.mxu0 0.0
  %1420 = vmatprep.subr.mxu0 0.0
  %1421 = vmatpush1.msra.mxu0 0.0
  %1422 = vmatprep.subr.mxu0 0.0
  %1423 = vmatpush1.msra.mxu0 0.0
  %1424 = vmatprep.subr.mxu0 0.0
  %1425 = vmatpush1.msra.mxu0 0.0
  %1426 = vmatprep.subr.mxu0 0.0
  %1427 = vmatpush1.msra.mxu0 %v234
  %1428 = vmatprep.subr.mxu0 0.0
  %1429 = vmatpush2.msra.mxu0 0.0
  %1430 = vmatprep.subr.mxu0 0.0
  %1431 = vmatpush2.msra.mxu0 0.0
  %1432 = vmatprep.subr.mxu0 0.0
  %1433 = vmatpush2.msra.mxu0 0.0
  %1434 = vmatprep.subr.mxu0 0.0
  %1435 = vmatpush2.msra.mxu0 0.0
  %1436 = vmatprep.subr.mxu0 0.0
  %1437 = vmatpush2.msra.mxu0 0.0
  %1438 = vmatprep.subr.mxu0 0.0
  %1439 = vmatpush2.msra.mxu0 0.0
  %1440 = vmatprep.subr.mxu0 0.0
  %1441 = vmatpush2.msra.mxu0 0.0
  %1442 = vmatprep.subr.mxu0 0.0
  %1443 = vmatpush2.msra.mxu0 0.0
  %1444 = vmatprep.subr.mxu0 0.0
  %1445 = vmatpush2.msra.mxu0 0.0
  %1446 = vmatprep.subr.mxu0 0.0
  %1447 = vmatpush2.msra.mxu0 0.0
  %1448 = vmatprep.subr.mxu0 0.0
  %1449 = vmatpush2.msra.mxu0 0.0
  %1450 = vmatprep.subr.mxu0 0.0
  %1451 = vmatpush2.msra.mxu0 0.0
  %1452 = vmatprep.subr.mxu0 0.0
  %1453 = vmatpush2.msra.mxu0 0.0
  %1454 = vmatprep.subr.mxu0 0.0
  %1455 = vmatpush2.msra.mxu0 0.0
  %1456 = vmatprep.subr.mxu0 0.0
  %1457 = vmatpush2.msra.mxu0 0.0
  %1458 = vmatprep.subr.mxu0 0.0
  %1459 = vmatpush2.msra.mxu0 0.0
  %1460 = vmatprep.mubr.f32.mxu0 0.0
  %1461 = vmatmul.mubr.f32.gmra.mxu0 %v1394
  %v1462 = vpop.f32.mrf.mxu0
  %v1463 = vadd.f32 0.0, %v1462
  %v1464 = vpop.f32.mrf.mxu0
  %1465 = vdwg.mxu0
  %v1467 = vsel %vm866, %v954, 0
  %1469 = vmatprep.subr.mxu0 0.0
  %1470 = vmatpush1.msra.mxu0 0.0
  %1471 = vmatprep.subr.mxu0 0.0
  %1472 = vmatpush1.msra.mxu0 0.0
  %1473 = vmatprep.subr.mxu0 0.0
  %1474 = vmatpush1.msra.mxu0 0.0
  %1475 = vmatprep.subr.mxu0 0.0
  %1476 = vmatpush1.msra.mxu0 0.0
  %1477 = vmatprep.subr.mxu0 0.0
  %1478 = vmatpush1.msra.mxu0 0.0
  %1479 = vmatprep.subr.mxu0 0.0
  %1480 = vmatpush1.msra.mxu0 0.0
  %1481 = vmatprep.subr.mxu0 0.0
  %1482 = vmatpush1.msra.mxu0 0.0
  %1483 = vmatprep.subr.mxu0 0.0
  %1484 = vmatpush1.msra.mxu0 0.0
  %1485 = vmatprep.subr.mxu0 0.0
  %1486 = vmatpush1.msra.mxu0 0.0
  %1487 = vmatprep.subr.mxu0 0.0
  %1488 = vmatpush1.msra.mxu0 0.0
  %1489 = vmatprep.subr.mxu0 0.0
  %1490 = vmatpush1.msra.mxu0 0.0
  %1491 = vmatprep.subr.mxu0 0.0
  %1492 = vmatpush1.msra.mxu0 0.0
  %1493 = vmatprep.subr.mxu0 0.0
  %1494 = vmatpush1.msra.mxu0 0.0
  %1495 = vmatprep.subr.mxu0 0.0
  %1496 = vmatpush1.msra.mxu0 0.0
  %1497 = vmatprep.subr.mxu0 0.0
  %1498 = vmatpush1.msra.mxu0 0.0
  %1499 = vmatprep.subr.mxu0 0.0
  %1500 = vmatpush1.msra.mxu0 %v237
  %1501 = vmatprep.subr.mxu0 0.0
  %1502 = vmatpush2.msra.mxu0 0.0
  %1503 = vmatprep.subr.mxu0 0.0
  %1504 = vmatpush2.msra.mxu0 0.0
  %1505 = vmatprep.subr.mxu0 0.0
  %1506 = vmatpush2.msra.mxu0 0.0
  %1507 = vmatprep.subr.mxu0 0.0
  %1508 = vmatpush2.msra.mxu0 0.0
  %1509 = vmatprep.subr.mxu0 0.0
  %1510 = vmatpush2.msra.mxu0 0.0
  %1511 = vmatprep.subr.mxu0 0.0
  %1512 = vmatpush2.msra.mxu0 0.0
  %1513 = vmatprep.subr.mxu0 0.0
  %1514 = vmatpush2.msra.mxu0 0.0
  %1515 = vmatprep.subr.mxu0 0.0
  %1516 = vmatpush2.msra.mxu0 0.0
  %1517 = vmatprep.subr.mxu0 0.0
  %1518 = vmatpush2.msra.mxu0 0.0
  %1519 = vmatprep.subr.mxu0 0.0
  %1520 = vmatpush2.msra.mxu0 0.0
  %1521 = vmatprep.subr.mxu0 0.0
  %1522 = vmatpush2.msra.mxu0 0.0
  %1523 = vmatprep.subr.mxu0 0.0
  %1524 = vmatpush2.msra.mxu0 0.0
  %1525 = vmatprep.subr.mxu0 0.0
  %1526 = vmatpush2.msra.mxu0 0.0
  %1527 = vmatprep.subr.mxu0 0.0
  %1528 = vmatpush2.msra.mxu0 0.0
  %1529 = vmatprep.subr.mxu0 0.0
  %1530 = vmatpush2.msra.mxu0 0.0
  %1531 = vmatprep.subr.mxu0 0.0
  %1532 = vmatpush2.msra.mxu0 0.0
  %1533 = vmatprep.mubr.f32.mxu0 0.0
  %1534 = vmatmul.mubr.f32.gmra.mxu0 %v1467
  %v1535 = vpop.f32.mrf.mxu0
  %v1536 = vadd.f32 0.0, %v1535
  %v1537 = vpop.f32.mrf.mxu0
  %1538 = vdwg.mxu0
  %1540 = vrot.lane.b32.xlu0 %v1098, 16
  %v1541 = vpop.permute.xlu0 %1540
  %1544 = vrot.lane.b32.xlu0 %v1171, 32
  %v1545 = vpop.permute.xlu0 %1544
  %1548 = vrot.lane.b32.xlu0 %v1244, 48
  %v1549 = vpop.permute.xlu0 %1548
  %v1551 = vsel %vm241, %v1025, %v1541
  %vm1552 = vcmask 261120
  %v1553 = vsel %vm1552, %v1551, %v1545
  %vm1554 = vcmask 392192
  %v1555 = vsel %vm1554, %v1553, %v1549
  %1557 = vrot.lane.b32.xlu0 %v1390, 16
  %v1558 = vpop.permute.xlu0 %1557
  %1561 = vrot.lane.b32.xlu0 %v1463, 32
  %v1562 = vpop.permute.xlu0 %1561
  %1565 = vrot.lane.b32.xlu0 %v1536, 48
  %v1566 = vpop.permute.xlu0 %1565
  %v1568 = vsel %vm241, %v1317, %v1558
  %v1569 = vsel %vm1552, %v1568, %v1562
  %v1570 = vsel %vm1554, %v1569, %v1566
  %v1571 = vld [vmem:[%s4] sm:$0xff]
  %v1572 = vld [vmem:[%s4 + $0x8] sm:$0xff]
  %v1573 = vld [vmem:[%s4 + $0x10] sm:$0xff]
  %v1574 = vld [vmem:[%s4 + $0x18] sm:$0xff]
  %v1575 = vld [vmem:[%s4 + $0x20] sm:$0xff]
  %v1576 = vld [vmem:[%s4 + $0x28] sm:$0xff]
  %v1577 = vld [vmem:[%s4 + $0x30] sm:$0xff]
  %v1578 = vld [vmem:[%s4 + $0x38] sm:$0xff]
  %v1579 = vld [vmem:[%s5] sm:$0x1]
  %v1581 = vlaneseq
  %v1582 = vshrl.u32 %v1581, 7
  %v1583 = vsub.s32 0, %v1582
  %v1584 = vrot.slane %v1579, %v1583
  %v1587 = vsel %vm62, %v1555, 0
  %v1590 = vsel %vm62, %v1570, 0
  %1592 = vmatprep.subr.mxu0 0.0
  %1593 = vmatpush1.msra.mxu0 0.0
  %1594 = vmatprep.subr.mxu0 0.0
  %1595 = vmatpush1.msra.mxu0 0.0
  %1596 = vmatprep.subr.mxu0 0.0
  %1597 = vmatpush1.msra.mxu0 0.0
  %1598 = vmatprep.subr.mxu0 0.0
  %1599 = vmatpush1.msra.mxu0 0.0
  %1600 = vmatprep.subr.mxu0 0.0
  %1601 = vmatpush1.msra.mxu0 0.0
  %1602 = vmatprep.subr.mxu0 0.0
  %1603 = vmatpush1.msra.mxu0 0.0
  %1604 = vmatprep.subr.mxu0 0.0
  %1605 = vmatpush1.msra.mxu0 0.0
  %1606 = vmatprep.subr.mxu0 0.0
  %1607 = vmatpush1.msra.mxu0 0.0
  %1608 = vmatprep.subr.mxu0 0.0
  %1609 = vmatpush1.msra.mxu0 %v1578
  %1610 = vmatprep.subr.mxu0 0.0
  %1611 = vmatpush1.msra.mxu0 %v1577
  %1612 = vmatprep.subr.mxu0 0.0
  %1613 = vmatpush1.msra.mxu0 %v1576
  %1614 = vmatprep.subr.mxu0 0.0
  %1615 = vmatpush1.msra.mxu0 %v1575
  %1616 = vmatprep.subr.mxu0 0.0
  %1617 = vmatpush1.msra.mxu0 %v1574
  %1618 = vmatprep.subr.mxu0 0.0
  %1619 = vmatpush1.msra.mxu0 %v1573
  %1620 = vmatprep.subr.mxu0 0.0
  %1621 = vmatpush1.msra.mxu0 %v1572
  %1622 = vmatprep.subr.mxu0 0.0
  %1623 = vmatpush1.msra.mxu0 %v1571
  %1624 = vmatprep.subr.mxu0 0.0
  %1625 = vmatpush2.msra.mxu0 0.0
  %1626 = vmatprep.subr.mxu0 0.0
  %1627 = vmatpush2.msra.mxu0 0.0
  %1628 = vmatprep.subr.mxu0 0.0
  %1629 = vmatpush2.msra.mxu0 0.0
  %1630 = vmatprep.subr.mxu0 0.0
  %1631 = vmatpush2.msra.mxu0 0.0
  %1632 = vmatprep.subr.mxu0 0.0
  %1633 = vmatpush2.msra.mxu0 0.0
  %1634 = vmatprep.subr.mxu0 0.0
  %1635 = vmatpush2.msra.mxu0 0.0
  %1636 = vmatprep.subr.mxu0 0.0
  %1637 = vmatpush2.msra.mxu0 0.0
  %1638 = vmatprep.subr.mxu0 0.0
  %1639 = vmatpush2.msra.mxu0 0.0
  %1640 = vmatprep.subr.mxu0 0.0
  %1641 = vmatpush2.msra.mxu0 0.0
  %1642 = vmatprep.subr.mxu0 0.0
  %1643 = vmatpush2.msra.mxu0 0.0
  %1644 = vmatprep.subr.mxu0 0.0
  %1645 = vmatpush2.msra.mxu0 0.0
  %1646 = vmatprep.subr.mxu0 0.0
  %1647 = vmatpush2.msra.mxu0 0.0
  %1648 = vmatprep.subr.mxu0 0.0
  %1649 = vmatpush2.msra.mxu0 0.0
  %1650 = vmatprep.subr.mxu0 0.0
  %1651 = vmatpush2.msra.mxu0 0.0
  %1652 = vmatprep.subr.mxu0 0.0
  %1653 = vmatpush2.msra.mxu0 0.0
  %1654 = vmatprep.subr.mxu0 0.0
  %1655 = vmatpush2.msra.mxu0 0.0
  %1656 = vmatprep.mubr.f32.mxu0 0.0
  %1657 = vmatmul.mubr.f32.gmra.mxu0 %v1587
  %v1658 = vpop.f32.mrf.mxu0
  %v1659 = vadd.f32 %v1584, %v1658
  %v1660 = vpop.f32.mrf.mxu0
  %1661 = vmatprep.mubr.f32.mxu0 0.0
  %1662 = vmatmul.mubr.f32.gmra.mxu0 %v1590
  %v1663 = vpop.f32.mrf.mxu0
  %v1664 = vadd.f32 %v1584, %v1663
  %v1665 = vpop.f32.mrf.mxu0
  %1666 = vdwg.mxu0
  %v1667 = vadd.f32 %v53, %v1659
  %v1668 = vadd.f32 %v54, %v1664
  %v1669 = vld [vmem:[%s6] sm:$0x1]
  %v1670 = vld [vmem:[%s7] sm:$0x1]
  %v1671 = vsel %vm62, %v1667, 0.0
  %1672 = vadd.xlane.f32.xlu0 %v1671
  %v1673 = vpop.xlane.xlu0 %1672
  %v1674 = vsel %vm62, %v1668, 0.0
  %1675 = vadd.xlane.f32.xlu0 %v1674
  %v1676 = vpop.xlane.xlu0 %1675
  %v1677 = vmul.f32 %v1673, %v69
  %v1678 = vmul.f32 %v1676, %v69
  %v1679 = vsub.f32 %v1667, %v1677
  %v1680 = vsub.f32 %v1668, %v1678
  %v1681 = vmul.f32 %v1679, %v1679
  %v1682 = vmul.f32 %v1680, %v1680
  %v1683 = vsel %vm62, %v1681, 0.0
  %1684 = vadd.xlane.f32.xlu0 %v1683
  %v1685 = vpop.xlane.xlu0 %1684
  %v1686 = vsel %vm62, %v1682, 0.0
  %1687 = vadd.xlane.f32.xlu0 %v1686
  %v1688 = vpop.xlane.xlu0 %1687
  %v1689 = vmul.f32 %v1685, %v69
  %v1690 = vmul.f32 %v1688, %v69
  %v1691 = vadd.f32 %v1689, 1e-05
  %v1692 = vadd.f32 %v1690, 1e-05
  %v1693 = vrsqrt.pop %v1691
  %v1694 = vrsqrt.pop %v1692
  %v1695 = vmul.f32 %v1679, %v1693
  %v1696 = vmul.f32 %v1680, %v1694
  %v1698 = vlaneseq
  %v1699 = vshrl.u32 %v1698, 7
  %v1700 = vsub.s32 0, %v1699
  %v1701 = vrot.slane %v1669, %v1700
  %v1703 = vmul.f32 %v1695, %v1701
  %v1704 = vmul.f32 %v1696, %v1701
  %v1706 = vlaneseq
  %v1707 = vshrl.u32 %v1706, 7
  %v1708 = vsub.s32 0, %v1707
  %v1709 = vrot.slane %v1670, %v1708
  %v1711 = vadd.f32 %v1703, %v1709
  %v1712 = vadd.f32 %v1704, %v1709
  %v1713 = vld [vmem:[%s8] sm:$0xff]
  %v1714 = vld [vmem:[%s8 + $0x8] sm:$0xff]
  %v1715 = vld [vmem:[%s8 + $0x10] sm:$0xff]
  %v1716 = vld [vmem:[%s8 + $0x18] sm:$0xff]
  %v1717 = vld [vmem:[%s8 + $0x20] sm:$0xff]
  %v1718 = vld [vmem:[%s8 + $0x28] sm:$0xff]
  %v1719 = vld [vmem:[%s8 + $0x30] sm:$0xff]
  %v1720 = vld [vmem:[%s8 + $0x38] sm:$0xff]
  %v1721 = vld [vmem:[%s8 + $0x40] sm:$0xff]
  %v1722 = vld [vmem:[%s8 + $0x48] sm:$0xff]
  %v1723 = vld [vmem:[%s8 + $0x50] sm:$0xff]
  %v1724 = vld [vmem:[%s8 + $0x58] sm:$0xff]
  %v1725 = vld [vmem:[%s8 + $0x60] sm:$0xff]
  %v1726 = vld [vmem:[%s8 + $0x68] sm:$0xff]
  %v1727 = vld [vmem:[%s8 + $0x70] sm:$0xff]
  %v1728 = vld [vmem:[%s8 + $0x78] sm:$0xff]
  %v1729 = vld [vmem:[%s9] sm:$0x3]
  %v1731 = vlaneseq
  %v1732 = vshrl.u32 %v1731, 7
  %v1733 = vsub.s32 0, %v1732
  %v1734 = vrot.slane %v1729, %v1733
  %v1735 = vlaneseq
  %v1736 = vshrl.u32 %v1735, 7
  %v1737 = vsub.s32 1, %v1736
  %v1738 = vrot.slane %v1729, %v1737
  %v1742 = vsel %vm62, %v1711, 0
  %v1745 = vsel %vm62, %v1712, 0
  %1747 = vmatprep.subr.mxu0 0.0
  %1748 = vmatpush1.msra.mxu0 0.0
  %1749 = vmatprep.subr.mxu0 0.0
  %1750 = vmatpush1.msra.mxu0 0.0
  %1751 = vmatprep.subr.mxu0 0.0
  %1752 = vmatpush1.msra.mxu0 0.0
  %1753 = vmatprep.subr.mxu0 0.0
  %1754 = vmatpush1.msra.mxu0 0.0
  %1755 = vmatprep.subr.mxu0 0.0
  %1756 = vmatpush1.msra.mxu0 0.0
  %1757 = vmatprep.subr.mxu0 0.0
  %1758 = vmatpush1.msra.mxu0 0.0
  %1759 = vmatprep.subr.mxu0 0.0
  %1760 = vmatpush1.msra.mxu0 0.0
  %1761 = vmatprep.subr.mxu0 0.0
  %1762 = vmatpush1.msra.mxu0 0.0
  %1763 = vmatprep.subr.mxu0 %v1728
  %1764 = vmatpush1.msra.mxu0 %v1727
  %1765 = vmatprep.subr.mxu0 %v1726
  %1766 = vmatpush1.msra.mxu0 %v1725
  %1767 = vmatprep.subr.mxu0 %v1724
  %1768 = vmatpush1.msra.mxu0 %v1723
  %1769 = vmatprep.subr.mxu0 %v1722
  %1770 = vmatpush1.msra.mxu0 %v1721
  %1771 = vmatprep.subr.mxu0 %v1720
  %1772 = vmatpush1.msra.mxu0 %v1719
  %1773 = vmatprep.subr.mxu0 %v1718
  %1774 = vmatpush1.msra.mxu0 %v1717
  %1775 = vmatprep.subr.mxu0 %v1716
  %1776 = vmatpush1.msra.mxu0 %v1715
  %1777 = vmatprep.subr.mxu0 %v1714
  %1778 = vmatpush1.msra.mxu0 %v1713
  %1779 = vmatprep.subr.mxu0 0.0
  %1780 = vmatpush2.msra.mxu0 0.0
  %1781 = vmatprep.subr.mxu0 0.0
  %1782 = vmatpush2.msra.mxu0 0.0
  %1783 = vmatprep.subr.mxu0 0.0
  %1784 = vmatpush2.msra.mxu0 0.0
  %1785 = vmatprep.subr.mxu0 0.0
  %1786 = vmatpush2.msra.mxu0 0.0
  %1787 = vmatprep.subr.mxu0 0.0
  %1788 = vmatpush2.msra.mxu0 0.0
  %1789 = vmatprep.subr.mxu0 0.0
  %1790 = vmatpush2.msra.mxu0 0.0
  %1791 = vmatprep.subr.mxu0 0.0
  %1792 = vmatpush2.msra.mxu0 0.0
  %1793 = vmatprep.subr.mxu0 0.0
  %1794 = vmatpush2.msra.mxu0 0.0
  %1795 = vmatprep.subr.mxu0 0.0
  %1796 = vmatpush2.msra.mxu0 0.0
  %1797 = vmatprep.subr.mxu0 0.0
  %1798 = vmatpush2.msra.mxu0 0.0
  %1799 = vmatprep.subr.mxu0 0.0
  %1800 = vmatpush2.msra.mxu0 0.0
  %1801 = vmatprep.subr.mxu0 0.0
  %1802 = vmatpush2.msra.mxu0 0.0
  %1803 = vmatprep.subr.mxu0 0.0
  %1804 = vmatpush2.msra.mxu0 0.0
  %1805 = vmatprep.subr.mxu0 0.0
  %1806 = vmatpush2.msra.mxu0 0.0
  %1807 = vmatprep.subr.mxu0 0.0
  %1808 = vmatpush2.msra.mxu0 0.0
  %1809 = vmatprep.subr.mxu0 0.0
  %1810 = vmatpush2.msra.mxu0 0.0
  %1811 = vmatprep.mubr.f32.mxu0 0.0
  %1812 = vmatmul.mubr.f32.gmra.mxu0 %v1742
  %v1813 = vpop.f32.mrf.mxu0
  %v1814 = vadd.f32 %v1734, %v1813
  %v1815 = vpop.f32.mrf.mxu0
  %v1816 = vadd.f32 %v1738, %v1815
  %1817 = vmatprep.mubr.f32.mxu0 0.0
  %1818 = vmatmul.mubr.f32.gmra.mxu0 %v1745
  %v1819 = vpop.f32.mrf.mxu0
  %v1820 = vadd.f32 %v1734, %v1819
  %v1821 = vpop.f32.mrf.mxu0
  %v1822 = vadd.f32 %v1738, %v1821
  %1823 = vdwg.mxu0
  %v1824 = vmax.f32 %v1814, 0.0
  %v1825 = vmax.f32 %v1816, 0.0
  %v1826 = vmax.f32 %v1820, 0.0
  %v1827 = vmax.f32 %v1822, 0.0
  %v1828 = vld [vmem:[%s10] sm:$0xff]
  %v1829 = vld [vmem:[%s10 + $0x8] sm:$0xff]
  %v1830 = vld [vmem:[%s10 + $0x10] sm:$0xff]
  %v1831 = vld [vmem:[%s10 + $0x18] sm:$0xff]
  %v1832 = vld [vmem:[%s10 + $0x20] sm:$0xff]
  %v1833 = vld [vmem:[%s10 + $0x28] sm:$0xff]
  %v1834 = vld [vmem:[%s10 + $0x30] sm:$0xff]
  %v1835 = vld [vmem:[%s10 + $0x38] sm:$0xff]
  %v1836 = vld [vmem:[%s10 + $0x40] sm:$0xff]
  %v1837 = vld [vmem:[%s10 + $0x48] sm:$0xff]
  %v1838 = vld [vmem:[%s10 + $0x50] sm:$0xff]
  %v1839 = vld [vmem:[%s10 + $0x58] sm:$0xff]
  %v1840 = vld [vmem:[%s10 + $0x60] sm:$0xff]
  %v1841 = vld [vmem:[%s10 + $0x68] sm:$0xff]
  %v1842 = vld [vmem:[%s10 + $0x70] sm:$0xff]
  %v1843 = vld [vmem:[%s10 + $0x78] sm:$0xff]
  %v1844 = vld [vmem:[%s10 + $0x80] sm:$0xff]
  %v1845 = vld [vmem:[%s10 + $0x88] sm:$0xff]
  %v1846 = vld [vmem:[%s10 + $0x90] sm:$0xff]
  %v1847 = vld [vmem:[%s10 + $0x98] sm:$0xff]
  %v1848 = vld [vmem:[%s10 + $0xa0] sm:$0xff]
  %v1849 = vld [vmem:[%s10 + $0xa8] sm:$0xff]
  %v1850 = vld [vmem:[%s10 + $0xb0] sm:$0xff]
  %v1851 = vld [vmem:[%s10 + $0xb8] sm:$0xff]
  %v1852 = vld [vmem:[%s10 + $0xc0] sm:$0xff]
  %v1853 = vld [vmem:[%s10 + $0xc8] sm:$0xff]
  %v1854 = vld [vmem:[%s10 + $0xd0] sm:$0xff]
  %v1855 = vld [vmem:[%s10 + $0xd8] sm:$0xff]
  %v1856 = vld [vmem:[%s10 + $0xe0] sm:$0xff]
  %v1857 = vld [vmem:[%s10 + $0xe8] sm:$0xff]
  %v1858 = vld [vmem:[%s10 + $0xf0] sm:$0xff]
  %v1859 = vld [vmem:[%s10 + $0xf8] sm:$0xff]
  %v1860 = vld [vmem:[%s11] sm:$0x1]
  %v1862 = vlaneseq
  %v1863 = vshrl.u32 %v1862, 7
  %v1864 = vsub.s32 0, %v1863
  %v1865 = vrot.slane %v1860, %v1864
  %1867 = vmatprep.subr.mxu0 0.0
  %1868 = vmatpush1.msra.mxu0 %v1843
  %1869 = vmatprep.subr.mxu0 0.0
  %1870 = vmatpush1.msra.mxu0 %v1842
  %1871 = vmatprep.subr.mxu0 0.0
  %1872 = vmatpush1.msra.mxu0 %v1841
  %1873 = vmatprep.subr.mxu0 0.0
  %1874 = vmatpush1.msra.mxu0 %v1840
  %1875 = vmatprep.subr.mxu0 0.0
  %1876 = vmatpush1.msra.mxu0 %v1839
  %1877 = vmatprep.subr.mxu0 0.0
  %1878 = vmatpush1.msra.mxu0 %v1838
  %1879 = vmatprep.subr.mxu0 0.0
  %1880 = vmatpush1.msra.mxu0 %v1837
  %1881 = vmatprep.subr.mxu0 0.0
  %1882 = vmatpush1.msra.mxu0 %v1836
  %1883 = vmatprep.subr.mxu0 0.0
  %1884 = vmatpush1.msra.mxu0 %v1835
  %1885 = vmatprep.subr.mxu0 0.0
  %1886 = vmatpush1.msra.mxu0 %v1834
  %1887 = vmatprep.subr.mxu0 0.0
  %1888 = vmatpush1.msra.mxu0 %v1833
  %1889 = vmatprep.subr.mxu0 0.0
  %1890 = vmatpush1.msra.mxu0 %v1832
  %1891 = vmatprep.subr.mxu0 0.0
  %1892 = vmatpush1.msra.mxu0 %v1831
  %1893 = vmatprep.subr.mxu0 0.0
  %1894 = vmatpush1.msra.mxu0 %v1830
  %1895 = vmatprep.subr.mxu0 0.0
  %1896 = vmatpush1.msra.mxu0 %v1829
  %1897 = vmatprep.subr.mxu0 0.0
  %1898 = vmatpush1.msra.mxu0 %v1828
  %1899 = vmatprep.subr.mxu0 0.0
  %1900 = vmatpush2.msra.mxu0 %v1859
  %1901 = vmatprep.subr.mxu0 0.0
  %1902 = vmatpush2.msra.mxu0 %v1858
  %1903 = vmatprep.subr.mxu0 0.0
  %1904 = vmatpush2.msra.mxu0 %v1857
  %1905 = vmatprep.subr.mxu0 0.0
  %1906 = vmatpush2.msra.mxu0 %v1856
  %1907 = vmatprep.subr.mxu0 0.0
  %1908 = vmatpush2.msra.mxu0 %v1855
  %1909 = vmatprep.subr.mxu0 0.0
  %1910 = vmatpush2.msra.mxu0 %v1854
  %1911 = vmatprep.subr.mxu0 0.0
  %1912 = vmatpush2.msra.mxu0 %v1853
  %1913 = vmatprep.subr.mxu0 0.0
  %1914 = vmatpush2.msra.mxu0 %v1852
  %1915 = vmatprep.subr.mxu0 0.0
  %1916 = vmatpush2.msra.mxu0 %v1851
  %1917 = vmatprep.subr.mxu0 0.0
  %1918 = vmatpush2.msra.mxu0 %v1850
  %1919 = vmatprep.subr.mxu0 0.0
  %1920 = vmatpush2.msra.mxu0 %v1849
  %1921 = vmatprep.subr.mxu0 0.0
  %1922 = vmatpush2.msra.mxu0 %v1848
  %1923 = vmatprep.subr.mxu0 0.0
  %1924 = vmatpush2.msra.mxu0 %v1847
  %1925 = vmatprep.subr.mxu0 0.0
  %1926 = vmatpush2.msra.mxu0 %v1846
  %1927 = vmatprep.subr.mxu0 0.0
  %1928 = vmatpush2.msra.mxu0 %v1845
  %1929 = vmatprep.subr.mxu0 0.0
  %1930 = vmatpush2.msra.mxu0 %v1844
  %1931 = vmatprep.mubr.f32.mxu0 %v1825
  %1932 = vmatmul.mubr.f32.gmra.mxu0 %v1824
  %v1933 = vpop.f32.mrf.mxu0
  %v1934 = vadd.f32 %v1865, %v1933
  %v1935 = vpop.f32.mrf.mxu0
  %1936 = vmatprep.mubr.f32.mxu0 %v1827
  %1937 = vmatmul.mubr.f32.gmra.mxu0 %v1826
  %v1938 = vpop.f32.mrf.mxu0
  %v1939 = vadd.f32 %v1865, %v1938
  %v1940 = vpop.f32.mrf.mxu0
  %1941 = vdwg.mxu0
  %v1942 = vadd.f32 %v1667, %v1934
  %v1943 = vadd.f32 %v1668, %v1939
  %s1944 = scalar_lea.vmem %s1, 1
  %v1945 = vld [vmem:[%s1944] sm:$0x1]
  %s1946 = scalar_lea.vmem %s2, 1
  %v1947 = vld [vmem:[%s1946] sm:$0x1]
  %v1948 = vsel %vm62, %v1942, 0.0
  %1949 = vadd.xlane.f32.xlu0 %v1948
  %v1950 = vpop.xlane.xlu0 %1949
  %v1951 = vsel %vm62, %v1943, 0.0
  %1952 = vadd.xlane.f32.xlu0 %v1951
  %v1953 = vpop.xlane.xlu0 %1952
  %v1954 = vmul.f32 %v1950, %v69
  %v1955 = vmul.f32 %v1953, %v69
  %v1956 = vsub.f32 %v1942, %v1954
  %v1957 = vsub.f32 %v1943, %v1955
  %v1958 = vmul.f32 %v1956, %v1956
  %v1959 = vmul.f32 %v1957, %v1957
  %v1960 = vsel %vm62, %v1958, 0.0
  %1961 = vadd.xlane.f32.xlu0 %v1960
  %v1962 = vpop.xlane.xlu0 %1961
  %v1963 = vsel %vm62, %v1959, 0.0
  %1964 = vadd.xlane.f32.xlu0 %v1963
  %v1965 = vpop.xlane.xlu0 %1964
  %v1966 = vmul.f32 %v1962, %v69
  %v1967 = vmul.f32 %v1965, %v69
  %v1968 = vadd.f32 %v1966, 1e-05
  %v1969 = vadd.f32 %v1967, 1e-05
  %v1970 = vrsqrt.pop %v1968
  %v1971 = vrsqrt.pop %v1969
  %v1972 = vmul.f32 %v1956, %v1970
  %v1973 = vmul.f32 %v1957, %v1971
  %v1975 = vlaneseq
  %v1976 = vshrl.u32 %v1975, 7
  %v1977 = vsub.s32 0, %v1976
  %v1978 = vrot.slane %v1945, %v1977
  %v1980 = vmul.f32 %v1972, %v1978
  %v1981 = vmul.f32 %v1973, %v1978
  %v1983 = vlaneseq
  %v1984 = vshrl.u32 %v1983, 7
  %v1985 = vsub.s32 0, %v1984
  %v1986 = vrot.slane %v1947, %v1985
  %v1988 = vadd.f32 %v1980, %v1986
  %v1989 = vadd.f32 %v1981, %v1986
  %s1990 = scalar_lea.vmem %s3, 128
  %v1991 = vld [vmem:[%s1990] sm:$0xff]
  %v1992 = vld [vmem:[%s1990 + $0x8] sm:$0xff]
  %v1993 = vld [vmem:[%s1990 + $0x10] sm:$0xff]
  %v1994 = vld [vmem:[%s1990 + $0x18] sm:$0xff]
  %v1995 = vld [vmem:[%s1990 + $0x20] sm:$0xff]
  %v1996 = vld [vmem:[%s1990 + $0x28] sm:$0xff]
  %v1997 = vld [vmem:[%s1990 + $0x30] sm:$0xff]
  %v1998 = vld [vmem:[%s1990 + $0x38] sm:$0xff]
  %v1999 = vld [vmem:[%s1990 + $0x40] sm:$0xff]
  %v2000 = vld [vmem:[%s1990 + $0x48] sm:$0xff]
  %v2001 = vld [vmem:[%s1990 + $0x50] sm:$0xff]
  %v2002 = vld [vmem:[%s1990 + $0x58] sm:$0xff]
  %v2003 = vld [vmem:[%s1990 + $0x60] sm:$0xff]
  %v2004 = vld [vmem:[%s1990 + $0x68] sm:$0xff]
  %v2005 = vld [vmem:[%s1990 + $0x70] sm:$0xff]
  %v2006 = vld [vmem:[%s1990 + $0x78] sm:$0xff]
  %v2008 = vsel %vm62, %v1988, 0
  %v2011 = vsel %vm62, %v1989, 0
  %2013 = vmatprep.subr.mxu0 0.0
  %2014 = vmatpush1.msra.mxu0 0.0
  %2015 = vmatprep.subr.mxu0 0.0
  %2016 = vmatpush1.msra.mxu0 0.0
  %2017 = vmatprep.subr.mxu0 0.0
  %2018 = vmatpush1.msra.mxu0 0.0
  %2019 = vmatprep.subr.mxu0 0.0
  %2020 = vmatpush1.msra.mxu0 0.0
  %2021 = vmatprep.subr.mxu0 0.0
  %2022 = vmatpush1.msra.mxu0 0.0
  %2023 = vmatprep.subr.mxu0 0.0
  %2024 = vmatpush1.msra.mxu0 0.0
  %2025 = vmatprep.subr.mxu0 0.0
  %2026 = vmatpush1.msra.mxu0 0.0
  %2027 = vmatprep.subr.mxu0 0.0
  %2028 = vmatpush1.msra.mxu0 0.0
  %2029 = vmatprep.subr.mxu0 %v2006
  %2030 = vmatpush1.msra.mxu0 %v2005
  %2031 = vmatprep.subr.mxu0 %v2004
  %2032 = vmatpush1.msra.mxu0 %v2003
  %2033 = vmatprep.subr.mxu0 %v2002
  %2034 = vmatpush1.msra.mxu0 %v2001
  %2035 = vmatprep.subr.mxu0 %v2000
  %2036 = vmatpush1.msra.mxu0 %v1999
  %2037 = vmatprep.subr.mxu0 %v1998
  %2038 = vmatpush1.msra.mxu0 %v1997
  %2039 = vmatprep.subr.mxu0 %v1996
  %2040 = vmatpush1.msra.mxu0 %v1995
  %2041 = vmatprep.subr.mxu0 %v1994
  %2042 = vmatpush1.msra.mxu0 %v1993
  %2043 = vmatprep.subr.mxu0 %v1992
  %2044 = vmatpush1.msra.mxu0 %v1991
  %2045 = vmatprep.subr.mxu0 0.0
  %2046 = vmatpush2.msra.mxu0 0.0
  %2047 = vmatprep.subr.mxu0 0.0
  %2048 = vmatpush2.msra.mxu0 0.0
  %2049 = vmatprep.subr.mxu0 0.0
  %2050 = vmatpush2.msra.mxu0 0.0
  %2051 = vmatprep.subr.mxu0 0.0
  %2052 = vmatpush2.msra.mxu0 0.0
  %2053 = vmatprep.subr.mxu0 0.0
  %2054 = vmatpush2.msra.mxu0 0.0
  %2055 = vmatprep.subr.mxu0 0.0
  %2056 = vmatpush2.msra.mxu0 0.0
  %2057 = vmatprep.subr.mxu0 0.0
  %2058 = vmatpush2.msra.mxu0 0.0
  %2059 = vmatprep.subr.mxu0 0.0
  %2060 = vmatpush2.msra.mxu0 0.0
  %2061 = vmatprep.subr.mxu0 0.0
  %2062 = vmatpush2.msra.mxu0 0.0
  %2063 = vmatprep.subr.mxu0 0.0
  %2064 = vmatpush2.msra.mxu0 0.0
  %2065 = vmatprep.subr.mxu0 0.0
  %2066 = vmatpush2.msra.mxu0 0.0
  %2067 = vmatprep.subr.mxu0 0.0
  %2068 = vmatpush2.msra.mxu0 0.0
  %2069 = vmatprep.subr.mxu0 0.0
  %2070 = vmatpush2.msra.mxu0 0.0
  %2071 = vmatprep.subr.mxu0 0.0
  %2072 = vmatpush2.msra.mxu0 0.0
  %2073 = vmatprep.subr.mxu0 0.0
  %2074 = vmatpush2.msra.mxu0 0.0
  %2075 = vmatprep.subr.mxu0 0.0
  %2076 = vmatpush2.msra.mxu0 0.0
  %2077 = vmatprep.mubr.f32.mxu0 0.0
  %2078 = vmatmul.mubr.f32.gmra.mxu0 %v2008
  %v2079 = vpop.f32.mrf.mxu0
  %v2080 = vadd.f32 0.0, %v2079
  %v2081 = vpop.f32.mrf.mxu0
  %v2082 = vadd.f32 0.0, %v2081
  %2083 = vmatprep.mubr.f32.mxu0 0.0
  %2084 = vmatmul.mubr.f32.gmra.mxu0 %v2011
  %v2085 = vpop.f32.mrf.mxu0
  %v2086 = vadd.f32 0.0, %v2085
  %v2087 = vpop.f32.mrf.mxu0
  %v2088 = vadd.f32 0.0, %v2087
  %2089 = vdwg.mxu0
  %2091 = vrot.lane.b32.xlu0 %v2080, 112
  %v2092 = vpop.permute.xlu0 %2091
  %2093 = vrot.lane.b32.xlu0 %v2080, 96
  %v2094 = vpop.permute.xlu0 %2093
  %2095 = vrot.lane.b32.xlu0 %v2080, 80
  %v2096 = vpop.permute.xlu0 %2095
  %2098 = vrot.lane.b32.xlu0 %v2086, 112
  %v2099 = vpop.permute.xlu0 %2098
  %2100 = vrot.lane.b32.xlu0 %v2086, 96
  %v2101 = vpop.permute.xlu0 %2100
  %2102 = vrot.lane.b32.xlu0 %v2086, 80
  %v2103 = vpop.permute.xlu0 %2102
  %2105 = vrot.lane.b32.xlu0 %v2082, 112
  %v2106 = vpop.permute.xlu0 %2105
  %2108 = vrot.lane.b32.xlu0 %v2082, 96
  %v2109 = vpop.permute.xlu0 %2108
  %2111 = vrot.lane.b32.xlu0 %v2082, 80
  %v2112 = vpop.permute.xlu0 %2111
  %2115 = vrot.lane.b32.xlu0 %v2088, 112
  %v2116 = vpop.permute.xlu0 %2115
  %2118 = vrot.lane.b32.xlu0 %v2088, 96
  %v2119 = vpop.permute.xlu0 %2118
  %2121 = vrot.lane.b32.xlu0 %v2088, 80
  %v2122 = vpop.permute.xlu0 %2121
  %2124 = vrot.lane.b32.xlu0 %v2080, 64
  %v2125 = vpop.permute.xlu0 %2124
  %v2126 = vsel %vm241, %v2080, 0
  %v2128 = vsel %vm241, %v2125, 0
  %2130 = vmatprep.subr.mxu0 0.0
  %2131 = vmatpush1.xpose.msra.mxu0 0.0
  %2132 = vmatprep.subr.mxu0 0.0
  %2133 = vmatpush1.xpose.msra.mxu0 0.0
  %2134 = vmatprep.subr.mxu0 0.0
  %2135 = vmatpush1.xpose.msra.mxu0 0.0
  %2136 = vmatprep.subr.mxu0 0.0
  %2137 = vmatpush1.xpose.msra.mxu0 0.0
  %2138 = vmatprep.subr.mxu0 0.0
  %2139 = vmatpush1.xpose.msra.mxu0 0.0
  %2140 = vmatprep.subr.mxu0 0.0
  %2141 = vmatpush1.xpose.msra.mxu0 0.0
  %2142 = vmatprep.subr.mxu0 0.0
  %2143 = vmatpush1.xpose.msra.mxu0 0.0
  %2144 = vmatprep.subr.mxu0 0.0
  %2145 = vmatpush1.xpose.msra.mxu0 0.0
  %2146 = vmatprep.subr.mxu0 0.0
  %2147 = vmatpush1.xpose.msra.mxu0 0.0
  %2148 = vmatprep.subr.mxu0 0.0
  %2149 = vmatpush1.xpose.msra.mxu0 0.0
  %2150 = vmatprep.subr.mxu0 0.0
  %2151 = vmatpush1.xpose.msra.mxu0 0.0
  %2152 = vmatprep.subr.mxu0 0.0
  %2153 = vmatpush1.xpose.msra.mxu0 0.0
  %2154 = vmatprep.subr.mxu0 0.0
  %2155 = vmatpush1.xpose.msra.mxu0 0.0
  %2156 = vmatprep.subr.mxu0 0.0
  %2157 = vmatpush1.xpose.msra.mxu0 0.0
  %2158 = vmatprep.subr.mxu0 0.0
  %2159 = vmatpush1.xpose.msra.mxu0 0.0
  %2160 = vmatprep.subr.mxu0 0.0
  %2161 = vmatpush1.xpose.msra.mxu0 %v2128
  %2162 = vmatprep.subr.mxu0 0.0
  %2163 = vmatpush2.xpose.msra.mxu0 0.0
  %2164 = vmatprep.subr.mxu0 0.0
  %2165 = vmatpush2.xpose.msra.mxu0 0.0
  %2166 = vmatprep.subr.mxu0 0.0
  %2167 = vmatpush2.xpose.msra.mxu0 0.0
  %2168 = vmatprep.subr.mxu0 0.0
  %2169 = vmatpush2.xpose.msra.mxu0 0.0
  %2170 = vmatprep.subr.mxu0 0.0
  %2171 = vmatpush2.xpose.msra.mxu0 0.0
  %2172 = vmatprep.subr.mxu0 0.0
  %2173 = vmatpush2.xpose.msra.mxu0 0.0
  %2174 = vmatprep.subr.mxu0 0.0
  %2175 = vmatpush2.xpose.msra.mxu0 0.0
  %2176 = vmatprep.subr.mxu0 0.0
  %2177 = vmatpush2.xpose.msra.mxu0 0.0
  %2178 = vmatprep.subr.mxu0 0.0
  %2179 = vmatpush2.xpose.msra.mxu0 0.0
  %2180 = vmatprep.subr.mxu0 0.0
  %2181 = vmatpush2.xpose.msra.mxu0 0.0
  %2182 = vmatprep.subr.mxu0 0.0
  %2183 = vmatpush2.xpose.msra.mxu0 0.0
  %2184 = vmatprep.subr.mxu0 0.0
  %2185 = vmatpush2.xpose.msra.mxu0 0.0
  %2186 = vmatprep.subr.mxu0 0.0
  %2187 = vmatpush2.xpose.msra.mxu0 0.0
  %2188 = vmatprep.subr.mxu0 0.0
  %2189 = vmatpush2.xpose.msra.mxu0 0.0
  %2190 = vmatprep.subr.mxu0 0.0
  %2191 = vmatpush2.xpose.msra.mxu0 0.0
  %2192 = vmatprep.subr.mxu0 0.0
  %2193 = vmatpush2.xpose.msra.mxu0 0.0
  %2194 = vmatprep.mubr.f32.mxu0 0.0
  %2195 = vmatmul.mubr.f32.gmra.mxu0 %v2126
  %v2196 = vpop.f32.mrf.mxu0
  %v2197 = vadd.f32 0.0, %v2196
  %v2198 = vpop.f32.mrf.mxu0
  %2199 = vdwg.mxu0
  %2200 = vrot.lane.b32.xlu0 %v2092, 64
  %v2201 = vpop.permute.xlu0 %2200
  %v2202 = vsel %vm241, %v2092, 0
  %v2204 = vsel %vm241, %v2201, 0
  %2206 = vmatprep.subr.mxu0 0.0
  %2207 = vmatpush1.xpose.msra.mxu0 0.0
  %2208 = vmatprep.subr.mxu0 0.0
  %2209 = vmatpush1.xpose.msra.mxu0 0.0
  %2210 = vmatprep.subr.mxu0 0.0
  %2211 = vmatpush1.xpose.msra.mxu0 0.0
  %2212 = vmatprep.subr.mxu0 0.0
  %2213 = vmatpush1.xpose.msra.mxu0 0.0
  %2214 = vmatprep.subr.mxu0 0.0
  %2215 = vmatpush1.xpose.msra.mxu0 0.0
  %2216 = vmatprep.subr.mxu0 0.0
  %2217 = vmatpush1.xpose.msra.mxu0 0.0
  %2218 = vmatprep.subr.mxu0 0.0
  %2219 = vmatpush1.xpose.msra.mxu0 0.0
  %2220 = vmatprep.subr.mxu0 0.0
  %2221 = vmatpush1.xpose.msra.mxu0 0.0
  %2222 = vmatprep.subr.mxu0 0.0
  %2223 = vmatpush1.xpose.msra.mxu0 0.0
  %2224 = vmatprep.subr.mxu0 0.0
  %2225 = vmatpush1.xpose.msra.mxu0 0.0
  %2226 = vmatprep.subr.mxu0 0.0
  %2227 = vmatpush1.xpose.msra.mxu0 0.0
  %2228 = vmatprep.subr.mxu0 0.0
  %2229 = vmatpush1.xpose.msra.mxu0 0.0
  %2230 = vmatprep.subr.mxu0 0.0
  %2231 = vmatpush1.xpose.msra.mxu0 0.0
  %2232 = vmatprep.subr.mxu0 0.0
  %2233 = vmatpush1.xpose.msra.mxu0 0.0
  %2234 = vmatprep.subr.mxu0 0.0
  %2235 = vmatpush1.xpose.msra.mxu0 0.0
  %2236 = vmatprep.subr.mxu0 0.0
  %2237 = vmatpush1.xpose.msra.mxu0 %v2204
  %2238 = vmatprep.subr.mxu0 0.0
  %2239 = vmatpush2.xpose.msra.mxu0 0.0
  %2240 = vmatprep.subr.mxu0 0.0
  %2241 = vmatpush2.xpose.msra.mxu0 0.0
  %2242 = vmatprep.subr.mxu0 0.0
  %2243 = vmatpush2.xpose.msra.mxu0 0.0
  %2244 = vmatprep.subr.mxu0 0.0
  %2245 = vmatpush2.xpose.msra.mxu0 0.0
  %2246 = vmatprep.subr.mxu0 0.0
  %2247 = vmatpush2.xpose.msra.mxu0 0.0
  %2248 = vmatprep.subr.mxu0 0.0
  %2249 = vmatpush2.xpose.msra.mxu0 0.0
  %2250 = vmatprep.subr.mxu0 0.0
  %2251 = vmatpush2.xpose.msra.mxu0 0.0
  %2252 = vmatprep.subr.mxu0 0.0
  %2253 = vmatpush2.xpose.msra.mxu0 0.0
  %2254 = vmatprep.subr.mxu0 0.0
  %2255 = vmatpush2.xpose.msra.mxu0 0.0
  %2256 = vmatprep.subr.mxu0 0.0
  %2257 = vmatpush2.xpose.msra.mxu0 0.0
  %2258 = vmatprep.subr.mxu0 0.0
  %2259 = vmatpush2.xpose.msra.mxu0 0.0
  %2260 = vmatprep.subr.mxu0 0.0
  %2261 = vmatpush2.xpose.msra.mxu0 0.0
  %2262 = vmatprep.subr.mxu0 0.0
  %2263 = vmatpush2.xpose.msra.mxu0 0.0
  %2264 = vmatprep.subr.mxu0 0.0
  %2265 = vmatpush2.xpose.msra.mxu0 0.0
  %2266 = vmatprep.subr.mxu0 0.0
  %2267 = vmatpush2.xpose.msra.mxu0 0.0
  %2268 = vmatprep.subr.mxu0 0.0
  %2269 = vmatpush2.xpose.msra.mxu0 0.0
  %2270 = vmatprep.mubr.f32.mxu0 0.0
  %2271 = vmatmul.mubr.f32.gmra.mxu0 %v2202
  %v2272 = vpop.f32.mrf.mxu0
  %v2273 = vadd.f32 0.0, %v2272
  %v2274 = vpop.f32.mrf.mxu0
  %2275 = vdwg.mxu0
  %2276 = vrot.lane.b32.xlu0 %v2094, 64
  %v2277 = vpop.permute.xlu0 %2276
  %v2278 = vsel %vm241, %v2094, 0
  %v2280 = vsel %vm241, %v2277, 0
  %2282 = vmatprep.subr.mxu0 0.0
  %2283 = vmatpush1.xpose.msra.mxu0 0.0
  %2284 = vmatprep.subr.mxu0 0.0
  %2285 = vmatpush1.xpose.msra.mxu0 0.0
  %2286 = vmatprep.subr.mxu0 0.0
  %2287 = vmatpush1.xpose.msra.mxu0 0.0
  %2288 = vmatprep.subr.mxu0 0.0
  %2289 = vmatpush1.xpose.msra.mxu0 0.0
  %2290 = vmatprep.subr.mxu0 0.0
  %2291 = vmatpush1.xpose.msra.mxu0 0.0
  %2292 = vmatprep.subr.mxu0 0.0
  %2293 = vmatpush1.xpose.msra.mxu0 0.0
  %2294 = vmatprep.subr.mxu0 0.0
  %2295 = vmatpush1.xpose.msra.mxu0 0.0
  %2296 = vmatprep.subr.mxu0 0.0
  %2297 = vmatpush1.xpose.msra.mxu0 0.0
  %2298 = vmatprep.subr.mxu0 0.0
  %2299 = vmatpush1.xpose.msra.mxu0 0.0
  %2300 = vmatprep.subr.mxu0 0.0
  %2301 = vmatpush1.xpose.msra.mxu0 0.0
  %2302 = vmatprep.subr.mxu0 0.0
  %2303 = vmatpush1.xpose.msra.mxu0 0.0
  %2304 = vmatprep.subr.mxu0 0.0
  %2305 = vmatpush1.xpose.msra.mxu0 0.0
  %2306 = vmatprep.subr.mxu0 0.0
  %2307 = vmatpush1.xpose.msra.mxu0 0.0
  %2308 = vmatprep.subr.mxu0 0.0
  %2309 = vmatpush1.xpose.msra.mxu0 0.0
  %2310 = vmatprep.subr.mxu0 0.0
  %2311 = vmatpush1.xpose.msra.mxu0 0.0
  %2312 = vmatprep.subr.mxu0 0.0
  %2313 = vmatpush1.xpose.msra.mxu0 %v2280
  %2314 = vmatprep.subr.mxu0 0.0
  %2315 = vmatpush2.xpose.msra.mxu0 0.0
  %2316 = vmatprep.subr.mxu0 0.0
  %2317 = vmatpush2.xpose.msra.mxu0 0.0
  %2318 = vmatprep.subr.mxu0 0.0
  %2319 = vmatpush2.xpose.msra.mxu0 0.0
  %2320 = vmatprep.subr.mxu0 0.0
  %2321 = vmatpush2.xpose.msra.mxu0 0.0
  %2322 = vmatprep.subr.mxu0 0.0
  %2323 = vmatpush2.xpose.msra.mxu0 0.0
  %2324 = vmatprep.subr.mxu0 0.0
  %2325 = vmatpush2.xpose.msra.mxu0 0.0
  %2326 = vmatprep.subr.mxu0 0.0
  %2327 = vmatpush2.xpose.msra.mxu0 0.0
  %2328 = vmatprep.subr.mxu0 0.0
  %2329 = vmatpush2.xpose.msra.mxu0 0.0
  %2330 = vmatprep.subr.mxu0 0.0
  %2331 = vmatpush2.xpose.msra.mxu0 0.0
  %2332 = vmatprep.subr.mxu0 0.0
  %2333 = vmatpush2.xpose.msra.mxu0 0.0
  %2334 = vmatprep.subr.mxu0 0.0
  %2335 = vmatpush2.xpose.msra.mxu0 0.0
  %2336 = vmatprep.subr.mxu0 0.0
  %2337 = vmatpush2.xpose.msra.mxu0 0.0
  %2338 = vmatprep.subr.mxu0 0.0
  %2339 = vmatpush2.xpose.msra.mxu0 0.0
  %2340 = vmatprep.subr.mxu0 0.0
  %2341 = vmatpush2.xpose.msra.mxu0 0.0
  %2342 = vmatprep.subr.mxu0 0.0
  %2343 = vmatpush2.xpose.msra.mxu0 0.0
  %2344 = vmatprep.subr.mxu0 0.0
  %2345 = vmatpush2.xpose.msra.mxu0 0.0
  %2346 = vmatprep.mubr.f32.mxu0 0.0
  %2347 = vmatmul.mubr.f32.gmra.mxu0 %v2278
  %v2348 = vpop.f32.mrf.mxu0
  %v2349 = vadd.f32 0.0, %v2348
  %v2350 = vpop.f32.mrf.mxu0
  %2351 = vdwg.mxu0
  %2352 = vrot.lane.b32.xlu0 %v2096, 64
  %v2353 = vpop.permute.xlu0 %2352
  %v2354 = vsel %vm241, %v2096, 0
  %v2356 = vsel %vm241, %v2353, 0
  %2358 = vmatprep.subr.mxu0 0.0
  %2359 = vmatpush1.xpose.msra.mxu0 0.0
  %2360 = vmatprep.subr.mxu0 0.0
  %2361 = vmatpush1.xpose.msra.mxu0 0.0
  %2362 = vmatprep.subr.mxu0 0.0
  %2363 = vmatpush1.xpose.msra.mxu0 0.0
  %2364 = vmatprep.subr.mxu0 0.0
  %2365 = vmatpush1.xpose.msra.mxu0 0.0
  %2366 = vmatprep.subr.mxu0 0.0
  %2367 = vmatpush1.xpose.msra.mxu0 0.0
  %2368 = vmatprep.subr.mxu0 0.0
  %2369 = vmatpush1.xpose.msra.mxu0 0.0
  %2370 = vmatprep.subr.mxu0 0.0
  %2371 = vmatpush1.xpose.msra.mxu0 0.0
  %2372 = vmatprep.subr.mxu0 0.0
  %2373 = vmatpush1.xpose.msra.mxu0 0.0
  %2374 = vmatprep.subr.mxu0 0.0
  %2375 = vmatpush1.xpose.msra.mxu0 0.0
  %2376 = vmatprep.subr.mxu0 0.0
  %2377 = vmatpush1.xpose.msra.mxu0 0.0
  %2378 = vmatprep.subr.mxu0 0.0
  %2379 = vmatpush1.xpose.msra.mxu0 0.0
  %2380 = vmatprep.subr.mxu0 0.0
  %2381 = vmatpush1.xpose.msra.mxu0 0.0
  %2382 = vmatprep.subr.mxu0 0.0
  %2383 = vmatpush1.xpose.msra.mxu0 0.0
  %2384 = vmatprep.subr.mxu0 0.0
  %2385 = vmatpush1.xpose.msra.mxu0 0.0
  %2386 = vmatprep.subr.mxu0 0.0
  %2387 = vmatpush1.xpose.msra.mxu0 0.0
  %2388 = vmatprep.subr.mxu0 0.0
  %2389 = vmatpush1.xpose.msra.mxu0 %v2356
  %2390 = vmatprep.subr.mxu0 0.0
  %2391 = vmatpush2.xpose.msra.mxu0 0.0
  %2392 = vmatprep.subr.mxu0 0.0
  %2393 = vmatpush2.xpose.msra.mxu0 0.0
  %2394 = vmatprep.subr.mxu0 0.0
  %2395 = vmatpush2.xpose.msra.mxu0 0.0
  %2396 = vmatprep.subr.mxu0 0.0
  %2397 = vmatpush2.xpose.msra.mxu0 0.0
  %2398 = vmatprep.subr.mxu0 0.0
  %2399 = vmatpush2.xpose.msra.mxu0 0.0
  %2400 = vmatprep.subr.mxu0 0.0
  %2401 = vmatpush2.xpose.msra.mxu0 0.0
  %2402 = vmatprep.subr.mxu0 0.0
  %2403 = vmatpush2.xpose.msra.mxu0 0.0
  %2404 = vmatprep.subr.mxu0 0.0
  %2405 = vmatpush2.xpose.msra.mxu0 0.0
  %2406 = vmatprep.subr.mxu0 0.0
  %2407 = vmatpush2.xpose.msra.mxu0 0.0
  %2408 = vmatprep.subr.mxu0 0.0
  %2409 = vmatpush2.xpose.msra.mxu0 0.0
  %2410 = vmatprep.subr.mxu0 0.0
  %2411 = vmatpush2.xpose.msra.mxu0 0.0
  %2412 = vmatprep.subr.mxu0 0.0
  %2413 = vmatpush2.xpose.msra.mxu0 0.0
  %2414 = vmatprep.subr.mxu0 0.0
  %2415 = vmatpush2.xpose.msra.mxu0 0.0
  %2416 = vmatprep.subr.mxu0 0.0
  %2417 = vmatpush2.xpose.msra.mxu0 0.0
  %2418 = vmatprep.subr.mxu0 0.0
  %2419 = vmatpush2.xpose.msra.mxu0 0.0
  %2420 = vmatprep.subr.mxu0 0.0
  %2421 = vmatpush2.xpose.msra.mxu0 0.0
  %2422 = vmatprep.mubr.f32.mxu0 0.0
  %2423 = vmatmul.mubr.f32.gmra.mxu0 %v2354
  %v2424 = vpop.f32.mrf.mxu0
  %v2425 = vadd.f32 0.0, %v2424
  %v2426 = vpop.f32.mrf.mxu0
  %2427 = vdwg.mxu0
  %2428 = vrot.lane.b32.xlu0 %v2086, 64
  %v2429 = vpop.permute.xlu0 %2428
  %v2430 = vsel %vm241, %v2086, 0
  %v2432 = vsel %vm241, %v2429, 0
  %2434 = vmatprep.subr.mxu0 0.0
  %2435 = vmatpush1.xpose.msra.mxu0 0.0
  %2436 = vmatprep.subr.mxu0 0.0
  %2437 = vmatpush1.xpose.msra.mxu0 0.0
  %2438 = vmatprep.subr.mxu0 0.0
  %2439 = vmatpush1.xpose.msra.mxu0 0.0
  %2440 = vmatprep.subr.mxu0 0.0
  %2441 = vmatpush1.xpose.msra.mxu0 0.0
  %2442 = vmatprep.subr.mxu0 0.0
  %2443 = vmatpush1.xpose.msra.mxu0 0.0
  %2444 = vmatprep.subr.mxu0 0.0
  %2445 = vmatpush1.xpose.msra.mxu0 0.0
  %2446 = vmatprep.subr.mxu0 0.0
  %2447 = vmatpush1.xpose.msra.mxu0 0.0
  %2448 = vmatprep.subr.mxu0 0.0
  %2449 = vmatpush1.xpose.msra.mxu0 0.0
  %2450 = vmatprep.subr.mxu0 0.0
  %2451 = vmatpush1.xpose.msra.mxu0 0.0
  %2452 = vmatprep.subr.mxu0 0.0
  %2453 = vmatpush1.xpose.msra.mxu0 0.0
  %2454 = vmatprep.subr.mxu0 0.0
  %2455 = vmatpush1.xpose.msra.mxu0 0.0
  %2456 = vmatprep.subr.mxu0 0.0
  %2457 = vmatpush1.xpose.msra.mxu0 0.0
  %2458 = vmatprep.subr.mxu0 0.0
  %2459 = vmatpush1.xpose.msra.mxu0 0.0
  %2460 = vmatprep.subr.mxu0 0.0
  %2461 = vmatpush1.xpose.msra.mxu0 0.0
  %2462 = vmatprep.subr.mxu0 0.0
  %2463 = vmatpush1.xpose.msra.mxu0 0.0
  %2464 = vmatprep.subr.mxu0 0.0
  %2465 = vmatpush1.xpose.msra.mxu0 %v2432
  %2466 = vmatprep.subr.mxu0 0.0
  %2467 = vmatpush2.xpose.msra.mxu0 0.0
  %2468 = vmatprep.subr.mxu0 0.0
  %2469 = vmatpush2.xpose.msra.mxu0 0.0
  %2470 = vmatprep.subr.mxu0 0.0
  %2471 = vmatpush2.xpose.msra.mxu0 0.0
  %2472 = vmatprep.subr.mxu0 0.0
  %2473 = vmatpush2.xpose.msra.mxu0 0.0
  %2474 = vmatprep.subr.mxu0 0.0
  %2475 = vmatpush2.xpose.msra.mxu0 0.0
  %2476 = vmatprep.subr.mxu0 0.0
  %2477 = vmatpush2.xpose.msra.mxu0 0.0
  %2478 = vmatprep.subr.mxu0 0.0
  %2479 = vmatpush2.xpose.msra.mxu0 0.0
  %2480 = vmatprep.subr.mxu0 0.0
  %2481 = vmatpush2.xpose.msra.mxu0 0.0
  %2482 = vmatprep.subr.mxu0 0.0
  %2483 = vmatpush2.xpose.msra.mxu0 0.0
  %2484 = vmatprep.subr.mxu0 0.0
  %2485 = vmatpush2.xpose.msra.mxu0 0.0
  %2486 = vmatprep.subr.mxu0 0.0
  %2487 = vmatpush2.xpose.msra.mxu0 0.0
  %2488 = vmatprep.subr.mxu0 0.0
  %2489 = vmatpush2.xpose.msra.mxu0 0.0
  %2490 = vmatprep.subr.mxu0 0.0
  %2491 = vmatpush2.xpose.msra.mxu0 0.0
  %2492 = vmatprep.subr.mxu0 0.0
  %2493 = vmatpush2.xpose.msra.mxu0 0.0
  %2494 = vmatprep.subr.mxu0 0.0
  %2495 = vmatpush2.xpose.msra.mxu0 0.0
  %2496 = vmatprep.subr.mxu0 0.0
  %2497 = vmatpush2.xpose.msra.mxu0 0.0
  %2498 = vmatprep.mubr.f32.mxu0 0.0
  %2499 = vmatmul.mubr.f32.gmra.mxu0 %v2430
  %v2500 = vpop.f32.mrf.mxu0
  %v2501 = vadd.f32 0.0, %v2500
  %v2502 = vpop.f32.mrf.mxu0
  %2503 = vdwg.mxu0
  %2504 = vrot.lane.b32.xlu0 %v2099, 64
  %v2505 = vpop.permute.xlu0 %2504
  %v2506 = vsel %vm241, %v2099, 0
  %v2508 = vsel %vm241, %v2505, 0
  %2510 = vmatprep.subr.mxu0 0.0
  %2511 = vmatpush1.xpose.msra.mxu0 0.0
  %2512 = vmatprep.subr.mxu0 0.0
  %2513 = vmatpush1.xpose.msra.mxu0 0.0
  %2514 = vmatprep.subr.mxu0 0.0
  %2515 = vmatpush1.xpose.msra.mxu0 0.0
  %2516 = vmatprep.subr.mxu0 0.0
  %2517 = vmatpush1.xpose.msra.mxu0 0.0
  %2518 = vmatprep.subr.mxu0 0.0
  %2519 = vmatpush1.xpose.msra.mxu0 0.0
  %2520 = vmatprep.subr.mxu0 0.0
  %2521 = vmatpush1.xpose.msra.mxu0 0.0
  %2522 = vmatprep.subr.mxu0 0.0
  %2523 = vmatpush1.xpose.msra.mxu0 0.0
  %2524 = vmatprep.subr.mxu0 0.0
  %2525 = vmatpush1.xpose.msra.mxu0 0.0
  %2526 = vmatprep.subr.mxu0 0.0
  %2527 = vmatpush1.xpose.msra.mxu0 0.0
  %2528 = vmatprep.subr.mxu0 0.0
  %2529 = vmatpush1.xpose.msra.mxu0 0.0
  %2530 = vmatprep.subr.mxu0 0.0
  %2531 = vmatpush1.xpose.msra.mxu0 0.0
  %2532 = vmatprep.subr.mxu0 0.0
  %2533 = vmatpush1.xpose.msra.mxu0 0.0
  %2534 = vmatprep.subr.mxu0 0.0
  %2535 = vmatpush1.xpose.msra.mxu0 0.0
  %2536 = vmatprep.subr.mxu0 0.0
  %2537 = vmatpush1.xpose.msra.mxu0 0.0
  %2538 = vmatprep.subr.mxu0 0.0
  %2539 = vmatpush1.xpose.msra.mxu0 0.0
  %2540 = vmatprep.subr.mxu0 0.0
  %2541 = vmatpush1.xpose.msra.mxu0 %v2508
  %2542 = vmatprep.subr.mxu0 0.0
  %2543 = vmatpush2.xpose.msra.mxu0 0.0
  %2544 = vmatprep.subr.mxu0 0.0
  %2545 = vmatpush2.xpose.msra.mxu0 0.0
  %2546 = vmatprep.subr.mxu0 0.0
  %2547 = vmatpush2.xpose.msra.mxu0 0.0
  %2548 = vmatprep.subr.mxu0 0.0
  %2549 = vmatpush2.xpose.msra.mxu0 0.0
  %2550 = vmatprep.subr.mxu0 0.0
  %2551 = vmatpush2.xpose.msra.mxu0 0.0
  %2552 = vmatprep.subr.mxu0 0.0
  %2553 = vmatpush2.xpose.msra.mxu0 0.0
  %2554 = vmatprep.subr.mxu0 0.0
  %2555 = vmatpush2.xpose.msra.mxu0 0.0
  %2556 = vmatprep.subr.mxu0 0.0
  %2557 = vmatpush2.xpose.msra.mxu0 0.0
  %2558 = vmatprep.subr.mxu0 0.0
  %2559 = vmatpush2.xpose.msra.mxu0 0.0
  %2560 = vmatprep.subr.mxu0 0.0
  %2561 = vmatpush2.xpose.msra.mxu0 0.0
  %2562 = vmatprep.subr.mxu0 0.0
  %2563 = vmatpush2.xpose.msra.mxu0 0.0
  %2564 = vmatprep.subr.mxu0 0.0
  %2565 = vmatpush2.xpose.msra.mxu0 0.0
  %2566 = vmatprep.subr.mxu0 0.0
  %2567 = vmatpush2.xpose.msra.mxu0 0.0
  %2568 = vmatprep.subr.mxu0 0.0
  %2569 = vmatpush2.xpose.msra.mxu0 0.0
  %2570 = vmatprep.subr.mxu0 0.0
  %2571 = vmatpush2.xpose.msra.mxu0 0.0
  %2572 = vmatprep.subr.mxu0 0.0
  %2573 = vmatpush2.xpose.msra.mxu0 0.0
  %2574 = vmatprep.mubr.f32.mxu0 0.0
  %2575 = vmatmul.mubr.f32.gmra.mxu0 %v2506
  %v2576 = vpop.f32.mrf.mxu0
  %v2577 = vadd.f32 0.0, %v2576
  %v2578 = vpop.f32.mrf.mxu0
  %2579 = vdwg.mxu0
  %2580 = vrot.lane.b32.xlu0 %v2101, 64
  %v2581 = vpop.permute.xlu0 %2580
  %v2582 = vsel %vm241, %v2101, 0
  %v2584 = vsel %vm241, %v2581, 0
  %2586 = vmatprep.subr.mxu0 0.0
  %2587 = vmatpush1.xpose.msra.mxu0 0.0
  %2588 = vmatprep.subr.mxu0 0.0
  %2589 = vmatpush1.xpose.msra.mxu0 0.0
  %2590 = vmatprep.subr.mxu0 0.0
  %2591 = vmatpush1.xpose.msra.mxu0 0.0
  %2592 = vmatprep.subr.mxu0 0.0
  %2593 = vmatpush1.xpose.msra.mxu0 0.0
  %2594 = vmatprep.subr.mxu0 0.0
  %2595 = vmatpush1.xpose.msra.mxu0 0.0
  %2596 = vmatprep.subr.mxu0 0.0
  %2597 = vmatpush1.xpose.msra.mxu0 0.0
  %2598 = vmatprep.subr.mxu0 0.0
  %2599 = vmatpush1.xpose.msra.mxu0 0.0
  %2600 = vmatprep.subr.mxu0 0.0
  %2601 = vmatpush1.xpose.msra.mxu0 0.0
  %2602 = vmatprep.subr.mxu0 0.0
  %2603 = vmatpush1.xpose.msra.mxu0 0.0
  %2604 = vmatprep.subr.mxu0 0.0
  %2605 = vmatpush1.xpose.msra.mxu0 0.0
  %2606 = vmatprep.subr.mxu0 0.0
  %2607 = vmatpush1.xpose.msra.mxu0 0.0
  %2608 = vmatprep.subr.mxu0 0.0
  %2609 = vmatpush1.xpose.msra.mxu0 0.0
  %2610 = vmatprep.subr.mxu0 0.0
  %2611 = vmatpush1.xpose.msra.mxu0 0.0
  %2612 = vmatprep.subr.mxu0 0.0
  %2613 = vmatpush1.xpose.msra.mxu0 0.0
  %2614 = vmatprep.subr.mxu0 0.0
  %2615 = vmatpush1.xpose.msra.mxu0 0.0
  %2616 = vmatprep.subr.mxu0 0.0
  %2617 = vmatpush1.xpose.msra.mxu0 %v2584
  %2618 = vmatprep.subr.mxu0 0.0
  %2619 = vmatpush2.xpose.msra.mxu0 0.0
  %2620 = vmatprep.subr.mxu0 0.0
  %2621 = vmatpush2.xpose.msra.mxu0 0.0
  %2622 = vmatprep.subr.mxu0 0.0
  %2623 = vmatpush2.xpose.msra.mxu0 0.0
  %2624 = vmatprep.subr.mxu0 0.0
  %2625 = vmatpush2.xpose.msra.mxu0 0.0
  %2626 = vmatprep.subr.mxu0 0.0
  %2627 = vmatpush2.xpose.msra.mxu0 0.0
  %2628 = vmatprep.subr.mxu0 0.0
  %2629 = vmatpush2.xpose.msra.mxu0 0.0
  %2630 = vmatprep.subr.mxu0 0.0
  %2631 = vmatpush2.xpose.msra.mxu0 0.0
  %2632 = vmatprep.subr.mxu0 0.0
  %2633 = vmatpush2.xpose.msra.mxu0 0.0
  %2634 = vmatprep.subr.mxu0 0.0
  %2635 = vmatpush2.xpose.msra.mxu0 0.0
  %2636 = vmatprep.subr.mxu0 0.0
  %2637 = vmatpush2.xpose.msra.mxu0 0.0
  %2638 = vmatprep.subr.mxu0 0.0
  %2639 = vmatpush2.xpose.msra.mxu0 0.0
  %2640 = vmatprep.subr.mxu0 0.0
  %2641 = vmatpush2.xpose.msra.mxu0 0.0
  %2642 = vmatprep.subr.mxu0 0.0
  %2643 = vmatpush2.xpose.msra.mxu0 0.0
  %2644 = vmatprep.subr.mxu0 0.0
  %2645 = vmatpush2.xpose.msra.mxu0 0.0
  %2646 = vmatprep.subr.mxu0 0.0
  %2647 = vmatpush2.xpose.msra.mxu0 0.0
  %2648 = vmatprep.subr.mxu0 0.0
  %2649 = vmatpush2.xpose.msra.mxu0 0.0
  %2650 = vmatprep.mubr.f32.mxu0 0.0
  %2651 = vmatmul.mubr.f32.gmra.mxu0 %v2582
  %v2652 = vpop.f32.mrf.mxu0
  %v2653 = vadd.f32 0.0, %v2652
  %v2654 = vpop.f32.mrf.mxu0
  %2655 = vdwg.mxu0
  %2656 = vrot.lane.b32.xlu0 %v2103, 64
  %v2657 = vpop.permute.xlu0 %2656
  %v2658 = vsel %vm241, %v2103, 0
  %v2660 = vsel %vm241, %v2657, 0
  %2662 = vmatprep.subr.mxu0 0.0
  %2663 = vmatpush1.xpose.msra.mxu0 0.0
  %2664 = vmatprep.subr.mxu0 0.0
  %2665 = vmatpush1.xpose.msra.mxu0 0.0
  %2666 = vmatprep.subr.mxu0 0.0
  %2667 = vmatpush1.xpose.msra.mxu0 0.0
  %2668 = vmatprep.subr.mxu0 0.0
  %2669 = vmatpush1.xpose.msra.mxu0 0.0
  %2670 = vmatprep.subr.mxu0 0.0
  %2671 = vmatpush1.xpose.msra.mxu0 0.0
  %2672 = vmatprep.subr.mxu0 0.0
  %2673 = vmatpush1.xpose.msra.mxu0 0.0
  %2674 = vmatprep.subr.mxu0 0.0
  %2675 = vmatpush1.xpose.msra.mxu0 0.0
  %2676 = vmatprep.subr.mxu0 0.0
  %2677 = vmatpush1.xpose.msra.mxu0 0.0
  %2678 = vmatprep.subr.mxu0 0.0
  %2679 = vmatpush1.xpose.msra.mxu0 0.0
  %2680 = vmatprep.subr.mxu0 0.0
  %2681 = vmatpush1.xpose.msra.mxu0 0.0
  %2682 = vmatprep.subr.mxu0 0.0
  %2683 = vmatpush1.xpose.msra.mxu0 0.0
  %2684 = vmatprep.subr.mxu0 0.0
  %2685 = vmatpush1.xpose.msra.mxu0 0.0
  %2686 = vmatprep.subr.mxu0 0.0
  %2687 = vmatpush1.xpose.msra.mxu0 0.0
  %2688 = vmatprep.subr.mxu0 0.0
  %2689 = vmatpush1.xpose.msra.mxu0 0.0
  %2690 = vmatprep.subr.mxu0 0.0
  %2691 = vmatpush1.xpose.msra.mxu0 0.0
  %2692 = vmatprep.subr.mxu0 0.0
  %2693 = vmatpush1.xpose.msra.mxu0 %v2660
  %2694 = vmatprep.subr.mxu0 0.0
  %2695 = vmatpush2.xpose.msra.mxu0 0.0
  %2696 = vmatprep.subr.mxu0 0.0
  %2697 = vmatpush2.xpose.msra.mxu0 0.0
  %2698 = vmatprep.subr.mxu0 0.0
  %2699 = vmatpush2.xpose.msra.mxu0 0.0
  %2700 = vmatprep.subr.mxu0 0.0
  %2701 = vmatpush2.xpose.msra.mxu0 0.0
  %2702 = vmatprep.subr.mxu0 0.0
  %2703 = vmatpush2.xpose.msra.mxu0 0.0
  %2704 = vmatprep.subr.mxu0 0.0
  %2705 = vmatpush2.xpose.msra.mxu0 0.0
  %2706 = vmatprep.subr.mxu0 0.0
  %2707 = vmatpush2.xpose.msra.mxu0 0.0
  %2708 = vmatprep.subr.mxu0 0.0
  %2709 = vmatpush2.xpose.msra.mxu0 0.0
  %2710 = vmatprep.subr.mxu0 0.0
  %2711 = vmatpush2.xpose.msra.mxu0 0.0
  %2712 = vmatprep.subr.mxu0 0.0
  %2713 = vmatpush2.xpose.msra.mxu0 0.0
  %2714 = vmatprep.subr.mxu0 0.0
  %2715 = vmatpush2.xpose.msra.mxu0 0.0
  %2716 = vmatprep.subr.mxu0 0.0
  %2717 = vmatpush2.xpose.msra.mxu0 0.0
  %2718 = vmatprep.subr.mxu0 0.0
  %2719 = vmatpush2.xpose.msra.mxu0 0.0
  %2720 = vmatprep.subr.mxu0 0.0
  %2721 = vmatpush2.xpose.msra.mxu0 0.0
  %2722 = vmatprep.subr.mxu0 0.0
  %2723 = vmatpush2.xpose.msra.mxu0 0.0
  %2724 = vmatprep.subr.mxu0 0.0
  %2725 = vmatpush2.xpose.msra.mxu0 0.0
  %2726 = vmatprep.mubr.f32.mxu0 0.0
  %2727 = vmatmul.mubr.f32.gmra.mxu0 %v2658
  %v2728 = vpop.f32.mrf.mxu0
  %v2729 = vadd.f32 0.0, %v2728
  %v2730 = vpop.f32.mrf.mxu0
  %2731 = vdwg.mxu0
  %v2732 = vmul.f32 %v2197, 0.25
  %v2733 = vmul.f32 %v2273, 0.25
  %v2734 = vmul.f32 %v2349, 0.25
  %v2735 = vmul.f32 %v2425, 0.25
  %v2736 = vmul.f32 %v2501, 0.25
  %v2737 = vmul.f32 %v2577, 0.25
  %v2738 = vmul.f32 %v2653, 0.25
  %v2739 = vmul.f32 %v2729, 0.25
  %v2740 = vsel %vm857, %v2732, -1e+30
  %v2741 = vsel %vm857, %v2733, -1e+30
  %v2742 = vsel %vm857, %v2734, -1e+30
  %v2743 = vsel %vm857, %v2735, -1e+30
  %v2744 = vsel %vm857, %v2736, -1e+30
  %v2745 = vsel %vm857, %v2737, -1e+30
  %v2746 = vsel %vm857, %v2738, -1e+30
  %v2747 = vsel %vm857, %v2739, -1e+30
  %v2748 = vsel %vm866, %v2740, -inf
  %2749 = vmax.xlane.f32.xlu0 %v2748
  %v2750 = vpop.xlane.xlu0 %2749
  %v2751 = vsel %vm866, %v2741, -inf
  %2752 = vmax.xlane.f32.xlu0 %v2751
  %v2753 = vpop.xlane.xlu0 %2752
  %v2754 = vsel %vm866, %v2742, -inf
  %2755 = vmax.xlane.f32.xlu0 %v2754
  %v2756 = vpop.xlane.xlu0 %2755
  %v2757 = vsel %vm866, %v2743, -inf
  %2758 = vmax.xlane.f32.xlu0 %v2757
  %v2759 = vpop.xlane.xlu0 %2758
  %v2760 = vsel %vm866, %v2744, -inf
  %2761 = vmax.xlane.f32.xlu0 %v2760
  %v2762 = vpop.xlane.xlu0 %2761
  %v2763 = vsel %vm866, %v2745, -inf
  %2764 = vmax.xlane.f32.xlu0 %v2763
  %v2765 = vpop.xlane.xlu0 %2764
  %v2766 = vsel %vm866, %v2746, -inf
  %2767 = vmax.xlane.f32.xlu0 %v2766
  %v2768 = vpop.xlane.xlu0 %2767
  %v2769 = vsel %vm866, %v2747, -inf
  %2770 = vmax.xlane.f32.xlu0 %v2769
  %v2771 = vpop.xlane.xlu0 %2770
  %v2772 = vsub.f32 %v2740, %v2750
  %v2773 = vsub.f32 %v2741, %v2753
  %v2774 = vsub.f32 %v2742, %v2756
  %v2775 = vsub.f32 %v2743, %v2759
  %v2776 = vsub.f32 %v2744, %v2762
  %v2777 = vsub.f32 %v2745, %v2765
  %v2778 = vsub.f32 %v2746, %v2768
  %v2779 = vsub.f32 %v2747, %v2771
  %v2780 = vmul.f32 %v2772, 1.442695
  %v2781 = vpow.pop %v2780
  %v2782 = vmul.f32 %v2773, 1.442695
  %v2783 = vpow.pop %v2782
  %v2784 = vmul.f32 %v2774, 1.442695
  %v2785 = vpow.pop %v2784
  %v2786 = vmul.f32 %v2775, 1.442695
  %v2787 = vpow.pop %v2786
  %v2788 = vmul.f32 %v2776, 1.442695
  %v2789 = vpow.pop %v2788
  %v2790 = vmul.f32 %v2777, 1.442695
  %v2791 = vpow.pop %v2790
  %v2792 = vmul.f32 %v2778, 1.442695
  %v2793 = vpow.pop %v2792
  %v2794 = vmul.f32 %v2779, 1.442695
  %v2795 = vpow.pop %v2794
  %v2796 = vsel %vm866, %v2781, 0.0
  %2797 = vadd.xlane.f32.xlu0 %v2796
  %v2798 = vpop.xlane.xlu0 %2797
  %v2799 = vsel %vm866, %v2783, 0.0
  %2800 = vadd.xlane.f32.xlu0 %v2799
  %v2801 = vpop.xlane.xlu0 %2800
  %v2802 = vsel %vm866, %v2785, 0.0
  %2803 = vadd.xlane.f32.xlu0 %v2802
  %v2804 = vpop.xlane.xlu0 %2803
  %v2805 = vsel %vm866, %v2787, 0.0
  %2806 = vadd.xlane.f32.xlu0 %v2805
  %v2807 = vpop.xlane.xlu0 %2806
  %v2808 = vsel %vm866, %v2789, 0.0
  %2809 = vadd.xlane.f32.xlu0 %v2808
  %v2810 = vpop.xlane.xlu0 %2809
  %v2811 = vsel %vm866, %v2791, 0.0
  %2812 = vadd.xlane.f32.xlu0 %v2811
  %v2813 = vpop.xlane.xlu0 %2812
  %v2814 = vsel %vm866, %v2793, 0.0
  %2815 = vadd.xlane.f32.xlu0 %v2814
  %v2816 = vpop.xlane.xlu0 %2815
  %v2817 = vsel %vm866, %v2795, 0.0
  %2818 = vadd.xlane.f32.xlu0 %v2817
  %v2819 = vpop.xlane.xlu0 %2818
  %v2820 = vrcp.pop %v2798
  %v2821 = vmul.f32 %v2781, %v2820
  %v2822 = vrcp.pop %v2801
  %v2823 = vmul.f32 %v2783, %v2822
  %v2824 = vrcp.pop %v2804
  %v2825 = vmul.f32 %v2785, %v2824
  %v2826 = vrcp.pop %v2807
  %v2827 = vmul.f32 %v2787, %v2826
  %v2828 = vrcp.pop %v2810
  %v2829 = vmul.f32 %v2789, %v2828
  %v2830 = vrcp.pop %v2813
  %v2831 = vmul.f32 %v2791, %v2830
  %v2832 = vrcp.pop %v2816
  %v2833 = vmul.f32 %v2793, %v2832
  %v2834 = vrcp.pop %v2819
  %v2835 = vmul.f32 %v2795, %v2834
  %v2837 = vsel %vm866, %v2821, 0
  %2839 = vmatprep.subr.mxu0 0.0
  %2840 = vmatpush1.msra.mxu0 0.0
  %2841 = vmatprep.subr.mxu0 0.0
  %2842 = vmatpush1.msra.mxu0 0.0
  %2843 = vmatprep.subr.mxu0 0.0
  %2844 = vmatpush1.msra.mxu0 0.0
  %2845 = vmatprep.subr.mxu0 0.0
  %2846 = vmatpush1.msra.mxu0 0.0
  %2847 = vmatprep.subr.mxu0 0.0
  %2848 = vmatpush1.msra.mxu0 0.0
  %2849 = vmatprep.subr.mxu0 0.0
  %2850 = vmatpush1.msra.mxu0 0.0
  %2851 = vmatprep.subr.mxu0 0.0
  %2852 = vmatpush1.msra.mxu0 0.0
  %2853 = vmatprep.subr.mxu0 0.0
  %2854 = vmatpush1.msra.mxu0 0.0
  %2855 = vmatprep.subr.mxu0 0.0
  %2856 = vmatpush1.msra.mxu0 0.0
  %2857 = vmatprep.subr.mxu0 0.0
  %2858 = vmatpush1.msra.mxu0 0.0
  %2859 = vmatprep.subr.mxu0 0.0
  %2860 = vmatpush1.msra.mxu0 0.0
  %2861 = vmatprep.subr.mxu0 0.0
  %2862 = vmatpush1.msra.mxu0 0.0
  %2863 = vmatprep.subr.mxu0 0.0
  %2864 = vmatpush1.msra.mxu0 0.0
  %2865 = vmatprep.subr.mxu0 0.0
  %2866 = vmatpush1.msra.mxu0 0.0
  %2867 = vmatprep.subr.mxu0 0.0
  %2868 = vmatpush1.msra.mxu0 0.0
  %2869 = vmatprep.subr.mxu0 0.0
  %2870 = vmatpush1.msra.mxu0 %v2082
  %2871 = vmatprep.subr.mxu0 0.0
  %2872 = vmatpush2.msra.mxu0 0.0
  %2873 = vmatprep.subr.mxu0 0.0
  %2874 = vmatpush2.msra.mxu0 0.0
  %2875 = vmatprep.subr.mxu0 0.0
  %2876 = vmatpush2.msra.mxu0 0.0
  %2877 = vmatprep.subr.mxu0 0.0
  %2878 = vmatpush2.msra.mxu0 0.0
  %2879 = vmatprep.subr.mxu0 0.0
  %2880 = vmatpush2.msra.mxu0 0.0
  %2881 = vmatprep.subr.mxu0 0.0
  %2882 = vmatpush2.msra.mxu0 0.0
  %2883 = vmatprep.subr.mxu0 0.0
  %2884 = vmatpush2.msra.mxu0 0.0
  %2885 = vmatprep.subr.mxu0 0.0
  %2886 = vmatpush2.msra.mxu0 0.0
  %2887 = vmatprep.subr.mxu0 0.0
  %2888 = vmatpush2.msra.mxu0 0.0
  %2889 = vmatprep.subr.mxu0 0.0
  %2890 = vmatpush2.msra.mxu0 0.0
  %2891 = vmatprep.subr.mxu0 0.0
  %2892 = vmatpush2.msra.mxu0 0.0
  %2893 = vmatprep.subr.mxu0 0.0
  %2894 = vmatpush2.msra.mxu0 0.0
  %2895 = vmatprep.subr.mxu0 0.0
  %2896 = vmatpush2.msra.mxu0 0.0
  %2897 = vmatprep.subr.mxu0 0.0
  %2898 = vmatpush2.msra.mxu0 0.0
  %2899 = vmatprep.subr.mxu0 0.0
  %2900 = vmatpush2.msra.mxu0 0.0
  %2901 = vmatprep.subr.mxu0 0.0
  %2902 = vmatpush2.msra.mxu0 0.0
  %2903 = vmatprep.mubr.f32.mxu0 0.0
  %2904 = vmatmul.mubr.f32.gmra.mxu0 %v2837
  %v2905 = vpop.f32.mrf.mxu0
  %v2906 = vadd.f32 0.0, %v2905
  %v2907 = vpop.f32.mrf.mxu0
  %2908 = vdwg.mxu0
  %v2910 = vsel %vm866, %v2823, 0
  %2912 = vmatprep.subr.mxu0 0.0
  %2913 = vmatpush1.msra.mxu0 0.0
  %2914 = vmatprep.subr.mxu0 0.0
  %2915 = vmatpush1.msra.mxu0 0.0
  %2916 = vmatprep.subr.mxu0 0.0
  %2917 = vmatpush1.msra.mxu0 0.0
  %2918 = vmatprep.subr.mxu0 0.0
  %2919 = vmatpush1.msra.mxu0 0.0
  %2920 = vmatprep.subr.mxu0 0.0
  %2921 = vmatpush1.msra.mxu0 0.0
  %2922 = vmatprep.subr.mxu0 0.0
  %2923 = vmatpush1.msra.mxu0 0.0
  %2924 = vmatprep.subr.mxu0 0.0
  %2925 = vmatpush1.msra.mxu0 0.0
  %2926 = vmatprep.subr.mxu0 0.0
  %2927 = vmatpush1.msra.mxu0 0.0
  %2928 = vmatprep.subr.mxu0 0.0
  %2929 = vmatpush1.msra.mxu0 0.0
  %2930 = vmatprep.subr.mxu0 0.0
  %2931 = vmatpush1.msra.mxu0 0.0
  %2932 = vmatprep.subr.mxu0 0.0
  %2933 = vmatpush1.msra.mxu0 0.0
  %2934 = vmatprep.subr.mxu0 0.0
  %2935 = vmatpush1.msra.mxu0 0.0
  %2936 = vmatprep.subr.mxu0 0.0
  %2937 = vmatpush1.msra.mxu0 0.0
  %2938 = vmatprep.subr.mxu0 0.0
  %2939 = vmatpush1.msra.mxu0 0.0
  %2940 = vmatprep.subr.mxu0 0.0
  %2941 = vmatpush1.msra.mxu0 0.0
  %2942 = vmatprep.subr.mxu0 0.0
  %2943 = vmatpush1.msra.mxu0 %v2106
  %2944 = vmatprep.subr.mxu0 0.0
  %2945 = vmatpush2.msra.mxu0 0.0
  %2946 = vmatprep.subr.mxu0 0.0
  %2947 = vmatpush2.msra.mxu0 0.0
  %2948 = vmatprep.subr.mxu0 0.0
  %2949 = vmatpush2.msra.mxu0 0.0
  %2950 = vmatprep.subr.mxu0 0.0
  %2951 = vmatpush2.msra.mxu0 0.0
  %2952 = vmatprep.subr.mxu0 0.0
  %2953 = vmatpush2.msra.mxu0 0.0
  %2954 = vmatprep.subr.mxu0 0.0
  %2955 = vmatpush2.msra.mxu0 0.0
  %2956 = vmatprep.subr.mxu0 0.0
  %2957 = vmatpush2.msra.mxu0 0.0
  %2958 = vmatprep.subr.mxu0 0.0
  %2959 = vmatpush2.msra.mxu0 0.0
  %2960 = vmatprep.subr.mxu0 0.0
  %2961 = vmatpush2.msra.mxu0 0.0
  %2962 = vmatprep.subr.mxu0 0.0
  %2963 = vmatpush2.msra.mxu0 0.0
  %2964 = vmatprep.subr.mxu0 0.0
  %2965 = vmatpush2.msra.mxu0 0.0
  %2966 = vmatprep.subr.mxu0 0.0
  %2967 = vmatpush2.msra.mxu0 0.0
  %2968 = vmatprep.subr.mxu0 0.0
  %2969 = vmatpush2.msra.mxu0 0.0
  %2970 = vmatprep.subr.mxu0 0.0
  %2971 = vmatpush2.msra.mxu0 0.0
  %2972 = vmatprep.subr.mxu0 0.0
  %2973 = vmatpush2.msra.mxu0 0.0
  %2974 = vmatprep.subr.mxu0 0.0
  %2975 = vmatpush2.msra.mxu0 0.0
  %2976 = vmatprep.mubr.f32.mxu0 0.0
  %2977 = vmatmul.mubr.f32.gmra.mxu0 %v2910
  %v2978 = vpop.f32.mrf.mxu0
  %v2979 = vadd.f32 0.0, %v2978
  %v2980 = vpop.f32.mrf.mxu0
  %2981 = vdwg.mxu0
  %v2983 = vsel %vm866, %v2825, 0
  %2985 = vmatprep.subr.mxu0 0.0
  %2986 = vmatpush1.msra.mxu0 0.0
  %2987 = vmatprep.subr.mxu0 0.0
  %2988 = vmatpush1.msra.mxu0 0.0
  %2989 = vmatprep.subr.mxu0 0.0
  %2990 = vmatpush1.msra.mxu0 0.0
  %2991 = vmatprep.subr.mxu0 0.0
  %2992 = vmatpush1.msra.mxu0 0.0
  %2993 = vmatprep.subr.mxu0 0.0
  %2994 = vmatpush1.msra.mxu0 0.0
  %2995 = vmatprep.subr.mxu0 0.0
  %2996 = vmatpush1.msra.mxu0 0.0
  %2997 = vmatprep.subr.mxu0 0.0
  %2998 = vmatpush1.msra.mxu0 0.0
  %2999 = vmatprep.subr.mxu0 0.0
  %3000 = vmatpush1.msra.mxu0 0.0
  %3001 = vmatprep.subr.mxu0 0.0
  %3002 = vmatpush1.msra.mxu0 0.0
  %3003 = vmatprep.subr.mxu0 0.0
  %3004 = vmatpush1.msra.mxu0 0.0
  %3005 = vmatprep.subr.mxu0 0.0
  %3006 = vmatpush1.msra.mxu0 0.0
  %3007 = vmatprep.subr.mxu0 0.0
  %3008 = vmatpush1.msra.mxu0 0.0
  %3009 = vmatprep.subr.mxu0 0.0
  %3010 = vmatpush1.msra.mxu0 0.0
  %3011 = vmatprep.subr.mxu0 0.0
  %3012 = vmatpush1.msra.mxu0 0.0
  %3013 = vmatprep.subr.mxu0 0.0
  %3014 = vmatpush1.msra.mxu0 0.0
  %3015 = vmatprep.subr.mxu0 0.0
  %3016 = vmatpush1.msra.mxu0 %v2109
  %3017 = vmatprep.subr.mxu0 0.0
  %3018 = vmatpush2.msra.mxu0 0.0
  %3019 = vmatprep.subr.mxu0 0.0
  %3020 = vmatpush2.msra.mxu0 0.0
  %3021 = vmatprep.subr.mxu0 0.0
  %3022 = vmatpush2.msra.mxu0 0.0
  %3023 = vmatprep.subr.mxu0 0.0
  %3024 = vmatpush2.msra.mxu0 0.0
  %3025 = vmatprep.subr.mxu0 0.0
  %3026 = vmatpush2.msra.mxu0 0.0
  %3027 = vmatprep.subr.mxu0 0.0
  %3028 = vmatpush2.msra.mxu0 0.0
  %3029 = vmatprep.subr.mxu0 0.0
  %3030 = vmatpush2.msra.mxu0 0.0
  %3031 = vmatprep.subr.mxu0 0.0
  %3032 = vmatpush2.msra.mxu0 0.0
  %3033 = vmatprep.subr.mxu0 0.0
  %3034 = vmatpush2.msra.mxu0 0.0
  %3035 = vmatprep.subr.mxu0 0.0
  %3036 = vmatpush2.msra.mxu0 0.0
  %3037 = vmatprep.subr.mxu0 0.0
  %3038 = vmatpush2.msra.mxu0 0.0
  %3039 = vmatprep.subr.mxu0 0.0
  %3040 = vmatpush2.msra.mxu0 0.0
  %3041 = vmatprep.subr.mxu0 0.0
  %3042 = vmatpush2.msra.mxu0 0.0
  %3043 = vmatprep.subr.mxu0 0.0
  %3044 = vmatpush2.msra.mxu0 0.0
  %3045 = vmatprep.subr.mxu0 0.0
  %3046 = vmatpush2.msra.mxu0 0.0
  %3047 = vmatprep.subr.mxu0 0.0
  %3048 = vmatpush2.msra.mxu0 0.0
  %3049 = vmatprep.mubr.f32.mxu0 0.0
  %3050 = vmatmul.mubr.f32.gmra.mxu0 %v2983
  %v3051 = vpop.f32.mrf.mxu0
  %v3052 = vadd.f32 0.0, %v3051
  %v3053 = vpop.f32.mrf.mxu0
  %3054 = vdwg.mxu0
  %v3056 = vsel %vm866, %v2827, 0
  %3058 = vmatprep.subr.mxu0 0.0
  %3059 = vmatpush1.msra.mxu0 0.0
  %3060 = vmatprep.subr.mxu0 0.0
  %3061 = vmatpush1.msra.mxu0 0.0
  %3062 = vmatprep.subr.mxu0 0.0
  %3063 = vmatpush1.msra.mxu0 0.0
  %3064 = vmatprep.subr.mxu0 0.0
  %3065 = vmatpush1.msra.mxu0 0.0
  %3066 = vmatprep.subr.mxu0 0.0
  %3067 = vmatpush1.msra.mxu0 0.0
  %3068 = vmatprep.subr.mxu0 0.0
  %3069 = vmatpush1.msra.mxu0 0.0
  %3070 = vmatprep.subr.mxu0 0.0
  %3071 = vmatpush1.msra.mxu0 0.0
  %3072 = vmatprep.subr.mxu0 0.0
  %3073 = vmatpush1.msra.mxu0 0.0
  %3074 = vmatprep.subr.mxu0 0.0
  %3075 = vmatpush1.msra.mxu0 0.0
  %3076 = vmatprep.subr.mxu0 0.0
  %3077 = vmatpush1.msra.mxu0 0.0
  %3078 = vmatprep.subr.mxu0 0.0
  %3079 = vmatpush1.msra.mxu0 0.0
  %3080 = vmatprep.subr.mxu0 0.0
  %3081 = vmatpush1.msra.mxu0 0.0
  %3082 = vmatprep.subr.mxu0 0.0
  %3083 = vmatpush1.msra.mxu0 0.0
  %3084 = vmatprep.subr.mxu0 0.0
  %3085 = vmatpush1.msra.mxu0 0.0
  %3086 = vmatprep.subr.mxu0 0.0
  %3087 = vmatpush1.msra.mxu0 0.0
  %3088 = vmatprep.subr.mxu0 0.0
  %3089 = vmatpush1.msra.mxu0 %v2112
  %3090 = vmatprep.subr.mxu0 0.0
  %3091 = vmatpush2.msra.mxu0 0.0
  %3092 = vmatprep.subr.mxu0 0.0
  %3093 = vmatpush2.msra.mxu0 0.0
  %3094 = vmatprep.subr.mxu0 0.0
  %3095 = vmatpush2.msra.mxu0 0.0
  %3096 = vmatprep.subr.mxu0 0.0
  %3097 = vmatpush2.msra.mxu0 0.0
  %3098 = vmatprep.subr.mxu0 0.0
  %3099 = vmatpush2.msra.mxu0 0.0
  %3100 = vmatprep.subr.mxu0 0.0
  %3101 = vmatpush2.msra.mxu0 0.0
  %3102 = vmatprep.subr.mxu0 0.0
  %3103 = vmatpush2.msra.mxu0 0.0
  %3104 = vmatprep.subr.mxu0 0.0
  %3105 = vmatpush2.msra.mxu0 0.0
  %3106 = vmatprep.subr.mxu0 0.0
  %3107 = vmatpush2.msra.mxu0 0.0
  %3108 = vmatprep.subr.mxu0 0.0
  %3109 = vmatpush2.msra.mxu0 0.0
  %3110 = vmatprep.subr.mxu0 0.0
  %3111 = vmatpush2.msra.mxu0 0.0
  %3112 = vmatprep.subr.mxu0 0.0
  %3113 = vmatpush2.msra.mxu0 0.0
  %3114 = vmatprep.subr.mxu0 0.0
  %3115 = vmatpush2.msra.mxu0 0.0
  %3116 = vmatprep.subr.mxu0 0.0
  %3117 = vmatpush2.msra.mxu0 0.0
  %3118 = vmatprep.subr.mxu0 0.0
  %3119 = vmatpush2.msra.mxu0 0.0
  %3120 = vmatprep.subr.mxu0 0.0
  %3121 = vmatpush2.msra.mxu0 0.0
  %3122 = vmatprep.mubr.f32.mxu0 0.0
  %3123 = vmatmul.mubr.f32.gmra.mxu0 %v3056
  %v3124 = vpop.f32.mrf.mxu0
  %v3125 = vadd.f32 0.0, %v3124
  %v3126 = vpop.f32.mrf.mxu0
  %3127 = vdwg.mxu0
  %v3129 = vsel %vm866, %v2829, 0
  %3131 = vmatprep.subr.mxu0 0.0
  %3132 = vmatpush1.msra.mxu0 0.0
  %3133 = vmatprep.subr.mxu0 0.0
  %3134 = vmatpush1.msra.mxu0 0.0
  %3135 = vmatprep.subr.mxu0 0.0
  %3136 = vmatpush1.msra.mxu0 0.0
  %3137 = vmatprep.subr.mxu0 0.0
  %3138 = vmatpush1.msra.mxu0 0.0
  %3139 = vmatprep.subr.mxu0 0.0
  %3140 = vmatpush1.msra.mxu0 0.0
  %3141 = vmatprep.subr.mxu0 0.0
  %3142 = vmatpush1.msra.mxu0 0.0
  %3143 = vmatprep.subr.mxu0 0.0
  %3144 = vmatpush1.msra.mxu0 0.0
  %3145 = vmatprep.subr.mxu0 0.0
  %3146 = vmatpush1.msra.mxu0 0.0
  %3147 = vmatprep.subr.mxu0 0.0
  %3148 = vmatpush1.msra.mxu0 0.0
  %3149 = vmatprep.subr.mxu0 0.0
  %3150 = vmatpush1.msra.mxu0 0.0
  %3151 = vmatprep.subr.mxu0 0.0
  %3152 = vmatpush1.msra.mxu0 0.0
  %3153 = vmatprep.subr.mxu0 0.0
  %3154 = vmatpush1.msra.mxu0 0.0
  %3155 = vmatprep.subr.mxu0 0.0
  %3156 = vmatpush1.msra.mxu0 0.0
  %3157 = vmatprep.subr.mxu0 0.0
  %3158 = vmatpush1.msra.mxu0 0.0
  %3159 = vmatprep.subr.mxu0 0.0
  %3160 = vmatpush1.msra.mxu0 0.0
  %3161 = vmatprep.subr.mxu0 0.0
  %3162 = vmatpush1.msra.mxu0 %v2088
  %3163 = vmatprep.subr.mxu0 0.0
  %3164 = vmatpush2.msra.mxu0 0.0
  %3165 = vmatprep.subr.mxu0 0.0
  %3166 = vmatpush2.msra.mxu0 0.0
  %3167 = vmatprep.subr.mxu0 0.0
  %3168 = vmatpush2.msra.mxu0 0.0
  %3169 = vmatprep.subr.mxu0 0.0
  %3170 = vmatpush2.msra.mxu0 0.0
  %3171 = vmatprep.subr.mxu0 0.0
  %3172 = vmatpush2.msra.mxu0 0.0
  %3173 = vmatprep.subr.mxu0 0.0
  %3174 = vmatpush2.msra.mxu0 0.0
  %3175 = vmatprep.subr.mxu0 0.0
  %3176 = vmatpush2.msra.mxu0 0.0
  %3177 = vmatprep.subr.mxu0 0.0
  %3178 = vmatpush2.msra.mxu0 0.0
  %3179 = vmatprep.subr.mxu0 0.0
  %3180 = vmatpush2.msra.mxu0 0.0
  %3181 = vmatprep.subr.mxu0 0.0
  %3182 = vmatpush2.msra.mxu0 0.0
  %3183 = vmatprep.subr.mxu0 0.0
  %3184 = vmatpush2.msra.mxu0 0.0
  %3185 = vmatprep.subr.mxu0 0.0
  %3186 = vmatpush2.msra.mxu0 0.0
  %3187 = vmatprep.subr.mxu0 0.0
  %3188 = vmatpush2.msra.mxu0 0.0
  %3189 = vmatprep.subr.mxu0 0.0
  %3190 = vmatpush2.msra.mxu0 0.0
  %3191 = vmatprep.subr.mxu0 0.0
  %3192 = vmatpush2.msra.mxu0 0.0
  %3193 = vmatprep.subr.mxu0 0.0
  %3194 = vmatpush2.msra.mxu0 0.0
  %3195 = vmatprep.mubr.f32.mxu0 0.0
  %3196 = vmatmul.mubr.f32.gmra.mxu0 %v3129
  %v3197 = vpop.f32.mrf.mxu0
  %v3198 = vadd.f32 0.0, %v3197
  %v3199 = vpop.f32.mrf.mxu0
  %3200 = vdwg.mxu0
  %v3202 = vsel %vm866, %v2831, 0
  %3204 = vmatprep.subr.mxu0 0.0
  %3205 = vmatpush1.msra.mxu0 0.0
  %3206 = vmatprep.subr.mxu0 0.0
  %3207 = vmatpush1.msra.mxu0 0.0
  %3208 = vmatprep.subr.mxu0 0.0
  %3209 = vmatpush1.msra.mxu0 0.0
  %3210 = vmatprep.subr.mxu0 0.0
  %3211 = vmatpush1.msra.mxu0 0.0
  %3212 = vmatprep.subr.mxu0 0.0
  %3213 = vmatpush1.msra.mxu0 0.0
  %3214 = vmatprep.subr.mxu0 0.0
  %3215 = vmatpush1.msra.mxu0 0.0
  %3216 = vmatprep.subr.mxu0 0.0
  %3217 = vmatpush1.msra.mxu0 0.0
  %3218 = vmatprep.subr.mxu0 0.0
  %3219 = vmatpush1.msra.mxu0 0.0
  %3220 = vmatprep.subr.mxu0 0.0
  %3221 = vmatpush1.msra.mxu0 0.0
  %3222 = vmatprep.subr.mxu0 0.0
  %3223 = vmatpush1.msra.mxu0 0.0
  %3224 = vmatprep.subr.mxu0 0.0
  %3225 = vmatpush1.msra.mxu0 0.0
  %3226 = vmatprep.subr.mxu0 0.0
  %3227 = vmatpush1.msra.mxu0 0.0
  %3228 = vmatprep.subr.mxu0 0.0
  %3229 = vmatpush1.msra.mxu0 0.0
  %3230 = vmatprep.subr.mxu0 0.0
  %3231 = vmatpush1.msra.mxu0 0.0
  %3232 = vmatprep.subr.mxu0 0.0
  %3233 = vmatpush1.msra.mxu0 0.0
  %3234 = vmatprep.subr.mxu0 0.0
  %3235 = vmatpush1.msra.mxu0 %v2116
  %3236 = vmatprep.subr.mxu0 0.0
  %3237 = vmatpush2.msra.mxu0 0.0
  %3238 = vmatprep.subr.mxu0 0.0
  %3239 = vmatpush2.msra.mxu0 0.0
  %3240 = vmatprep.subr.mxu0 0.0
  %3241 = vmatpush2.msra.mxu0 0.0
  %3242 = vmatprep.subr.mxu0 0.0
  %3243 = vmatpush2.msra.mxu0 0.0
  %3244 = vmatprep.subr.mxu0 0.0
  %3245 = vmatpush2.msra.mxu0 0.0
  %3246 = vmatprep.subr.mxu0 0.0
  %3247 = vmatpush2.msra.mxu0 0.0
  %3248 = vmatprep.subr.mxu0 0.0
  %3249 = vmatpush2.msra.mxu0 0.0
  %3250 = vmatprep.subr.mxu0 0.0
  %3251 = vmatpush2.msra.mxu0 0.0
  %3252 = vmatprep.subr.mxu0 0.0
  %3253 = vmatpush2.msra.mxu0 0.0
  %3254 = vmatprep.subr.mxu0 0.0
  %3255 = vmatpush2.msra.mxu0 0.0
  %3256 = vmatprep.subr.mxu0 0.0
  %3257 = vmatpush2.msra.mxu0 0.0
  %3258 = vmatprep.subr.mxu0 0.0
  %3259 = vmatpush2.msra.mxu0 0.0
  %3260 = vmatprep.subr.mxu0 0.0
  %3261 = vmatpush2.msra.mxu0 0.0
  %3262 = vmatprep.subr.mxu0 0.0
  %3263 = vmatpush2.msra.mxu0 0.0
  %3264 = vmatprep.subr.mxu0 0.0
  %3265 = vmatpush2.msra.mxu0 0.0
  %3266 = vmatprep.subr.mxu0 0.0
  %3267 = vmatpush2.msra.mxu0 0.0
  %3268 = vmatprep.mubr.f32.mxu0 0.0
  %3269 = vmatmul.mubr.f32.gmra.mxu0 %v3202
  %v3270 = vpop.f32.mrf.mxu0
  %v3271 = vadd.f32 0.0, %v3270
  %v3272 = vpop.f32.mrf.mxu0
  %3273 = vdwg.mxu0
  %v3275 = vsel %vm866, %v2833, 0
  %3277 = vmatprep.subr.mxu0 0.0
  %3278 = vmatpush1.msra.mxu0 0.0
  %3279 = vmatprep.subr.mxu0 0.0
  %3280 = vmatpush1.msra.mxu0 0.0
  %3281 = vmatprep.subr.mxu0 0.0
  %3282 = vmatpush1.msra.mxu0 0.0
  %3283 = vmatprep.subr.mxu0 0.0
  %3284 = vmatpush1.msra.mxu0 0.0
  %3285 = vmatprep.subr.mxu0 0.0
  %3286 = vmatpush1.msra.mxu0 0.0
  %3287 = vmatprep.subr.mxu0 0.0
  %3288 = vmatpush1.msra.mxu0 0.0
  %3289 = vmatprep.subr.mxu0 0.0
  %3290 = vmatpush1.msra.mxu0 0.0
  %3291 = vmatprep.subr.mxu0 0.0
  %3292 = vmatpush1.msra.mxu0 0.0
  %3293 = vmatprep.subr.mxu0 0.0
  %3294 = vmatpush1.msra.mxu0 0.0
  %3295 = vmatprep.subr.mxu0 0.0
  %3296 = vmatpush1.msra.mxu0 0.0
  %3297 = vmatprep.subr.mxu0 0.0
  %3298 = vmatpush1.msra.mxu0 0.0
  %3299 = vmatprep.subr.mxu0 0.0
  %3300 = vmatpush1.msra.mxu0 0.0
  %3301 = vmatprep.subr.mxu0 0.0
  %3302 = vmatpush1.msra.mxu0 0.0
  %3303 = vmatprep.subr.mxu0 0.0
  %3304 = vmatpush1.msra.mxu0 0.0
  %3305 = vmatprep.subr.mxu0 0.0
  %3306 = vmatpush1.msra.mxu0 0.0
  %3307 = vmatprep.subr.mxu0 0.0
  %3308 = vmatpush1.msra.mxu0 %v2119
  %3309 = vmatprep.subr.mxu0 0.0
  %3310 = vmatpush2.msra.mxu0 0.0
  %3311 = vmatprep.subr.mxu0 0.0
  %3312 = vmatpush2.msra.mxu0 0.0
  %3313 = vmatprep.subr.mxu0 0.0
  %3314 = vmatpush2.msra.mxu0 0.0
  %3315 = vmatprep.subr.mxu0 0.0
  %3316 = vmatpush2.msra.mxu0 0.0
  %3317 = vmatprep.subr.mxu0 0.0
  %3318 = vmatpush2.msra.mxu0 0.0
  %3319 = vmatprep.subr.mxu0 0.0
  %3320 = vmatpush2.msra.mxu0 0.0
  %3321 = vmatprep.subr.mxu0 0.0
  %3322 = vmatpush2.msra.mxu0 0.0
  %3323 = vmatprep.subr.mxu0 0.0
  %3324 = vmatpush2.msra.mxu0 0.0
  %3325 = vmatprep.subr.mxu0 0.0
  %3326 = vmatpush2.msra.mxu0 0.0
  %3327 = vmatprep.subr.mxu0 0.0
  %3328 = vmatpush2.msra.mxu0 0.0
  %3329 = vmatprep.subr.mxu0 0.0
  %3330 = vmatpush2.msra.mxu0 0.0
  %3331 = vmatprep.subr.mxu0 0.0
  %3332 = vmatpush2.msra.mxu0 0.0
  %3333 = vmatprep.subr.mxu0 0.0
  %3334 = vmatpush2.msra.mxu0 0.0
  %3335 = vmatprep.subr.mxu0 0.0
  %3336 = vmatpush2.msra.mxu0 0.0
  %3337 = vmatprep.subr.mxu0 0.0
  %3338 = vmatpush2.msra.mxu0 0.0
  %3339 = vmatprep.subr.mxu0 0.0
  %3340 = vmatpush2.msra.mxu0 0.0
  %3341 = vmatprep.mubr.f32.mxu0 0.0
  %3342 = vmatmul.mubr.f32.gmra.mxu0 %v3275
  %v3343 = vpop.f32.mrf.mxu0
  %v3344 = vadd.f32 0.0, %v3343
  %v3345 = vpop.f32.mrf.mxu0
  %3346 = vdwg.mxu0
  %v3348 = vsel %vm866, %v2835, 0
  %3350 = vmatprep.subr.mxu0 0.0
  %3351 = vmatpush1.msra.mxu0 0.0
  %3352 = vmatprep.subr.mxu0 0.0
  %3353 = vmatpush1.msra.mxu0 0.0
  %3354 = vmatprep.subr.mxu0 0.0
  %3355 = vmatpush1.msra.mxu0 0.0
  %3356 = vmatprep.subr.mxu0 0.0
  %3357 = vmatpush1.msra.mxu0 0.0
  %3358 = vmatprep.subr.mxu0 0.0
  %3359 = vmatpush1.msra.mxu0 0.0
  %3360 = vmatprep.subr.mxu0 0.0
  %3361 = vmatpush1.msra.mxu0 0.0
  %3362 = vmatprep.subr.mxu0 0.0
  %3363 = vmatpush1.msra.mxu0 0.0
  %3364 = vmatprep.subr.mxu0 0.0
  %3365 = vmatpush1.msra.mxu0 0.0
  %3366 = vmatprep.subr.mxu0 0.0
  %3367 = vmatpush1.msra.mxu0 0.0
  %3368 = vmatprep.subr.mxu0 0.0
  %3369 = vmatpush1.msra.mxu0 0.0
  %3370 = vmatprep.subr.mxu0 0.0
  %3371 = vmatpush1.msra.mxu0 0.0
  %3372 = vmatprep.subr.mxu0 0.0
  %3373 = vmatpush1.msra.mxu0 0.0
  %3374 = vmatprep.subr.mxu0 0.0
  %3375 = vmatpush1.msra.mxu0 0.0
  %3376 = vmatprep.subr.mxu0 0.0
  %3377 = vmatpush1.msra.mxu0 0.0
  %3378 = vmatprep.subr.mxu0 0.0
  %3379 = vmatpush1.msra.mxu0 0.0
  %3380 = vmatprep.subr.mxu0 0.0
  %3381 = vmatpush1.msra.mxu0 %v2122
  %3382 = vmatprep.subr.mxu0 0.0
  %3383 = vmatpush2.msra.mxu0 0.0
  %3384 = vmatprep.subr.mxu0 0.0
  %3385 = vmatpush2.msra.mxu0 0.0
  %3386 = vmatprep.subr.mxu0 0.0
  %3387 = vmatpush2.msra.mxu0 0.0
  %3388 = vmatprep.subr.mxu0 0.0
  %3389 = vmatpush2.msra.mxu0 0.0
  %3390 = vmatprep.subr.mxu0 0.0
  %3391 = vmatpush2.msra.mxu0 0.0
  %3392 = vmatprep.subr.mxu0 0.0
  %3393 = vmatpush2.msra.mxu0 0.0
  %3394 = vmatprep.subr.mxu0 0.0
  %3395 = vmatpush2.msra.mxu0 0.0
  %3396 = vmatprep.subr.mxu0 0.0
  %3397 = vmatpush2.msra.mxu0 0.0
  %3398 = vmatprep.subr.mxu0 0.0
  %3399 = vmatpush2.msra.mxu0 0.0
  %3400 = vmatprep.subr.mxu0 0.0
  %3401 = vmatpush2.msra.mxu0 0.0
  %3402 = vmatprep.subr.mxu0 0.0
  %3403 = vmatpush2.msra.mxu0 0.0
  %3404 = vmatprep.subr.mxu0 0.0
  %3405 = vmatpush2.msra.mxu0 0.0
  %3406 = vmatprep.subr.mxu0 0.0
  %3407 = vmatpush2.msra.mxu0 0.0
  %3408 = vmatprep.subr.mxu0 0.0
  %3409 = vmatpush2.msra.mxu0 0.0
  %3410 = vmatprep.subr.mxu0 0.0
  %3411 = vmatpush2.msra.mxu0 0.0
  %3412 = vmatprep.subr.mxu0 0.0
  %3413 = vmatpush2.msra.mxu0 0.0
  %3414 = vmatprep.mubr.f32.mxu0 0.0
  %3415 = vmatmul.mubr.f32.gmra.mxu0 %v3348
  %v3416 = vpop.f32.mrf.mxu0
  %v3417 = vadd.f32 0.0, %v3416
  %v3418 = vpop.f32.mrf.mxu0
  %3419 = vdwg.mxu0
  %3421 = vrot.lane.b32.xlu0 %v2979, 16
  %v3422 = vpop.permute.xlu0 %3421
  %3425 = vrot.lane.b32.xlu0 %v3052, 32
  %v3426 = vpop.permute.xlu0 %3425
  %3429 = vrot.lane.b32.xlu0 %v3125, 48
  %v3430 = vpop.permute.xlu0 %3429
  %v3432 = vsel %vm241, %v2906, %v3422
  %v3433 = vsel %vm1552, %v3432, %v3426
  %v3434 = vsel %vm1554, %v3433, %v3430
  %3436 = vrot.lane.b32.xlu0 %v3271, 16
  %v3437 = vpop.permute.xlu0 %3436
  %3440 = vrot.lane.b32.xlu0 %v3344, 32
  %v3441 = vpop.permute.xlu0 %3440
  %3444 = vrot.lane.b32.xlu0 %v3417, 48
  %v3445 = vpop.permute.xlu0 %3444
  %v3447 = vsel %vm241, %v3198, %v3437
  %v3448 = vsel %vm1552, %v3447, %v3441
  %v3449 = vsel %vm1554, %v3448, %v3445
  %s3450 = scalar_lea.vmem %s4, 64
  %v3451 = vld [vmem:[%s3450] sm:$0xff]
  %v3452 = vld [vmem:[%s3450 + $0x8] sm:$0xff]
  %v3453 = vld [vmem:[%s3450 + $0x10] sm:$0xff]
  %v3454 = vld [vmem:[%s3450 + $0x18] sm:$0xff]
  %v3455 = vld [vmem:[%s3450 + $0x20] sm:$0xff]
  %v3456 = vld [vmem:[%s3450 + $0x28] sm:$0xff]
  %v3457 = vld [vmem:[%s3450 + $0x30] sm:$0xff]
  %v3458 = vld [vmem:[%s3450 + $0x38] sm:$0xff]
  %s3459 = scalar_lea.vmem %s5, 1
  %v3460 = vld [vmem:[%s3459] sm:$0x1]
  %v3462 = vlaneseq
  %v3463 = vshrl.u32 %v3462, 7
  %v3464 = vsub.s32 0, %v3463
  %v3465 = vrot.slane %v3460, %v3464
  %v3468 = vsel %vm62, %v3434, 0
  %v3471 = vsel %vm62, %v3449, 0
  %3473 = vmatprep.subr.mxu0 0.0
  %3474 = vmatpush1.msra.mxu0 0.0
  %3475 = vmatprep.subr.mxu0 0.0
  %3476 = vmatpush1.msra.mxu0 0.0
  %3477 = vmatprep.subr.mxu0 0.0
  %3478 = vmatpush1.msra.mxu0 0.0
  %3479 = vmatprep.subr.mxu0 0.0
  %3480 = vmatpush1.msra.mxu0 0.0
  %3481 = vmatprep.subr.mxu0 0.0
  %3482 = vmatpush1.msra.mxu0 0.0
  %3483 = vmatprep.subr.mxu0 0.0
  %3484 = vmatpush1.msra.mxu0 0.0
  %3485 = vmatprep.subr.mxu0 0.0
  %3486 = vmatpush1.msra.mxu0 0.0
  %3487 = vmatprep.subr.mxu0 0.0
  %3488 = vmatpush1.msra.mxu0 0.0
  %3489 = vmatprep.subr.mxu0 0.0
  %3490 = vmatpush1.msra.mxu0 %v3458
  %3491 = vmatprep.subr.mxu0 0.0
  %3492 = vmatpush1.msra.mxu0 %v3457
  %3493 = vmatprep.subr.mxu0 0.0
  %3494 = vmatpush1.msra.mxu0 %v3456
  %3495 = vmatprep.subr.mxu0 0.0
  %3496 = vmatpush1.msra.mxu0 %v3455
  %3497 = vmatprep.subr.mxu0 0.0
  %3498 = vmatpush1.msra.mxu0 %v3454
  %3499 = vmatprep.subr.mxu0 0.0
  %3500 = vmatpush1.msra.mxu0 %v3453
  %3501 = vmatprep.subr.mxu0 0.0
  %3502 = vmatpush1.msra.mxu0 %v3452
  %3503 = vmatprep.subr.mxu0 0.0
  %3504 = vmatpush1.msra.mxu0 %v3451
  %3505 = vmatprep.subr.mxu0 0.0
  %3506 = vmatpush2.msra.mxu0 0.0
  %3507 = vmatprep.subr.mxu0 0.0
  %3508 = vmatpush2.msra.mxu0 0.0
  %3509 = vmatprep.subr.mxu0 0.0
  %3510 = vmatpush2.msra.mxu0 0.0
  %3511 = vmatprep.subr.mxu0 0.0
  %3512 = vmatpush2.msra.mxu0 0.0
  %3513 = vmatprep.subr.mxu0 0.0
  %3514 = vmatpush2.msra.mxu0 0.0
  %3515 = vmatprep.subr.mxu0 0.0
  %3516 = vmatpush2.msra.mxu0 0.0
  %3517 = vmatprep.subr.mxu0 0.0
  %3518 = vmatpush2.msra.mxu0 0.0
  %3519 = vmatprep.subr.mxu0 0.0
  %3520 = vmatpush2.msra.mxu0 0.0
  %3521 = vmatprep.subr.mxu0 0.0
  %3522 = vmatpush2.msra.mxu0 0.0
  %3523 = vmatprep.subr.mxu0 0.0
  %3524 = vmatpush2.msra.mxu0 0.0
  %3525 = vmatprep.subr.mxu0 0.0
  %3526 = vmatpush2.msra.mxu0 0.0
  %3527 = vmatprep.subr.mxu0 0.0
  %3528 = vmatpush2.msra.mxu0 0.0
  %3529 = vmatprep.subr.mxu0 0.0
  %3530 = vmatpush2.msra.mxu0 0.0
  %3531 = vmatprep.subr.mxu0 0.0
  %3532 = vmatpush2.msra.mxu0 0.0
  %3533 = vmatprep.subr.mxu0 0.0
  %3534 = vmatpush2.msra.mxu0 0.0
  %3535 = vmatprep.subr.mxu0 0.0
  %3536 = vmatpush2.msra.mxu0 0.0
  %3537 = vmatprep.mubr.f32.mxu0 0.0
  %3538 = vmatmul.mubr.f32.gmra.mxu0 %v3468
  %v3539 = vpop.f32.mrf.mxu0
  %v3540 = vadd.f32 %v3465, %v3539
  %v3541 = vpop.f32.mrf.mxu0
  %3542 = vmatprep.mubr.f32.mxu0 0.0
  %3543 = vmatmul.mubr.f32.gmra.mxu0 %v3471
  %v3544 = vpop.f32.mrf.mxu0
  %v3545 = vadd.f32 %v3465, %v3544
  %v3546 = vpop.f32.mrf.mxu0
  %3547 = vdwg.mxu0
  %v3548 = vadd.f32 %v1942, %v3540
  %v3549 = vadd.f32 %v1943, %v3545
  %s3550 = scalar_lea.vmem %s6, 1
  %v3551 = vld [vmem:[%s3550] sm:$0x1]
  %s3552 = scalar_lea.vmem %s7, 1
  %v3553 = vld [vmem:[%s3552] sm:$0x1]
  %v3554 = vsel %vm62, %v3548, 0.0
  %3555 = vadd.xlane.f32.xlu0 %v3554
  %v3556 = vpop.xlane.xlu0 %3555
  %v3557 = vsel %vm62, %v3549, 0.0
  %3558 = vadd.xlane.f32.xlu0 %v3557
  %v3559 = vpop.xlane.xlu0 %3558
  %v3560 = vmul.f32 %v3556, %v69
  %v3561 = vmul.f32 %v3559, %v69
  %v3562 = vsub.f32 %v3548, %v3560
  %v3563 = vsub.f32 %v3549, %v3561
  %v3564 = vmul.f32 %v3562, %v3562
  %v3565 = vmul.f32 %v3563, %v3563
  %v3566 = vsel %vm62, %v3564, 0.0
  %3567 = vadd.xlane.f32.xlu0 %v3566
  %v3568 = vpop.xlane.xlu0 %3567
  %v3569 = vsel %vm62, %v3565, 0.0
  %3570 = vadd.xlane.f32.xlu0 %v3569
  %v3571 = vpop.xlane.xlu0 %3570
  %v3572 = vmul.f32 %v3568, %v69
  %v3573 = vmul.f32 %v3571, %v69
  %v3574 = vadd.f32 %v3572, 1e-05
  %v3575 = vadd.f32 %v3573, 1e-05
  %v3576 = vrsqrt.pop %v3574
  %v3577 = vrsqrt.pop %v3575
  %v3578 = vmul.f32 %v3562, %v3576
  %v3579 = vmul.f32 %v3563, %v3577
  %v3581 = vlaneseq
  %v3582 = vshrl.u32 %v3581, 7
  %v3583 = vsub.s32 0, %v3582
  %v3584 = vrot.slane %v3551, %v3583
  %v3586 = vmul.f32 %v3578, %v3584
  %v3587 = vmul.f32 %v3579, %v3584
  %v3589 = vlaneseq
  %v3590 = vshrl.u32 %v3589, 7
  %v3591 = vsub.s32 0, %v3590
  %v3592 = vrot.slane %v3553, %v3591
  %v3594 = vadd.f32 %v3586, %v3592
  %v3595 = vadd.f32 %v3587, %v3592
  %s3596 = scalar_lea.vmem %s8, 128
  %v3597 = vld [vmem:[%s3596] sm:$0xff]
  %v3598 = vld [vmem:[%s3596 + $0x8] sm:$0xff]
  %v3599 = vld [vmem:[%s3596 + $0x10] sm:$0xff]
  %v3600 = vld [vmem:[%s3596 + $0x18] sm:$0xff]
  %v3601 = vld [vmem:[%s3596 + $0x20] sm:$0xff]
  %v3602 = vld [vmem:[%s3596 + $0x28] sm:$0xff]
  %v3603 = vld [vmem:[%s3596 + $0x30] sm:$0xff]
  %v3604 = vld [vmem:[%s3596 + $0x38] sm:$0xff]
  %v3605 = vld [vmem:[%s3596 + $0x40] sm:$0xff]
  %v3606 = vld [vmem:[%s3596 + $0x48] sm:$0xff]
  %v3607 = vld [vmem:[%s3596 + $0x50] sm:$0xff]
  %v3608 = vld [vmem:[%s3596 + $0x58] sm:$0xff]
  %v3609 = vld [vmem:[%s3596 + $0x60] sm:$0xff]
  %v3610 = vld [vmem:[%s3596 + $0x68] sm:$0xff]
  %v3611 = vld [vmem:[%s3596 + $0x70] sm:$0xff]
  %v3612 = vld [vmem:[%s3596 + $0x78] sm:$0xff]
  %s3613 = scalar_lea.vmem %s9, 2
  %v3614 = vld [vmem:[%s3613] sm:$0x3]
  %v3616 = vlaneseq
  %v3617 = vshrl.u32 %v3616, 7
  %v3618 = vsub.s32 0, %v3617
  %v3619 = vrot.slane %v3614, %v3618
  %v3620 = vlaneseq
  %v3621 = vshrl.u32 %v3620, 7
  %v3622 = vsub.s32 1, %v3621
  %v3623 = vrot.slane %v3614, %v3622
  %v3627 = vsel %vm62, %v3594, 0
  %v3630 = vsel %vm62, %v3595, 0
  %3632 = vmatprep.subr.mxu0 0.0
  %3633 = vmatpush1.msra.mxu0 0.0
  %3634 = vmatprep.subr.mxu0 0.0
  %3635 = vmatpush1.msra.mxu0 0.0
  %3636 = vmatprep.subr.mxu0 0.0
  %3637 = vmatpush1.msra.mxu0 0.0
  %3638 = vmatprep.subr.mxu0 0.0
  %3639 = vmatpush1.msra.mxu0 0.0
  %3640 = vmatprep.subr.mxu0 0.0
  %3641 = vmatpush1.msra.mxu0 0.0
  %3642 = vmatprep.subr.mxu0 0.0
  %3643 = vmatpush1.msra.mxu0 0.0
  %3644 = vmatprep.subr.mxu0 0.0
  %3645 = vmatpush1.msra.mxu0 0.0
  %3646 = vmatprep.subr.mxu0 0.0
  %3647 = vmatpush1.msra.mxu0 0.0
  %3648 = vmatprep.subr.mxu0 %v3612
  %3649 = vmatpush1.msra.mxu0 %v3611
  %3650 = vmatprep.subr.mxu0 %v3610
  %3651 = vmatpush1.msra.mxu0 %v3609
  %3652 = vmatprep.subr.mxu0 %v3608
  %3653 = vmatpush1.msra.mxu0 %v3607
  %3654 = vmatprep.subr.mxu0 %v3606
  %3655 = vmatpush1.msra.mxu0 %v3605
  %3656 = vmatprep.subr.mxu0 %v3604
  %3657 = vmatpush1.msra.mxu0 %v3603
  %3658 = vmatprep.subr.mxu0 %v3602
  %3659 = vmatpush1.msra.mxu0 %v3601
  %3660 = vmatprep.subr.mxu0 %v3600
  %3661 = vmatpush1.msra.mxu0 %v3599
  %3662 = vmatprep.subr.mxu0 %v3598
  %3663 = vmatpush1.msra.mxu0 %v3597
  %3664 = vmatprep.subr.mxu0 0.0
  %3665 = vmatpush2.msra.mxu0 0.0
  %3666 = vmatprep.subr.mxu0 0.0
  %3667 = vmatpush2.msra.mxu0 0.0
  %3668 = vmatprep.subr.mxu0 0.0
  %3669 = vmatpush2.msra.mxu0 0.0
  %3670 = vmatprep.subr.mxu0 0.0
  %3671 = vmatpush2.msra.mxu0 0.0
  %3672 = vmatprep.subr.mxu0 0.0
  %3673 = vmatpush2.msra.mxu0 0.0
  %3674 = vmatprep.subr.mxu0 0.0
  %3675 = vmatpush2.msra.mxu0 0.0
  %3676 = vmatprep.subr.mxu0 0.0
  %3677 = vmatpush2.msra.mxu0 0.0
  %3678 = vmatprep.subr.mxu0 0.0
  %3679 = vmatpush2.msra.mxu0 0.0
  %3680 = vmatprep.subr.mxu0 0.0
  %3681 = vmatpush2.msra.mxu0 0.0
  %3682 = vmatprep.subr.mxu0 0.0
  %3683 = vmatpush2.msra.mxu0 0.0
  %3684 = vmatprep.subr.mxu0 0.0
  %3685 = vmatpush2.msra.mxu0 0.0
  %3686 = vmatprep.subr.mxu0 0.0
  %3687 = vmatpush2.msra.mxu0 0.0
  %3688 = vmatprep.subr.mxu0 0.0
  %3689 = vmatpush2.msra.mxu0 0.0
  %3690 = vmatprep.subr.mxu0 0.0
  %3691 = vmatpush2.msra.mxu0 0.0
  %3692 = vmatprep.subr.mxu0 0.0
  %3693 = vmatpush2.msra.mxu0 0.0
  %3694 = vmatprep.subr.mxu0 0.0
  %3695 = vmatpush2.msra.mxu0 0.0
  %3696 = vmatprep.mubr.f32.mxu0 0.0
  %3697 = vmatmul.mubr.f32.gmra.mxu0 %v3627
  %v3698 = vpop.f32.mrf.mxu0
  %v3699 = vadd.f32 %v3619, %v3698
  %v3700 = vpop.f32.mrf.mxu0
  %v3701 = vadd.f32 %v3623, %v3700
  %3702 = vmatprep.mubr.f32.mxu0 0.0
  %3703 = vmatmul.mubr.f32.gmra.mxu0 %v3630
  %v3704 = vpop.f32.mrf.mxu0
  %v3705 = vadd.f32 %v3619, %v3704
  %v3706 = vpop.f32.mrf.mxu0
  %v3707 = vadd.f32 %v3623, %v3706
  %3708 = vdwg.mxu0
  %v3709 = vmax.f32 %v3699, 0.0
  %v3710 = vmax.f32 %v3701, 0.0
  %v3711 = vmax.f32 %v3705, 0.0
  %v3712 = vmax.f32 %v3707, 0.0
  %s3713 = scalar_lea.vmem %s10, 256
  %v3714 = vld [vmem:[%s3713] sm:$0xff]
  %v3715 = vld [vmem:[%s3713 + $0x8] sm:$0xff]
  %v3716 = vld [vmem:[%s3713 + $0x10] sm:$0xff]
  %v3717 = vld [vmem:[%s3713 + $0x18] sm:$0xff]
  %v3718 = vld [vmem:[%s3713 + $0x20] sm:$0xff]
  %v3719 = vld [vmem:[%s3713 + $0x28] sm:$0xff]
  %v3720 = vld [vmem:[%s3713 + $0x30] sm:$0xff]
  %v3721 = vld [vmem:[%s3713 + $0x38] sm:$0xff]
  %v3722 = vld [vmem:[%s3713 + $0x40] sm:$0xff]
  %v3723 = vld [vmem:[%s3713 + $0x48] sm:$0xff]
  %v3724 = vld [vmem:[%s3713 + $0x50] sm:$0xff]
  %v3725 = vld [vmem:[%s3713 + $0x58] sm:$0xff]
  %v3726 = vld [vmem:[%s3713 + $0x60] sm:$0xff]
  %v3727 = vld [vmem:[%s3713 + $0x68] sm:$0xff]
  %v3728 = vld [vmem:[%s3713 + $0x70] sm:$0xff]
  %v3729 = vld [vmem:[%s3713 + $0x78] sm:$0xff]
  %v3730 = vld [vmem:[%s3713 + $0x80] sm:$0xff]
  %v3731 = vld [vmem:[%s3713 + $0x88] sm:$0xff]
  %v3732 = vld [vmem:[%s3713 + $0x90] sm:$0xff]
  %v3733 = vld [vmem:[%s3713 + $0x98] sm:$0xff]
  %v3734 = vld [vmem:[%s3713 + $0xa0] sm:$0xff]
  %v3735 = vld [vmem:[%s3713 + $0xa8] sm:$0xff]
  %v3736 = vld [vmem:[%s3713 + $0xb0] sm:$0xff]
  %v3737 = vld [vmem:[%s3713 + $0xb8] sm:$0xff]
  %v3738 = vld [vmem:[%s3713 + $0xc0] sm:$0xff]
  %v3739 = vld [vmem:[%s3713 + $0xc8] sm:$0xff]
  %v3740 = vld [vmem:[%s3713 + $0xd0] sm:$0xff]
  %v3741 = vld [vmem:[%s3713 + $0xd8] sm:$0xff]
  %v3742 = vld [vmem:[%s3713 + $0xe0] sm:$0xff]
  %v3743 = vld [vmem:[%s3713 + $0xe8] sm:$0xff]
  %v3744 = vld [vmem:[%s3713 + $0xf0] sm:$0xff]
  %v3745 = vld [vmem:[%s3713 + $0xf8] sm:$0xff]
  %s3746 = scalar_lea.vmem %s11, 1
  %v3747 = vld [vmem:[%s3746] sm:$0x1]
  %v3749 = vlaneseq
  %v3750 = vshrl.u32 %v3749, 7
  %v3751 = vsub.s32 0, %v3750
  %v3752 = vrot.slane %v3747, %v3751
  %3754 = vmatprep.subr.mxu0 0.0
  %3755 = vmatpush1.msra.mxu0 %v3729
  %3756 = vmatprep.subr.mxu0 0.0
  %3757 = vmatpush1.msra.mxu0 %v3728
  %3758 = vmatprep.subr.mxu0 0.0
  %3759 = vmatpush1.msra.mxu0 %v3727
  %3760 = vmatprep.subr.mxu0 0.0
  %3761 = vmatpush1.msra.mxu0 %v3726
  %3762 = vmatprep.subr.mxu0 0.0
  %3763 = vmatpush1.msra.mxu0 %v3725
  %3764 = vmatprep.subr.mxu0 0.0
  %3765 = vmatpush1.msra.mxu0 %v3724
  %3766 = vmatprep.subr.mxu0 0.0
  %3767 = vmatpush1.msra.mxu0 %v3723
  %3768 = vmatprep.subr.mxu0 0.0
  %3769 = vmatpush1.msra.mxu0 %v3722
  %3770 = vmatprep.subr.mxu0 0.0
  %3771 = vmatpush1.msra.mxu0 %v3721
  %3772 = vmatprep.subr.mxu0 0.0
  %3773 = vmatpush1.msra.mxu0 %v3720
  %3774 = vmatprep.subr.mxu0 0.0
  %3775 = vmatpush1.msra.mxu0 %v3719
  %3776 = vmatprep.subr.mxu0 0.0
  %3777 = vmatpush1.msra.mxu0 %v3718
  %3778 = vmatprep.subr.mxu0 0.0
  %3779 = vmatpush1.msra.mxu0 %v3717
  %3780 = vmatprep.subr.mxu0 0.0
  %3781 = vmatpush1.msra.mxu0 %v3716
  %3782 = vmatprep.subr.mxu0 0.0
  %3783 = vmatpush1.msra.mxu0 %v3715
  %3784 = vmatprep.subr.mxu0 0.0
  %3785 = vmatpush1.msra.mxu0 %v3714
  %3786 = vmatprep.subr.mxu0 0.0
  %3787 = vmatpush2.msra.mxu0 %v3745
  %3788 = vmatprep.subr.mxu0 0.0
  %3789 = vmatpush2.msra.mxu0 %v3744
  %3790 = vmatprep.subr.mxu0 0.0
  %3791 = vmatpush2.msra.mxu0 %v3743
  %3792 = vmatprep.subr.mxu0 0.0
  %3793 = vmatpush2.msra.mxu0 %v3742
  %3794 = vmatprep.subr.mxu0 0.0
  %3795 = vmatpush2.msra.mxu0 %v3741
  %3796 = vmatprep.subr.mxu0 0.0
  %3797 = vmatpush2.msra.mxu0 %v3740
  %3798 = vmatprep.subr.mxu0 0.0
  %3799 = vmatpush2.msra.mxu0 %v3739
  %3800 = vmatprep.subr.mxu0 0.0
  %3801 = vmatpush2.msra.mxu0 %v3738
  %3802 = vmatprep.subr.mxu0 0.0
  %3803 = vmatpush2.msra.mxu0 %v3737
  %3804 = vmatprep.subr.mxu0 0.0
  %3805 = vmatpush2.msra.mxu0 %v3736
  %3806 = vmatprep.subr.mxu0 0.0
  %3807 = vmatpush2.msra.mxu0 %v3735
  %3808 = vmatprep.subr.mxu0 0.0
  %3809 = vmatpush2.msra.mxu0 %v3734
  %3810 = vmatprep.subr.mxu0 0.0
  %3811 = vmatpush2.msra.mxu0 %v3733
  %3812 = vmatprep.subr.mxu0 0.0
  %3813 = vmatpush2.msra.mxu0 %v3732
  %3814 = vmatprep.subr.mxu0 0.0
  %3815 = vmatpush2.msra.mxu0 %v3731
  %3816 = vmatprep.subr.mxu0 0.0
  %3817 = vmatpush2.msra.mxu0 %v3730
  %3818 = vmatprep.mubr.f32.mxu0 %v3710
  %3819 = vmatmul.mubr.f32.gmra.mxu0 %v3709
  %v3820 = vpop.f32.mrf.mxu0
  %v3821 = vadd.f32 %v3752, %v3820
  %v3822 = vpop.f32.mrf.mxu0
  %3823 = vmatprep.mubr.f32.mxu0 %v3712
  %3824 = vmatmul.mubr.f32.gmra.mxu0 %v3711
  %v3825 = vpop.f32.mrf.mxu0
  %v3826 = vadd.f32 %v3752, %v3825
  %v3827 = vpop.f32.mrf.mxu0
  %3828 = vdwg.mxu0
  %v3829 = vadd.f32 %v3548, %v3821
  %v3830 = vadd.f32 %v3549, %v3826
  %v3831 = vld [vmem:[%s12] sm:$0x1]
  %v3832 = vld [vmem:[%s13] sm:$0x1]
  %v3833 = vsel %vm62, %v3829, 0.0
  %3834 = vadd.xlane.f32.xlu0 %v3833
  %v3835 = vpop.xlane.xlu0 %3834
  %v3836 = vsel %vm62, %v3830, 0.0
  %3837 = vadd.xlane.f32.xlu0 %v3836
  %v3838 = vpop.xlane.xlu0 %3837
  %v3839 = vmul.f32 %v3835, %v69
  %v3840 = vmul.f32 %v3838, %v69
  %v3841 = vsub.f32 %v3829, %v3839
  %v3842 = vsub.f32 %v3830, %v3840
  %v3843 = vmul.f32 %v3841, %v3841
  %v3844 = vmul.f32 %v3842, %v3842
  %v3845 = vsel %vm62, %v3843, 0.0
  %3846 = vadd.xlane.f32.xlu0 %v3845
  %v3847 = vpop.xlane.xlu0 %3846
  %v3848 = vsel %vm62, %v3844, 0.0
  %3849 = vadd.xlane.f32.xlu0 %v3848
  %v3850 = vpop.xlane.xlu0 %3849
  %v3851 = vmul.f32 %v3847, %v69
  %v3852 = vmul.f32 %v3850, %v69
  %v3853 = vadd.f32 %v3851, 1e-05
  %v3854 = vadd.f32 %v3852, 1e-05
  %v3855 = vrsqrt.pop %v3853
  %v3856 = vrsqrt.pop %v3854
  %v3857 = vmul.f32 %v3841, %v3855
  %v3858 = vmul.f32 %v3842, %v3856
  %v3860 = vlaneseq
  %v3861 = vshrl.u32 %v3860, 7
  %v3862 = vsub.s32 0, %v3861
  %v3863 = vrot.slane %v3831, %v3862
  %v3865 = vmul.f32 %v3857, %v3863
  %v3866 = vmul.f32 %v3858, %v3863
  %v3868 = vlaneseq
  %v3869 = vshrl.u32 %v3868, 7
  %v3870 = vsub.s32 0, %v3869
  %v3871 = vrot.slane %v3832, %v3870
  %v3873 = vadd.f32 %v3865, %v3871
  %v3874 = vadd.f32 %v3866, %v3871
  %v3875 = vld [vmem:[%s14] sm:$0xff]
  %v3876 = vld [vmem:[%s14 + $0x8] sm:$0xff]
  %v3877 = vld [vmem:[%s14 + $0x10] sm:$0xff]
  %v3878 = vld [vmem:[%s14 + $0x18] sm:$0xff]
  %v3879 = vld [vmem:[%s14 + $0x20] sm:$0xff]
  %v3880 = vld [vmem:[%s14 + $0x28] sm:$0xff]
  %v3881 = vld [vmem:[%s14 + $0x30] sm:$0xff]
  %v3882 = vld [vmem:[%s14 + $0x38] sm:$0xff]
  %v3883 = vld [vmem:[%s15] sm:$0x1]
  %v3885 = vlaneseq
  %v3886 = vshrl.u32 %v3885, 7
  %v3887 = vsub.s32 0, %v3886
  %v3888 = vrot.slane %v3883, %v3887
  %v3891 = vsel %vm62, %v3873, 0
  %v3894 = vsel %vm62, %v3874, 0
  %3896 = vmatprep.subr.mxu0 0.0
  %3897 = vmatpush1.msra.mxu0 0.0
  %3898 = vmatprep.subr.mxu0 0.0
  %3899 = vmatpush1.msra.mxu0 0.0
  %3900 = vmatprep.subr.mxu0 0.0
  %3901 = vmatpush1.msra.mxu0 0.0
  %3902 = vmatprep.subr.mxu0 0.0
  %3903 = vmatpush1.msra.mxu0 0.0
  %3904 = vmatprep.subr.mxu0 0.0
  %3905 = vmatpush1.msra.mxu0 0.0
  %3906 = vmatprep.subr.mxu0 0.0
  %3907 = vmatpush1.msra.mxu0 0.0
  %3908 = vmatprep.subr.mxu0 0.0
  %3909 = vmatpush1.msra.mxu0 0.0
  %3910 = vmatprep.subr.mxu0 0.0
  %3911 = vmatpush1.msra.mxu0 0.0
  %3912 = vmatprep.subr.mxu0 0.0
  %3913 = vmatpush1.msra.mxu0 %v3882
  %3914 = vmatprep.subr.mxu0 0.0
  %3915 = vmatpush1.msra.mxu0 %v3881
  %3916 = vmatprep.subr.mxu0 0.0
  %3917 = vmatpush1.msra.mxu0 %v3880
  %3918 = vmatprep.subr.mxu0 0.0
  %3919 = vmatpush1.msra.mxu0 %v3879
  %3920 = vmatprep.subr.mxu0 0.0
  %3921 = vmatpush1.msra.mxu0 %v3878
  %3922 = vmatprep.subr.mxu0 0.0
  %3923 = vmatpush1.msra.mxu0 %v3877
  %3924 = vmatprep.subr.mxu0 0.0
  %3925 = vmatpush1.msra.mxu0 %v3876
  %3926 = vmatprep.subr.mxu0 0.0
  %3927 = vmatpush1.msra.mxu0 %v3875
  %3928 = vmatprep.subr.mxu0 0.0
  %3929 = vmatpush2.msra.mxu0 0.0
  %3930 = vmatprep.subr.mxu0 0.0
  %3931 = vmatpush2.msra.mxu0 0.0
  %3932 = vmatprep.subr.mxu0 0.0
  %3933 = vmatpush2.msra.mxu0 0.0
  %3934 = vmatprep.subr.mxu0 0.0
  %3935 = vmatpush2.msra.mxu0 0.0
  %3936 = vmatprep.subr.mxu0 0.0
  %3937 = vmatpush2.msra.mxu0 0.0
  %3938 = vmatprep.subr.mxu0 0.0
  %3939 = vmatpush2.msra.mxu0 0.0
  %3940 = vmatprep.subr.mxu0 0.0
  %3941 = vmatpush2.msra.mxu0 0.0
  %3942 = vmatprep.subr.mxu0 0.0
  %3943 = vmatpush2.msra.mxu0 0.0
  %3944 = vmatprep.subr.mxu0 0.0
  %3945 = vmatpush2.msra.mxu0 0.0
  %3946 = vmatprep.subr.mxu0 0.0
  %3947 = vmatpush2.msra.mxu0 0.0
  %3948 = vmatprep.subr.mxu0 0.0
  %3949 = vmatpush2.msra.mxu0 0.0
  %3950 = vmatprep.subr.mxu0 0.0
  %3951 = vmatpush2.msra.mxu0 0.0
  %3952 = vmatprep.subr.mxu0 0.0
  %3953 = vmatpush2.msra.mxu0 0.0
  %3954 = vmatprep.subr.mxu0 0.0
  %3955 = vmatpush2.msra.mxu0 0.0
  %3956 = vmatprep.subr.mxu0 0.0
  %3957 = vmatpush2.msra.mxu0 0.0
  %3958 = vmatprep.subr.mxu0 0.0
  %3959 = vmatpush2.msra.mxu0 0.0
  %3960 = vmatprep.mubr.f32.mxu0 0.0
  %3961 = vmatmul.mubr.f32.gmra.mxu0 %v3891
  %v3962 = vpop.f32.mrf.mxu0
  %v3963 = vadd.f32 %v3888, %v3962
  %v3964 = vpop.f32.mrf.mxu0
  %3965 = vmatprep.mubr.f32.mxu0 0.0
  %3966 = vmatmul.mubr.f32.gmra.mxu0 %v3894
  %v3967 = vpop.f32.mrf.mxu0
  %v3968 = vadd.f32 %v3888, %v3967
  %v3969 = vpop.f32.mrf.mxu0
  %3970 = vdwg.mxu0
  %3971 = vst [vmem:[%s16] sm:$0xff] %v3963
  %3972 = vst [vmem:[%s16 + $0x8] sm:$0xff] %v3968
  // Predicated region
  $region66: #{model_forward.1} parent=0 // pred_check
    _
  $region67: #{model_forward.1} parent=0 // pred_check_branch
    %3974 = sbr.rel (0) target = $region69
  $region68: #{model_forward.1} parent=0 // pred_region
    _
  $region69: #{model_forward.1} parent=0 // pred_fallthru
    _
  // Predicated region
  $region70: #{model_forward.1} parent=0 // pred_check
    _
  $region71: #{model_forward.1} parent=0 // pred_check_branch
    %3976 = sbr.rel (0) target = $region73
  $region72: #{model_forward.1} parent=0 // pred_region
    _
  $region73: #{model_forward.1} parent=0 // pred_fallthru
    _

</llo_original>
